<compile_context>
chip_gen: v7x
topology: tpu7x:2x2x1
jax: 0.10.0
libtpu: 0.0.40
codegen_flags: <defaults>
</compile_context>

<pallas_src>
import math
from functools import partial

import numpy as np
import jax
import jax.numpy as jnp
from jax import lax
from jax.experimental import pallas as pl
from jax.experimental.pallas import tpu as pltpu


_MXU_DTYPE = jnp.bfloat16      # matmul-input dtype (accumulation stays f32)
_ACT_DTYPE = jnp.bfloat16      # inter-block activation dtype in HBM
_LN_EPS = 1e-5                 # torch.nn.LayerNorm default


def _vmem_limit_bytes():
    """Generation-dependent VMEM limit: ~3/4 of physical capacity."""
    try:
        cap = int(pltpu.get_tpu_info().vmem_capacity_bytes)
        if cap <= 0:
            raise ValueError
    except Exception:
        return 64 * 1024 * 1024          # conservative fallback, safe on all gens
    return max(32 * 1024 * 1024, min((cap * 3) // 4, 112 * 1024 * 1024))


_VMEM_LIMIT = _vmem_limit_bytes()


def _cparams(sem):
    return pltpu.CompilerParams(dimension_semantics=sem,
                                vmem_limit_bytes=_VMEM_LIMIT)


def _rep(shape):
    """BlockSpec for an array fully resident / identical on every grid step.
    TODO(synk): request single buffering (pipeline_mode=pl.Buffered(1)) for these
    grid-invariant weight slabs on v7x at real BERT sizes."""
    n = len(shape)
    return pl.BlockSpec(shape, lambda *_: (0,) * n)


def _row_tile(S):
    """Row-tile size for the seq grid axis (full sequence if S is small/ragged)."""
    if S <= 128 or S % 128 != 0:
        return S
    return 128


def _layernorm(y, g, b, eps):
    mu = jnp.mean(y, axis=-1, keepdims=True)
    yc = y - mu
    var = jnp.mean(yc * yc, axis=-1, keepdims=True)
    return yc * lax.rsqrt(var + eps) * g + b


def _bf16_dot(a, b):
    return jnp.dot(a.astype(_MXU_DTYPE), b.astype(_MXU_DTYPE),
                   preferred_element_type=jnp.float32)


# ----------------------------------------------------------------------------
# Shared transformer-layer math (operates on one row tile, refs passed through)
# ----------------------------------------------------------------------------

def _attn_ffn_rows(xt, xf, bias,
                   wq_r, wk_r, wv_r, bq_r, bk_r, bv_r, wo_r, bo_r, g1_r, be1_r,
                   w1_r, bf1_r, w2_r, bf2_r, g2_r, be2_r,
                   o_heads, *, n_heads, scale, eps):
    """One encoder layer (self-attn + FFN, post-norm) on `xt` (query rows) with
    keys/values from `xf` (full sequence).  Returns f32 (rows, D)."""
    D = xt.shape[-1]
    Dh = D // n_heads

    # Full-lane-width projections (K = N = D on the MXU), bf16 in / f32 accumulate.
    q = (_bf16_dot(xt, wq_r[...]) + bq_r[...]).astype(_MXU_DTYPE)   # (rows, D)
    k = (_bf16_dot(xf, wk_r[...]) + bk_r[...]).astype(_MXU_DTYPE)   # (S,    D)
    v = (_bf16_dot(xf, wv_r[...]) + bv_r[...]).astype(_MXU_DTYPE)   # (S,    D)

    # Per-head softmax(QK^T/sqrt(Dh) + bias) V; head outputs land in the merged
    # VMEM scratch so the out-projection below is one wide K=D matmul.
    for hd in range(n_heads):
        sl = slice(hd * Dh, (hd + 1) * Dh)
        s = lax.dot_general(q[:, sl], k[:, sl],
                            (((1,), (1,)), ((), ())),               # contract Dh (no k.T)
                            preferred_element_type=jnp.float32)
        s = s * scale + bias                                        # (rows, S) f32
        m = jnp.max(s, axis=-1, keepdims=True)
        p = jnp.exp(s - m)
        # EUP approximate reciprocal (frees the VPU divide slot); ~1ulp off exact.
        p = p * pl.reciprocal(jnp.sum(p, axis=-1, keepdims=True), approx=True)
        o_heads[:, sl] = jnp.dot(p.astype(_MXU_DTYPE), v[:, sl],
                                 preferred_element_type=jnp.float32)

    attn = _bf16_dot(o_heads[...], wo_r[...]) + bo_r[...]           # (rows, D)
    y1 = _layernorm(xt.astype(jnp.float32) + attn, g1_r[...], be1_r[...], eps)

    # FFN: relu(y1 @ w1 + b1) @ w2 + b2 -> residual -> LayerNorm.
    ff = jnp.maximum(_bf16_dot(y1, w1_r[...]) + bf1_r[...], 0.0)    # (rows, d_ff)
    y2 = _bf16_dot(ff, w2_r[...]) + bf2_r[...]                      # (rows, D)
    return _layernorm(y1 + y2, g2_r[...], be2_r[...], eps)


# ----------------------------------------------------------------------------
# Pallas kernels
# ----------------------------------------------------------------------------

def _embed_kernel(x_ref, w_ref, b_ref, pos_ref, o_ref, *, scale, use_vpu):
    # y = (x @ W + b) * sqrt(d_model) + pos      (Conv1d(k=1) == per-token linear)
    x = x_ref[0]                                  # (S, d_in) f32
    if use_vpu:
        # Tiny K: sum of broadcasted outer products on the VPU (skip the MXU).
        w = w_ref[...]                            # (d_in, D) f32
        y = x[:, 0:1] * w[0:1, :]
        for j in range(1, x.shape[-1]):
            y = y + x[:, j:j + 1] * w[j:j + 1, :]
    else:
        y = _bf16_dot(x, w_ref[...])
    y = y + b_ref[...]
    o_ref[0] = (y * scale + pos_ref[...]).astype(o_ref.dtype)


def _layer_kernel(hf_ref, ht_ref, bias_ref,
                  wq_r, wk_r, wv_r, bq_r, bk_r, bv_r, wo_r, bo_r, g1_r, be1_r,
                  w1_r, bf1_r, w2_r, bf2_r, g2_r, be2_r,
                  o_ref, o_heads, *, n_heads, scale, eps):
    y = _attn_ffn_rows(ht_ref[0], hf_ref[0], bias_ref[0],
                       wq_r, wk_r, wv_r, bq_r, bk_r, bv_r, wo_r, bo_r, g1_r, be1_r,
                       w1_r, bf1_r, w2_r, bf2_r, g2_r, be2_r,
                       o_heads, n_heads=n_heads, scale=scale, eps=eps)
    o_ref[0] = y.astype(o_ref.dtype)


def _last_layer_kernel(h_ref, bias_ref,
                       wq_r, wk_r, wv_r, bq_r, bk_r, bv_r, wo_r, bo_r, g1_r, be1_r,
                       w1_r, bf1_r, w2_r, bf2_r, g2_r, be2_r, fc_w_r, fc_b_r,
                       o_ref, o_heads, *, n_heads, scale, eps):
    x = h_ref[0]                                  # (S, D) bf16
    y = _attn_ffn_rows(x, x, bias_ref[0],
                       wq_r, wk_r, wv_r, bq_r, bk_r, bv_r, wo_r, bo_r, g1_r, be1_r,
                       w1_r, bf1_r, w2_r, bf2_r, g2_r, be2_r,
                       o_heads, n_heads=n_heads, scale=scale, eps=eps)
    # mean-pool over the sequence, then the final affine projection (exact swap:
    # mean(xW + b) == mean(x)W + b — do NOT apply if fc gains a nonlinearity).
    pooled = jnp.mean(y, axis=0, keepdims=True)                     # (1, D) f32
    o_ref[0] = _bf16_dot(pooled, fc_w_r[...]) + fc_b_r[...]         # (1, d_latent)


# ----------------------------------------------------------------------------
# pallas_call wrappers
# ----------------------------------------------------------------------------

def pallas_embed(x, emb_w, emb_b, pos, *, scale):
    B, S, d_in = x.shape
    D = emb_w.shape[1]
    return pl.pallas_call(
        partial(_embed_kernel, scale=scale, use_vpu=(d_in <= 8)),
        out_shape=jax.ShapeDtypeStruct((B, S, D), _ACT_DTYPE),
        grid=(B,),
        in_specs=[
            pl.BlockSpec((1, S, d_in), lambda b: (b, 0, 0)),
            _rep((d_in, D)),
            _rep((1, D)),
            _rep((S, D)),          # positional table broadcast via index_map
        ],
        out_specs=pl.BlockSpec((1, S, D), lambda b: (b, 0, 0)),
        compiler_params=_cparams(("parallel",)),
    )(x, emb_w, emb_b, pos)


def _layer_weight_specs(D, d_ff):
    return [
        _rep((D, D)), _rep((D, D)), _rep((D, D)),     # wq, wk, wv
        _rep((1, D)), _rep((1, D)), _rep((1, D)),     # bq, bk, bv
        _rep((D, D)), _rep((1, D)),                   # wo, bo
        _rep((1, D)), _rep((1, D)),                   # ln1 gamma / beta
        _rep((D, d_ff)), _rep((1, d_ff)),             # w1, b1
        _rep((d_ff, D)), _rep((1, D)),                # w2, b2
        _rep((1, D)), _rep((1, D)),                   # ln2 gamma / beta
    ]


def _layer_weight_args(lw):
    return (lw["wq"], lw["wk"], lw["wv"], lw["bq"], lw["bk"], lw["bv"],
            lw["wo"], lw["bo"], lw["ln1_g"], lw["ln1_b"],
            lw["w1"], lw["b1"], lw["w2"], lw["b2"], lw["ln2_g"], lw["ln2_b"])


def pallas_layer_block(h, attn_bias, lw, *, n_heads, eps=_LN_EPS):
    B, S, D = h.shape
    d_ff = lw["w1"].shape[1]
    t = _row_tile(S)
    nt = S // t
    kernel = partial(_layer_kernel, n_heads=n_heads,
                     scale=1.0 / math.sqrt(float(D // n_heads)), eps=eps)
    return pl.pallas_call(
        kernel,
        out_shape=jax.ShapeDtypeStruct((B, S, D), _ACT_DTYPE),
        grid=(B, nt),
        in_specs=[
            pl.BlockSpec((1, S, D), lambda b, i: (b, 0, 0)),   # full seq (K/V source)
            pl.BlockSpec((1, t, D), lambda b, i: (b, i, 0)),   # query / residual rows
            pl.BlockSpec((1, 1, S), lambda b, i: (b, 0, 0)),   # additive key-pad bias
        ] + _layer_weight_specs(D, d_ff),
        out_specs=pl.BlockSpec((1, t, D), lambda b, i: (b, i, 0)),
        scratch_shapes=[pltpu.VMEM((t, D), jnp.float32)],      # merged head outputs
        compiler_params=_cparams(("parallel", "parallel")),
    )(h, h, attn_bias, *_layer_weight_args(lw))


def pallas_last_layer_pool(h, attn_bias, lw, fc_w, fc_b, *, n_heads, eps=_LN_EPS):
    B, S, D = h.shape
    d_ff = lw["w1"].shape[1]
    L = fc_w.shape[1]
    kernel = partial(_last_layer_kernel, n_heads=n_heads,
                     scale=1.0 / math.sqrt(float(D // n_heads)), eps=eps)
    out = pl.pallas_call(
        kernel,
        out_shape=jax.ShapeDtypeStruct((B, 1, L), jnp.float32),
        grid=(B,),
        in_specs=[
            pl.BlockSpec((1, S, D), lambda b: (b, 0, 0)),
            pl.BlockSpec((1, 1, S), lambda b: (b, 0, 0)),
        ] + _layer_weight_specs(D, d_ff) + [
            _rep((D, L)), _rep((1, L)),                       # fc_w, fc_b
        ],
        out_specs=pl.BlockSpec((1, 1, L), lambda b: (b, 0, 0)),
        scratch_shapes=[pltpu.VMEM((S, D), jnp.float32)],
        compiler_params=_cparams(("parallel",)),
    )(h, attn_bias, *_layer_weight_args(lw), fc_w, fc_b)
    return out.reshape(B, L)


# ----------------------------------------------------------------------------
# Parameters (deterministic, synthetic) + one-time layout prep
# ----------------------------------------------------------------------------

def positional_encoding(max_len, emb_dim):
    pos = np.arange(max_len)[:, np.newaxis]
    i = np.arange(emb_dim)[np.newaxis, :]
    angle_rates = 1.0 / np.power(10000, 2 * (i // 2) / np.float32(emb_dim))
    angle_rads = pos * angle_rates
    angle_rads[:, 0::2] = np.sin(angle_rads[:, 0::2])
    angle_rads[:, 1::2] = np.cos(angle_rads[:, 1::2])
    return jnp.asarray(angle_rads, dtype=jnp.float32)   # (max_len, emb_dim)


def init_params(key, d_input, d_model, n_layers, n_heads, d_ff, d_latent, max_len):
    def w(k, shape):
        return jax.random.normal(k, shape, dtype=jnp.float32) * 0.02

    kcount = [0]

    def nk():
        kcount[0] += 1
        return jax.random.fold_in(key, kcount[0])

    params = {
        "emb_w": w(nk(), (d_input, d_model)),      # Conv1d(k=1) weight, transposed
        "emb_b": jnp.zeros((d_model,), jnp.float32),
        "pos": positional_encoding(max_len, d_model),
        "fc_w": w(nk(), (d_model, d_latent)),
        "fc_b": jnp.zeros((d_latent,), jnp.float32),
        "layers": [],
    }
    for _ in range(n_layers):
        params["layers"].append({
            "wqkv": w(nk(), (d_model, 3 * d_model)),
            "bqkv": jnp.zeros((3 * d_model,), jnp.float32),
            "wo": w(nk(), (d_model, d_model)),
            "bo": jnp.zeros((d_model,), jnp.float32),
            "w1": w(nk(), (d_model, d_ff)),
            "b1": jnp.zeros((d_ff,), jnp.float32),
            "w2": w(nk(), (d_ff, d_model)),
            "b2": jnp.zeros((d_model,), jnp.float32),
            "ln1_g": jnp.ones((d_model,), jnp.float32),
            "ln1_b": jnp.zeros((d_model,), jnp.float32),
            "ln2_g": jnp.ones((d_model,), jnp.float32),
            "ln2_b": jnp.zeros((d_model,), jnp.float32),
        })
    return params


def prepare_params(params):
    """One-time weight layout + bf16 casting, OUTSIDE the jitted forward:
    every per-generation forward call reuses these device-resident slabs."""
    D = params["emb_w"].shape[1]
    prepared = {
        "emb_w": params["emb_w"],                            # f32 (VPU path)
        "emb_b": params["emb_b"].reshape(1, D),
        "pos": params["pos"],
        "fc_w": params["fc_w"].astype(_MXU_DTYPE),
        "fc_b": params["fc_b"].reshape(1, -1),
        "layers": [],
    }
    for lyr in params["layers"]:
        wqkv, bqkv = lyr["wqkv"], lyr["bqkv"]
        prepared["layers"].append({
            "wq": wqkv[:, :D].astype(_MXU_DTYPE),
            "wk": wqkv[:, D:2 * D].astype(_MXU_DTYPE),
            "wv": wqkv[:, 2 * D:].astype(_MXU_DTYPE),
            "bq": bqkv[:D].reshape(1, D),
            "bk": bqkv[D:2 * D].reshape(1, D),
            "bv": bqkv[2 * D:].reshape(1, D),
            "wo": lyr["wo"].astype(_MXU_DTYPE),
            "bo": lyr["bo"].reshape(1, D),
            "ln1_g": lyr["ln1_g"].reshape(1, D),
            "ln1_b": lyr["ln1_b"].reshape(1, D),
            "w1": lyr["w1"].astype(_MXU_DTYPE),
            "b1": lyr["b1"].reshape(1, -1),
            "w2": lyr["w2"].astype(_MXU_DTYPE),
            "b2": lyr["b2"].reshape(1, D),
            "ln2_g": lyr["ln2_g"].reshape(1, D),
            "ln2_b": lyr["ln2_b"].reshape(1, D),
        })
    return prepared


# ----------------------------------------------------------------------------
# Forward pass
# ----------------------------------------------------------------------------

@partial(jax.jit, static_argnames=("n_heads", "pad_value"))
def bert_encoder_forward(prepared, batch, *, n_heads, pad_value=-1000.0):
    B, S, _ = batch.shape
    D = prepared["emb_b"].shape[-1]
    assert D % n_heads == 0

    # key padding mask -> additive attention bias (0 keep, -1e9 pad).
    # TODO(synk): PyTorch uses -inf for masked keys; -1e9 avoids NaNs for fully
    # masked rows and is identical when no padding is present (mask=None branch).
    key_pad = jnp.all(batch == pad_value, axis=-1)                  # (B, S) bool
    attn_bias = jnp.where(key_pad, -1e9, 0.0).astype(jnp.float32).reshape(B, 1, S)

    # Token + positional embedding (Conv1d k=1 == per-token linear).
    h = pallas_embed(batch, prepared["emb_w"], prepared["emb_b"],
                     prepared["pos"][:S], scale=math.sqrt(float(D)))

    # TransformerEncoder (post-norm, ReLU FFN, eval mode / no dropout):
    # one fused (attention + FFN + 2x LayerNorm) pallas_call per layer.
    layers = prepared["layers"]
    for lw in layers[:-1]:
        h = pallas_layer_block(h, attn_bias, lw, n_heads=n_heads)

    # Last layer fuses mean-pool + final FC in its epilogue.
    return pallas_last_layer_pool(h, attn_bias, layers[-1],
                                  prepared["fc_w"], prepared["fc_b"],
                                  n_heads=n_heads)


# ----------------------------------------------------------------------------
# Main
# ----------------------------------------------------------------------------

if __name__ == "__main__":
    # Small config consistent with the module's defaults (scaled down).
    B, S = 2, 8
    d_input = 2
    d_model = 32
    n_layers = 2
    n_heads = 4
    d_ff = 64
    d_latent = 16
    max_seq_len = 16

    key = jax.random.PRNGKey(0)
    params = init_params(key, d_input, d_model, n_layers, n_heads,
                         d_ff, d_latent, max_seq_len)
    prepared = prepare_params(params)          # one-time layout / bf16 cast
    batch = jax.random.normal(jax.random.fold_in(key, 12345),
                              (B, S, d_input), dtype=jnp.float32)

    out = bert_encoder_forward(prepared, batch, n_heads=n_heads)
    out = jax.block_until_ready(out)
    assert out.shape == (B, d_latent), out.shape
    assert bool(jnp.all(jnp.isfinite(out)))
    print("KERNEL_OK")
</pallas_src>

<mosaic_0001>
module attributes {stable_mosaic.version = 11 : i64} {
  func.func @_embed_kernel(%arg0: i32, %arg1: memref<1x8x2xf32, #tpu.memory_space<vmem>>, %arg2: memref<2x32xf32, #tpu.memory_space<vmem>>, %arg3: memref<1x32xf32, #tpu.memory_space<vmem>>, %arg4: memref<8x32xf32, #tpu.memory_space<vmem>>, %arg5: memref<1x8x32xbf16, #tpu.memory_space<vmem>>) attributes {dimension_semantics = [#tpu.dimension_semantics<parallel>], iteration_bounds = array<i64: 2>, scalar_prefetch = 0 : i64, scratch_operands = 0 : i64, tpu.core_type = #tpu.core_type<tc>, window_params = [{transform_indices = @transform_0, window_bounds = array<i64: 1, 8, 2>}, {pipeline_mode = #tpu.pipeline_mode<synchronous>, transform_indices = @transform_1, window_bounds = array<i64: 2, 32>}, {pipeline_mode = #tpu.pipeline_mode<synchronous>, transform_indices = @transform_2, window_bounds = array<i64: 1, 32>}, {pipeline_mode = #tpu.pipeline_mode<synchronous>, transform_indices = @transform_3, window_bounds = array<i64: 8, 32>}, {transform_indices = @transform_4, window_bounds = array<i64: 1, 8, 32>}]} {
    %c0 = arith.constant 0 : index
    %c0_0 = arith.constant 0 : index
    %c0_1 = arith.constant 0 : index
    %0 = vector.load %arg1[%c0, %c0_0, %c0_1] : memref<1x8x2xf32, #tpu.memory_space<vmem>>, vector<1x8x2xf32>
    %1 = vector.shape_cast %0 : vector<1x8x2xf32> to vector<8x2xf32>
    %c0_2 = arith.constant 0 : index
    %c0_3 = arith.constant 0 : index
    %2 = vector.load %arg2[%c0_2, %c0_3] : memref<2x32xf32, #tpu.memory_space<vmem>>, vector<2x32xf32>
    %3 = vector.extract_strided_slice %1 {offsets = [0, 0], sizes = [8, 1], strides = [1, 1]} : vector<8x2xf32> to vector<8x1xf32>
    %4 = vector.extract_strided_slice %2 {offsets = [0, 0], sizes = [1, 32], strides = [1, 1]} : vector<2x32xf32> to vector<1x32xf32>
    %5 = vector.broadcast %3 : vector<8x1xf32> to vector<8x32xf32>
    %6 = vector.broadcast %4 : vector<1x32xf32> to vector<8x32xf32>
    %7 = arith.mulf %5, %6 : vector<8x32xf32>
    %8 = vector.extract_strided_slice %1 {offsets = [0, 1], sizes = [8, 1], strides = [1, 1]} : vector<8x2xf32> to vector<8x1xf32>
    %9 = vector.extract_strided_slice %2 {offsets = [1, 0], sizes = [1, 32], strides = [1, 1]} : vector<2x32xf32> to vector<1x32xf32>
    %10 = vector.broadcast %8 : vector<8x1xf32> to vector<8x32xf32>
    %11 = vector.broadcast %9 : vector<1x32xf32> to vector<8x32xf32>
    %12 = arith.mulf %10, %11 : vector<8x32xf32>
    %13 = arith.addf %7, %12 : vector<8x32xf32>
    %c0_4 = arith.constant 0 : index
    %c0_5 = arith.constant 0 : index
    %14 = vector.load %arg3[%c0_4, %c0_5] : memref<1x32xf32, #tpu.memory_space<vmem>>, vector<1x32xf32>
    %15 = vector.broadcast %14 : vector<1x32xf32> to vector<8x32xf32>
    %16 = arith.addf %13, %15 : vector<8x32xf32>
    %cst = arith.constant 5.65685415 : f32
    %17 = vector.broadcast %cst : f32 to vector<8x32xf32>
    %18 = arith.mulf %16, %17 : vector<8x32xf32>
    %c0_6 = arith.constant 0 : index
    %c0_7 = arith.constant 0 : index
    %19 = vector.load %arg4[%c0_6, %c0_7] : memref<8x32xf32, #tpu.memory_space<vmem>>, vector<8x32xf32>
    %20 = arith.addf %18, %19 : vector<8x32xf32>
    %21 = arith.truncf %20 : vector<8x32xf32> to vector<8x32xbf16>
    %c0_8 = arith.constant 0 : index
    %c0_9 = arith.constant 0 : index
    %c0_10 = arith.constant 0 : index
    %22 = vector.load %arg5[%c0_8, %c0_9, %c0_10] : memref<1x8x32xbf16, #tpu.memory_space<vmem>>, vector<1x8x32xbf16>
    %23 = vector.shape_cast %22 : vector<1x8x32xbf16> to vector<8x32xbf16>
    %24 = vector.shape_cast %21 : vector<8x32xbf16> to vector<1x8x32xbf16>
    tpu.vector_store %arg5[%c0_8, %c0_9, %c0_10], %24 {strides = array<i32>} : memref<1x8x32xbf16, #tpu.memory_space<vmem>>, vector<1x8x32xbf16>,
    return
  }
  func.func @transform_0(%arg0: i32) -> (i32, i32, i32) {
    %c0_i32 = arith.constant 0 : i32
    %c0_i32_0 = arith.constant 0 : i32
    %c0_i32_1 = arith.constant 0 : i32
    return %arg0, %c0_i32, %c0_i32_0 : i32, i32, i32
  }
  func.func @transform_1(%arg0: i32) -> (i32, i32) {
    %c0_i32 = arith.constant 0 : i32
    %c0_i32_0 = arith.constant 0 : i32
    %c0_i32_1 = arith.constant 0 : i32
    return %c0_i32, %c0_i32_0 : i32, i32
  }
  func.func @transform_2(%arg0: i32) -> (i32, i32) {
    %c0_i32 = arith.constant 0 : i32
    %c0_i32_0 = arith.constant 0 : i32
    %c0_i32_1 = arith.constant 0 : i32
    return %c0_i32, %c0_i32_0 : i32, i32
  }
  func.func @transform_3(%arg0: i32) -> (i32, i32) {
    %c0_i32 = arith.constant 0 : i32
    %c0_i32_0 = arith.constant 0 : i32
    %c0_i32_1 = arith.constant 0 : i32
    return %c0_i32, %c0_i32_0 : i32, i32
  }
  func.func @transform_4(%arg0: i32) -> (i32, i32, i32) {
    %c0_i32 = arith.constant 0 : i32
    %c0_i32_0 = arith.constant 0 : i32
    %c0_i32_1 = arith.constant 0 : i32
    return %arg0, %c0_i32, %c0_i32_0 : i32, i32, i32
  }
}

module attributes {stable_mosaic.version = 11 : i64} {
  func.func @_layer_kernel(%arg0: i32, %arg1: i32, %arg2: memref<1x8x32xbf16, #tpu.memory_space<vmem>>, %arg3: memref<1x8x32xbf16, #tpu.memory_space<vmem>>, %arg4: memref<1x1x8xf32, #tpu.memory_space<vmem>>, %arg5: memref<32x32xbf16, #tpu.memory_space<vmem>>, %arg6: memref<32x32xbf16, #tpu.memory_space<vmem>>, %arg7: memref<32x32xbf16, #tpu.memory_space<vmem>>, %arg8: memref<1x32xf32, #tpu.memory_space<vmem>>, %arg9: memref<1x32xf32, #tpu.memory_space<vmem>>, %arg10: memref<1x32xf32, #tpu.memory_space<vmem>>, %arg11: memref<32x32xbf16, #tpu.memory_space<vmem>>, %arg12: memref<1x32xf32, #tpu.memory_space<vmem>>, %arg13: memref<1x32xf32, #tpu.memory_space<vmem>>, %arg14: memref<1x32xf32, #tpu.memory_space<vmem>>, %arg15: memref<32x64xbf16, #tpu.memory_space<vmem>>, %arg16: memref<1x64xf32, #tpu.memory_space<vmem>>, %arg17: memref<64x32xbf16, #tpu.memory_space<vmem>>, %arg18: memref<1x32xf32, #tpu.memory_space<vmem>>, %arg19: memref<1x32xf32, #tpu.memory_space<vmem>>, %arg20: memref<1x32xf32, #tpu.memory_space<vmem>>, %arg21: memref<1x8x32xbf16, #tpu.memory_space<vmem>>, %arg22: memref<8x32xf32, #tpu.memory_space<vmem>>) attributes {dimension_semantics = [#tpu.dimension_semantics<parallel>, #tpu.dimension_semantics<parallel>], iteration_bounds = array<i64: 2, 1>, scalar_prefetch = 0 : i64, scratch_operands = 1 : i64, tpu.core_type = #tpu.core_type<tc>, window_params = [{transform_indices = @transform_0, window_bounds = array<i64: 1, 8, 32>}, {transform_indices = @transform_1, window_bounds = array<i64: 1, 8, 32>}, {transform_indices = @transform_2, window_bounds = array<i64: 1, 1, 8>}, {pipeline_mode = #tpu.pipeline_mode<synchronous>, transform_indices = @transform_3, window_bounds = array<i64: 32, 32>}, {pipeline_mode = #tpu.pipeline_mode<synchronous>, transform_indices = @transform_4, window_bounds = array<i64: 32, 32>}, {pipeline_mode = #tpu.pipeline_mode<synchronous>, transform_indices = @transform_5, window_bounds = array<i64: 32, 32>}, {pipeline_mode = #tpu.pipeline_mode<synchronous>, transform_indices = @transform_6, window_bounds = array<i64: 1, 32>}, {pipeline_mode = #tpu.pipeline_mode<synchronous>, transform_indices = @transform_7, window_bounds = array<i64: 1, 32>}, {pipeline_mode = #tpu.pipeline_mode<synchronous>, transform_indices = @transform_8, window_bounds = array<i64: 1, 32>}, {pipeline_mode = #tpu.pipeline_mode<synchronous>, transform_indices = @transform_9, window_bounds = array<i64: 32, 32>}, {pipeline_mode = #tpu.pipeline_mode<synchronous>, transform_indices = @transform_10, window_bounds = array<i64: 1, 32>}, {pipeline_mode = #tpu.pipeline_mode<synchronous>, transform_indices = @transform_11, window_bounds = array<i64: 1, 32>}, {pipeline_mode = #tpu.pipeline_mode<synchronous>, transform_indices = @transform_12, window_bounds = array<i64: 1, 32>}, {pipeline_mode = #tpu.pipeline_mode<synchronous>, transform_indices = @transform_13, window_bounds = array<i64: 32, 64>}, {pipeline_mode = #tpu.pipeline_mode<synchronous>, transform_indices = @transform_14, window_bounds = array<i64: 1, 64>}, {pipeline_mode = #tpu.pipeline_mode<synchronous>, transform_indices = @transform_15, window_bounds = array<i64: 64, 32>}, {pipeline_mode = #tpu.pipeline_mode<synchronous>, transform_indices = @transform_16, window_bounds = array<i64: 1, 32>}, {pipeline_mode = #tpu.pipeline_mode<synchronous>, transform_indices = @transform_17, window_bounds = array<i64: 1, 32>}, {pipeline_mode = #tpu.pipeline_mode<synchronous>, transform_indices = @transform_18, window_bounds = array<i64: 1, 32>}, {transform_indices = @transform_19, window_bounds = array<i64: 1, 8, 32>}]} {
    %c0 = arith.constant 0 : index
    %c0_0 = arith.constant 0 : index
    %c0_1 = arith.constant 0 : index
    %0 = vector.load %arg3[%c0, %c0_0, %c0_1] : memref<1x8x32xbf16, #tpu.memory_space<vmem>>, vector<1x8x32xbf16>
    %1 = vector.shape_cast %0 : vector<1x8x32xbf16> to vector<8x32xbf16>
    %c0_2 = arith.constant 0 : index
    %c0_3 = arith.constant 0 : index
    %c0_4 = arith.constant 0 : index
    %2 = vector.load %arg2[%c0_2, %c0_3, %c0_4] : memref<1x8x32xbf16, #tpu.memory_space<vmem>>, vector<1x8x32xbf16>
    %3 = vector.shape_cast %2 : vector<1x8x32xbf16> to vector<8x32xbf16>
    %c0_5 = arith.constant 0 : index
    %c0_6 = arith.constant 0 : index
    %c0_7 = arith.constant 0 : index
    %4 = vector.load %arg4[%c0_5, %c0_6, %c0_7] : memref<1x1x8xf32, #tpu.memory_space<vmem>>, vector<1x1x8xf32>
    %5 = vector.shape_cast %4 : vector<1x1x8xf32> to vector<1x8xf32>
    %c0_8 = arith.constant 0 : index
    %c0_9 = arith.constant 0 : index
    %6 = vector.load %arg5[%c0_8, %c0_9] : memref<32x32xbf16, #tpu.memory_space<vmem>>, vector<32x32xbf16>
    %cst = arith.constant dense<0.000000e+00> : vector<8x32xf32>
    %7 = tpu.matmul %1, %6, %cst {dimension_numbers = #tpu.dot_dimension_numbers<[1], [0], [0], [1], [0, 0, 1, 1], [], []>} : vector<8x32xbf16>, vector<32x32xbf16>, vector<8x32xf32> -> vector<8x32xf32>
    %c0_10 = arith.constant 0 : index
    %c0_11 = arith.constant 0 : index
    %8 = vector.load %arg8[%c0_10, %c0_11] : memref<1x32xf32, #tpu.memory_space<vmem>>, vector<1x32xf32>
    %9 = vector.broadcast %8 : vector<1x32xf32> to vector<8x32xf32>
    %10 = arith.addf %7, %9 : vector<8x32xf32>
    %11 = arith.truncf %10 : vector<8x32xf32> to vector<8x32xbf16>
    %c0_12 = arith.constant 0 : index
    %c0_13 = arith.constant 0 : index
    %12 = vector.load %arg6[%c0_12, %c0_13] : memref<32x32xbf16, #tpu.memory_space<vmem>>, vector<32x32xbf16>
    %cst_14 = arith.constant dense<0.000000e+00> : vector<8x32xf32>
    %13 = tpu.matmul %3, %12, %cst_14 {dimension_numbers = #tpu.dot_dimension_numbers<[1], [0], [0], [1], [0, 0, 1, 1], [], []>} : vector<8x32xbf16>, vector<32x32xbf16>, vector<8x32xf32> -> vector<8x32xf32>
    %c0_15 = arith.constant 0 : index
    %c0_16 = arith.constant 0 : index
    %14 = vector.load %arg9[%c0_15, %c0_16] : memref<1x32xf32, #tpu.memory_space<vmem>>, vector<1x32xf32>
    %15 = vector.broadcast %14 : vector<1x32xf32> to vector<8x32xf32>
    %16 = arith.addf %13, %15 : vector<8x32xf32>
    %17 = arith.truncf %16 : vector<8x32xf32> to vector<8x32xbf16>
    %c0_17 = arith.constant 0 : index
    %c0_18 = arith.constant 0 : index
    %18 = vector.load %arg7[%c0_17, %c0_18] : memref<32x32xbf16, #tpu.memory_space<vmem>>, vector<32x32xbf16>
    %cst_19 = arith.constant dense<0.000000e+00> : vector<8x32xf32>
    %19 = tpu.matmul %3, %18, %cst_19 {dimension_numbers = #tpu.dot_dimension_numbers<[1], [0], [0], [1], [0, 0, 1, 1], [], []>} : vector<8x32xbf16>, vector<32x32xbf16>, vector<8x32xf32> -> vector<8x32xf32>
    %c0_20 = arith.constant 0 : index
    %c0_21 = arith.constant 0 : index
    %20 = vector.load %arg10[%c0_20, %c0_21] : memref<1x32xf32, #tpu.memory_space<vmem>>, vector<1x32xf32>
    %21 = vector.broadcast %20 : vector<1x32xf32> to vector<8x32xf32>
    %22 = arith.addf %19, %21 : vector<8x32xf32>
    %23 = arith.truncf %22 : vector<8x32xf32> to vector<8x32xbf16>
    %24 = vector.extract_strided_slice %11 {offsets = [0, 0], sizes = [8, 8], strides = [1, 1]} : vector<8x32xbf16> to vector<8x8xbf16>
    %25 = vector.extract_strided_slice %17 {offsets = [0, 0], sizes = [8, 8], strides = [1, 1]} : vector<8x32xbf16> to vector<8x8xbf16>
    %cst_22 = arith.constant dense<0.000000e+00> : vector<8x8xf32>
    %26 = tpu.matmul %24, %25, %cst_22 {dimension_numbers = #tpu.dot_dimension_numbers<[1], [1], [0], [0], [0, 0, 1, 0], [], []>} : vector<8x8xbf16>, vector<8x8xbf16>, vector<8x8xf32> -> vector<8x8xf32>
    %cst_23 = arith.constant 0.353553385 : f32
    %27 = vector.broadcast %cst_23 : f32 to vector<8x8xf32>
    %28 = arith.mulf %26, %27 : vector<8x8xf32>
    %29 = vector.broadcast %5 : vector<1x8xf32> to vector<8x8xf32>
    %30 = arith.addf %28, %29 : vector<8x8xf32>
    %cst_24 = arith.constant dense<0xFF800000> : vector<8xf32>
    %31 = vector.multi_reduction <maximumf>, %30, %cst_24 [1] : vector<8x8xf32> to vector<8xf32>
    %32 = vector.shape_cast %31 : vector<8xf32> to vector<8x1xf32>
    %33 = vector.broadcast %32 : vector<8x1xf32> to vector<8x8xf32>
    %34 = arith.subf %30, %33 : vector<8x8xf32>
    %35 = math.exp %34 : vector<8x8xf32>
    %cst_25 = arith.constant dense<0.000000e+00> : vector<8xf32>
    %36 = vector.multi_reduction <add>, %35, %cst_25 [1] : vector<8x8xf32> to vector<8xf32>
    %37 = vector.shape_cast %36 : vector<8xf32> to vector<8x1xf32>
    %38 = tpu.reciprocal %37 {approx = true} : vector<8x1xf32> -> vector<8x1xf32>
    %39 = vector.broadcast %38 : vector<8x1xf32> to vector<8x8xf32>
    %40 = arith.mulf %35, %39 : vector<8x8xf32>
    %41 = arith.truncf %40 : vector<8x8xf32> to vector<8x8xbf16>
    %42 = vector.extract_strided_slice %23 {offsets = [0, 0], sizes = [8, 8], strides = [1, 1]} : vector<8x32xbf16> to vector<8x8xbf16>
    %cst_26 = arith.constant dense<0.000000e+00> : vector<8x8xf32>
    %43 = tpu.matmul %41, %42, %cst_26 {dimension_numbers = #tpu.dot_dimension_numbers<[1], [0], [0], [1], [0, 0, 1, 1], [], []>} : vector<8x8xbf16>, vector<8x8xbf16>, vector<8x8xf32> -> vector<8x8xf32>
    %c0_27 = arith.constant 0 : index
    %c0_28 = arith.constant 0 : index
    %44 = vector.load %arg22[%c0_27, %c0_28] : memref<8x32xf32, #tpu.memory_space<vmem>>, vector<8x8xf32>
    tpu.vector_store %arg22[%c0_27, %c0_28], %43 {strides = array<i32>} : memref<8x32xf32, #tpu.memory_space<vmem>>, vector<8x8xf32>,
    %45 = vector.extract_strided_slice %11 {offsets = [0, 8], sizes = [8, 8], strides = [1, 1]} : vector<8x32xbf16> to vector<8x8xbf16>
    %46 = vector.extract_strided_slice %17 {offsets = [0, 8], sizes = [8, 8], strides = [1, 1]} : vector<8x32xbf16> to vector<8x8xbf16>
    %cst_29 = arith.constant dense<0.000000e+00> : vector<8x8xf32>
    %47 = tpu.matmul %45, %46, %cst_29 {dimension_numbers = #tpu.dot_dimension_numbers<[1], [1], [0], [0], [0, 0, 1, 0], [], []>} : vector<8x8xbf16>, vector<8x8xbf16>, vector<8x8xf32> -> vector<8x8xf32>
    %cst_30 = arith.constant 0.353553385 : f32
    %48 = vector.broadcast %cst_30 : f32 to vector<8x8xf32>
    %49 = arith.mulf %47, %48 : vector<8x8xf32>
    %50 = vector.broadcast %5 : vector<1x8xf32> to vector<8x8xf32>
    %51 = arith.addf %49, %50 : vector<8x8xf32>
    %cst_31 = arith.constant dense<0xFF800000> : vector<8xf32>
    %52 = vector.multi_reduction <maximumf>, %51, %cst_31 [1] : vector<8x8xf32> to vector<8xf32>
    %53 = vector.shape_cast %52 : vector<8xf32> to vector<8x1xf32>
    %54 = vector.broadcast %53 : vector<8x1xf32> to vector<8x8xf32>
    %55 = arith.subf %51, %54 : vector<8x8xf32>
    %56 = math.exp %55 : vector<8x8xf32>
    %cst_32 = arith.constant dense<0.000000e+00> : vector<8xf32>
    %57 = vector.multi_reduction <add>, %56, %cst_32 [1] : vector<8x8xf32> to vector<8xf32>
    %58 = vector.shape_cast %57 : vector<8xf32> to vector<8x1xf32>
    %59 = tpu.reciprocal %58 {approx = true} : vector<8x1xf32> -> vector<8x1xf32>
    %60 = vector.broadcast %59 : vector<8x1xf32> to vector<8x8xf32>
    %61 = arith.mulf %56, %60 : vector<8x8xf32>
    %62 = arith.truncf %61 : vector<8x8xf32> to vector<8x8xbf16>
    %63 = vector.extract_strided_slice %23 {offsets = [0, 8], sizes = [8, 8], strides = [1, 1]} : vector<8x32xbf16> to vector<8x8xbf16>
    %cst_33 = arith.constant dense<0.000000e+00> : vector<8x8xf32>
    %64 = tpu.matmul %62, %63, %cst_33 {dimension_numbers = #tpu.dot_dimension_numbers<[1], [0], [0], [1], [0, 0, 1, 1], [], []>} : vector<8x8xbf16>, vector<8x8xbf16>, vector<8x8xf32> -> vector<8x8xf32>
    %c0_34 = arith.constant 0 : index
    %c8 = arith.constant 8 : index
    %65 = vector.load %arg22[%c0_34, %c8] : memref<8x32xf32, #tpu.memory_space<vmem>>, vector<8x8xf32>
    tpu.vector_store %arg22[%c0_34, %c8], %64 {strides = array<i32>} : memref<8x32xf32, #tpu.memory_space<vmem>>, vector<8x8xf32>,
    %66 = vector.extract_strided_slice %11 {offsets = [0, 16], sizes = [8, 8], strides = [1, 1]} : vector<8x32xbf16> to vector<8x8xbf16>
    %67 = vector.extract_strided_slice %17 {offsets = [0, 16], sizes = [8, 8], strides = [1, 1]} : vector<8x32xbf16> to vector<8x8xbf16>
    %cst_35 = arith.constant dense<0.000000e+00> : vector<8x8xf32>
    %68 = tpu.matmul %66, %67, %cst_35 {dimension_numbers = #tpu.dot_dimension_numbers<[1], [1], [0], [0], [0, 0, 1, 0], [], []>} : vector<8x8xbf16>, vector<8x8xbf16>, vector<8x8xf32> -> vector<8x8xf32>
    %cst_36 = arith.constant 0.353553385 : f32
    %69 = vector.broadcast %cst_36 : f32 to vector<8x8xf32>
    %70 = arith.mulf %68, %69 : vector<8x8xf32>
    %71 = vector.broadcast %5 : vector<1x8xf32> to vector<8x8xf32>
    %72 = arith.addf %70, %71 : vector<8x8xf32>
    %cst_37 = arith.constant dense<0xFF800000> : vector<8xf32>
    %73 = vector.multi_reduction <maximumf>, %72, %cst_37 [1] : vector<8x8xf32> to vector<8xf32>
    %74 = vector.shape_cast %73 : vector<8xf32> to vector<8x1xf32>
    %75 = vector.broadcast %74 : vector<8x1xf32> to vector<8x8xf32>
    %76 = arith.subf %72, %75 : vector<8x8xf32>
    %77 = math.exp %76 : vector<8x8xf32>
    %cst_38 = arith.constant dense<0.000000e+00> : vector<8xf32>
    %78 = vector.multi_reduction <add>, %77, %cst_38 [1] : vector<8x8xf32> to vector<8xf32>
    %79 = vector.shape_cast %78 : vector<8xf32> to vector<8x1xf32>
    %80 = tpu.reciprocal %79 {approx = true} : vector<8x1xf32> -> vector<8x1xf32>
    %81 = vector.broadcast %80 : vector<8x1xf32> to vector<8x8xf32>
    %82 = arith.mulf %77, %81 : vector<8x8xf32>
    %83 = arith.truncf %82 : vector<8x8xf32> to vector<8x8xbf16>
    %84 = vector.extract_strided_slice %23 {offsets = [0, 16], sizes = [8, 8], strides = [1, 1]} : vector<8x32xbf16> to vector<8x8xbf16>
    %cst_39 = arith.constant dense<0.000000e+00> : vector<8x8xf32>
    %85 = tpu.matmul %83, %84, %cst_39 {dimension_numbers = #tpu.dot_dimension_numbers<[1], [0], [0], [1], [0, 0, 1, 1], [], []>} : vector<8x8xbf16>, vector<8x8xbf16>, vector<8x8xf32> -> vector<8x8xf32>
    %c0_40 = arith.constant 0 : index
    %c16 = arith.constant 16 : index
    %86 = vector.load %arg22[%c0_40, %c16] : memref<8x32xf32, #tpu.memory_space<vmem>>, vector<8x8xf32>
    tpu.vector_store %arg22[%c0_40, %c16], %85 {strides = array<i32>} : memref<8x32xf32, #tpu.memory_space<vmem>>, vector<8x8xf32>,
    %87 = vector.extract_strided_slice %11 {offsets = [0, 24], sizes = [8, 8], strides = [1, 1]} : vector<8x32xbf16> to vector<8x8xbf16>
    %88 = vector.extract_strided_slice %17 {offsets = [0, 24], sizes = [8, 8], strides = [1, 1]} : vector<8x32xbf16> to vector<8x8xbf16>
    %cst_41 = arith.constant dense<0.000000e+00> : vector<8x8xf32>
    %89 = tpu.matmul %87, %88, %cst_41 {dimension_numbers = #tpu.dot_dimension_numbers<[1], [1], [0], [0], [0, 0, 1, 0], [], []>} : vector<8x8xbf16>, vector<8x8xbf16>, vector<8x8xf32> -> vector<8x8xf32>
    %cst_42 = arith.constant 0.353553385 : f32
    %90 = vector.broadcast %cst_42 : f32 to vector<8x8xf32>
    %91 = arith.mulf %89, %90 : vector<8x8xf32>
    %92 = vector.broadcast %5 : vector<1x8xf32> to vector<8x8xf32>
    %93 = arith.addf %91, %92 : vector<8x8xf32>
    %cst_43 = arith.constant dense<0xFF800000> : vector<8xf32>
    %94 = vector.multi_reduction <maximumf>, %93, %cst_43 [1] : vector<8x8xf32> to vector<8xf32>
    %95 = vector.shape_cast %94 : vector<8xf32> to vector<8x1xf32>
    %96 = vector.broadcast %95 : vector<8x1xf32> to vector<8x8xf32>
    %97 = arith.subf %93, %96 : vector<8x8xf32>
    %98 = math.exp %97 : vector<8x8xf32>
    %cst_44 = arith.constant dense<0.000000e+00> : vector<8xf32>
    %99 = vector.multi_reduction <add>, %98, %cst_44 [1] : vector<8x8xf32> to vector<8xf32>
    %100 = vector.shape_cast %99 : vector<8xf32> to vector<8x1xf32>
    %101 = tpu.reciprocal %100 {approx = true} : vector<8x1xf32> -> vector<8x1xf32>
    %102 = vector.broadcast %101 : vector<8x1xf32> to vector<8x8xf32>
    %103 = arith.mulf %98, %102 : vector<8x8xf32>
    %104 = arith.truncf %103 : vector<8x8xf32> to vector<8x8xbf16>
    %105 = vector.extract_strided_slice %23 {offsets = [0, 24], sizes = [8, 8], strides = [1, 1]} : vector<8x32xbf16> to vector<8x8xbf16>
    %cst_45 = arith.constant dense<0.000000e+00> : vector<8x8xf32>
    %106 = tpu.matmul %104, %105, %cst_45 {dimension_numbers = #tpu.dot_dimension_numbers<[1], [0], [0], [1], [0, 0, 1, 1], [], []>} : vector<8x8xbf16>, vector<8x8xbf16>, vector<8x8xf32> -> vector<8x8xf32>
    %c0_46 = arith.constant 0 : index
    %c24 = arith.constant 24 : index
    %107 = vector.load %arg22[%c0_46, %c24] : memref<8x32xf32, #tpu.memory_space<vmem>>, vector<8x8xf32>
    tpu.vector_store %arg22[%c0_46, %c24], %106 {strides = array<i32>} : memref<8x32xf32, #tpu.memory_space<vmem>>, vector<8x8xf32>,
    %c0_47 = arith.constant 0 : index
    %c0_48 = arith.constant 0 : index
    %108 = vector.load %arg22[%c0_47, %c0_48] : memref<8x32xf32, #tpu.memory_space<vmem>>, vector<8x32xf32>
    %c0_49 = arith.constant 0 : index
    %c0_50 = arith.constant 0 : index
    %109 = vector.load %arg11[%c0_49, %c0_50] : memref<32x32xbf16, #tpu.memory_space<vmem>>, vector<32x32xbf16>
    %110 = arith.truncf %108 : vector<8x32xf32> to vector<8x32xbf16>
    %cst_51 = arith.constant dense<0.000000e+00> : vector<8x32xf32>
    %111 = tpu.matmul %110, %109, %cst_51 {dimension_numbers = #tpu.dot_dimension_numbers<[1], [0], [0], [1], [0, 0, 1, 1], [], []>} : vector<8x32xbf16>, vector<32x32xbf16>, vector<8x32xf32> -> vector<8x32xf32>
    %c0_52 = arith.constant 0 : index
    %c0_53 = arith.constant 0 : index
    %112 = vector.load %arg12[%c0_52, %c0_53] : memref<1x32xf32, #tpu.memory_space<vmem>>, vector<1x32xf32>
    %113 = vector.broadcast %112 : vector<1x32xf32> to vector<8x32xf32>
    %114 = arith.addf %111, %113 : vector<8x32xf32>
    %115 = arith.extf %1 : vector<8x32xbf16> to vector<8x32xf32>
    %116 = arith.addf %115, %114 : vector<8x32xf32>
    %c0_54 = arith.constant 0 : index
    %c0_55 = arith.constant 0 : index
    %117 = vector.load %arg13[%c0_54, %c0_55] : memref<1x32xf32, #tpu.memory_space<vmem>>, vector<1x32xf32>
    %c0_56 = arith.constant 0 : index
    %c0_57 = arith.constant 0 : index
    %118 = vector.load %arg14[%c0_56, %c0_57] : memref<1x32xf32, #tpu.memory_space<vmem>>, vector<1x32xf32>
    %cst_58 = arith.constant dense<0.000000e+00> : vector<8xf32>
    %119 = vector.multi_reduction <add>, %116, %cst_58 [1] : vector<8x32xf32> to vector<8xf32>
    %120 = vector.shape_cast %119 : vector<8xf32> to vector<8x1xf32>
    %cst_59 = arith.constant 3.200000e+01 : f32
    %121 = vector.broadcast %cst_59 : f32 to vector<8x1xf32>
    %122 = arith.divf %120, %121 : vector<8x1xf32>
    %123 = vector.broadcast %122 : vector<8x1xf32> to vector<8x32xf32>
    %124 = arith.subf %116, %123 : vector<8x32xf32>
    %125 = arith.mulf %124, %124 : vector<8x32xf32>
    %cst_60 = arith.constant dense<0.000000e+00> : vector<8xf32>
    %126 = vector.multi_reduction <add>, %125, %cst_60 [1] : vector<8x32xf32> to vector<8xf32>
    %127 = vector.shape_cast %126 : vector<8xf32> to vector<8x1xf32>
    %cst_61 = arith.constant 3.200000e+01 : f32
    %128 = vector.broadcast %cst_61 : f32 to vector<8x1xf32>
    %129 = arith.divf %127, %128 : vector<8x1xf32>
    %cst_62 = arith.constant 9.99999974E-6 : f32
    %130 = vector.broadcast %cst_62 : f32 to vector<8x1xf32>
    %131 = arith.addf %129, %130 : vector<8x1xf32>
    %132 = math.rsqrt %131 : vector<8x1xf32>
    %133 = vector.broadcast %132 : vector<8x1xf32> to vector<8x32xf32>
    %134 = arith.mulf %124, %133 : vector<8x32xf32>
    %135 = vector.broadcast %117 : vector<1x32xf32> to vector<8x32xf32>
    %136 = arith.mulf %134, %135 : vector<8x32xf32>
    %137 = vector.broadcast %118 : vector<1x32xf32> to vector<8x32xf32>
    %138 = arith.addf %136, %137 : vector<8x32xf32>
    %c0_63 = arith.constant 0 : index
    %c0_64 = arith.constant 0 : index
    %139 = vector.load %arg15[%c0_63, %c0_64] : memref<32x64xbf16, #tpu.memory_space<vmem>>, vector<32x64xbf16>
    %140 = arith.truncf %138 : vector<8x32xf32> to vector<8x32xbf16>
    %cst_65 = arith.constant dense<0.000000e+00> : vector<8x64xf32>
    %141 = tpu.matmul %140, %139, %cst_65 {dimension_numbers = #tpu.dot_dimension_numbers<[1], [0], [0], [1], [0, 0, 1, 1], [], []>} : vector<8x32xbf16>, vector<32x64xbf16>, vector<8x64xf32> -> vector<8x64xf32>
    %c0_66 = arith.constant 0 : index
    %c0_67 = arith.constant 0 : index
    %142 = vector.load %arg16[%c0_66, %c0_67] : memref<1x64xf32, #tpu.memory_space<vmem>>, vector<1x64xf32>
    %143 = vector.broadcast %142 : vector<1x64xf32> to vector<8x64xf32>
    %144 = arith.addf %141, %143 : vector<8x64xf32>
    %cst_68 = arith.constant 0.000000e+00 : f32
    %145 = vector.broadcast %cst_68 : f32 to vector<8x64xf32>
    %146 = arith.maximumf %144, %145 : vector<8x64xf32>
    %c0_69 = arith.constant 0 : index
    %c0_70 = arith.constant 0 : index
    %147 = vector.load %arg17[%c0_69, %c0_70] : memref<64x32xbf16, #tpu.memory_space<vmem>>, vector<64x32xbf16>
    %148 = arith.truncf %146 : vector<8x64xf32> to vector<8x64xbf16>
    %cst_71 = arith.constant dense<0.000000e+00> : vector<8x32xf32>
    %149 = tpu.matmul %148, %147, %cst_71 {dimension_numbers = #tpu.dot_dimension_numbers<[1], [0], [0], [1], [0, 0, 1, 1], [], []>} : vector<8x64xbf16>, vector<64x32xbf16>, vector<8x32xf32> -> vector<8x32xf32>
    %c0_72 = arith.constant 0 : index
    %c0_73 = arith.constant 0 : index
    %150 = vector.load %arg18[%c0_72, %c0_73] : memref<1x32xf32, #tpu.memory_space<vmem>>, vector<1x32xf32>
    %151 = vector.broadcast %150 : vector<1x32xf32> to vector<8x32xf32>
    %152 = arith.addf %149, %151 : vector<8x32xf32>
    %153 = arith.addf %138, %152 : vector<8x32xf32>
    %c0_74 = arith.constant 0 : index
    %c0_75 = arith.constant 0 : index
    %154 = vector.load %arg19[%c0_74, %c0_75] : memref<1x32xf32, #tpu.memory_space<vmem>>, vector<1x32xf32>
    %c0_76 = arith.constant 0 : index
    %c0_77 = arith.constant 0 : index
    %155 = vector.load %arg20[%c0_76, %c0_77] : memref<1x32xf32, #tpu.memory_space<vmem>>, vector<1x32xf32>
    %cst_78 = arith.constant dense<0.000000e+00> : vector<8xf32>
    %156 = vector.multi_reduction <add>, %153, %cst_78 [1] : vector<8x32xf32> to vector<8xf32>
    %157 = vector.shape_cast %156 : vector<8xf32> to vector<8x1xf32>
    %cst_79 = arith.constant 3.200000e+01 : f32
    %158 = vector.broadcast %cst_79 : f32 to vector<8x1xf32>
    %159 = arith.divf %157, %158 : vector<8x1xf32>
    %160 = vector.broadcast %159 : vector<8x1xf32> to vector<8x32xf32>
    %161 = arith.subf %153, %160 : vector<8x32xf32>
    %162 = arith.mulf %161, %161 : vector<8x32xf32>
    %cst_80 = arith.constant dense<0.000000e+00> : vector<8xf32>
    %163 = vector.multi_reduction <add>, %162, %cst_80 [1] : vector<8x32xf32> to vector<8xf32>
    %164 = vector.shape_cast %163 : vector<8xf32> to vector<8x1xf32>
    %cst_81 = arith.constant 3.200000e+01 : f32
    %165 = vector.broadcast %cst_81 : f32 to vector<8x1xf32>
    %166 = arith.divf %164, %165 : vector<8x1xf32>
    %cst_82 = arith.constant 9.99999974E-6 : f32
    %167 = vector.broadcast %cst_82 : f32 to vector<8x1xf32>
    %168 = arith.addf %166, %167 : vector<8x1xf32>
    %169 = math.rsqrt %168 : vector<8x1xf32>
    %170 = vector.broadcast %169 : vector<8x1xf32> to vector<8x32xf32>
    %171 = arith.mulf %161, %170 : vector<8x32xf32>
    %172 = vector.broadcast %154 : vector<1x32xf32> to vector<8x32xf32>
    %173 = arith.mulf %171, %172 : vector<8x32xf32>
    %174 = vector.broadcast %155 : vector<1x32xf32> to vector<8x32xf32>
    %175 = arith.addf %173, %174 : vector<8x32xf32>
    %176 = arith.truncf %175 : vector<8x32xf32> to vector<8x32xbf16>
    %c0_83 = arith.constant 0 : index
    %c0_84 = arith.constant 0 : index
    %c0_85 = arith.constant 0 : index
    %177 = vector.load %arg21[%c0_83, %c0_84, %c0_85] : memref<1x8x32xbf16, #tpu.memory_space<vmem>>, vector<1x8x32xbf16>
    %178 = vector.shape_cast %177 : vector<1x8x32xbf16> to vector<8x32xbf16>
    %179 = vector.shape_cast %176 : vector<8x32xbf16> to vector<1x8x32xbf16>
    tpu.vector_store %arg21[%c0_83, %c0_84, %c0_85], %179 {strides = array<i32>} : memref<1x8x32xbf16, #tpu.memory_space<vmem>>, vector<1x8x32xbf16>,
    return
  }
  func.func @transform_0(%arg0: i32, %arg1: i32) -> (i32, i32, i32) {
    %c0_i32 = arith.constant 0 : i32
    %c0_i32_0 = arith.constant 0 : i32
    %c0_i32_1 = arith.constant 0 : i32
    return %arg0, %c0_i32, %c0_i32_0 : i32, i32, i32
  }
  func.func @transform_1(%arg0: i32, %arg1: i32) -> (i32, i32, i32) {
    %c0_i32 = arith.constant 0 : i32
    %c0_i32_0 = arith.constant 0 : i32
    return %arg0, %arg1, %c0_i32 : i32, i32, i32
  }
  func.func @transform_2(%arg0: i32, %arg1: i32) -> (i32, i32, i32) {
    %c0_i32 = arith.constant 0 : i32
    %c0_i32_0 = arith.constant 0 : i32
    %c0_i32_1 = arith.constant 0 : i32
    return %arg0, %c0_i32, %c0_i32_0 : i32, i32, i32
  }
  func.func @transform_3(%arg0: i32, %arg1: i32) -> (i32, i32) {
    %c0_i32 = arith.constant 0 : i32
    %c0_i32_0 = arith.constant 0 : i32
    %c0_i32_1 = arith.constant 0 : i32
    return %c0_i32, %c0_i32_0 : i32, i32
  }
  func.func @transform_4(%arg0: i32, %arg1: i32) -> (i32, i32) {
    %c0_i32 = arith.constant 0 : i32
    %c0_i32_0 = arith.constant 0 : i32
    %c0_i32_1 = arith.constant 0 : i32
    return %c0_i32, %c0_i32_0 : i32, i32
  }
  func.func @transform_5(%arg0: i32, %arg1: i32) -> (i32, i32) {
    %c0_i32 = arith.constant 0 : i32
    %c0_i32_0 = arith.constant 0 : i32
    %c0_i32_1 = arith.constant 0 : i32
    return %c0_i32, %c0_i32_0 : i32, i32
  }
  func.func @transform_6(%arg0: i32, %arg1: i32) -> (i32, i32) {
    %c0_i32 = arith.constant 0 : i32
    %c0_i32_0 = arith.constant 0 : i32
    %c0_i32_1 = arith.constant 0 : i32
    return %c0_i32, %c0_i32_0 : i32, i32
  }
  func.func @transform_7(%arg0: i32, %arg1: i32) -> (i32, i32) {
    %c0_i32 = arith.constant 0 : i32
    %c0_i32_0 = arith.constant 0 : i32
    %c0_i32_1 = arith.constant 0 : i32
    return %c0_i32, %c0_i32_0 : i32, i32
  }
  func.func @transform_8(%arg0: i32, %arg1: i32) -> (i32, i32) {
    %c0_i32 = arith.constant 0 : i32
    %c0_i32_0 = arith.constant 0 : i32
    %c0_i32_1 = arith.constant 0 : i32
    return %c0_i32, %c0_i32_0 : i32, i32
  }
  func.func @transform_9(%arg0: i32, %arg1: i32) -> (i32, i32) {
    %c0_i32 = arith.constant 0 : i32
    %c0_i32_0 = arith.constant 0 : i32
    %c0_i32_1 = arith.constant 0 : i32
    return %c0_i32, %c0_i32_0 : i32, i32
  }
  func.func @transform_10(%arg0: i32, %arg1: i32) -> (i32, i32) {
    %c0_i32 = arith.constant 0 : i32
    %c0_i32_0 = arith.constant 0 : i32
    %c0_i32_1 = arith.constant 0 : i32
    return %c0_i32, %c0_i32_0 : i32, i32
  }
  func.func @transform_11(%arg0: i32, %arg1: i32) -> (i32, i32) {
    %c0_i32 = arith.constant 0 : i32
    %c0_i32_0 = arith.constant 0 : i32
    %c0_i32_1 = arith.constant 0 : i32
    return %c0_i32, %c0_i32_0 : i32, i32
  }
  func.func @transform_12(%arg0: i32, %arg1: i32) -> (i32, i32) {
    %c0_i32 = arith.constant 0 : i32
    %c0_i32_0 = arith.constant 0 : i32
    %c0_i32_1 = arith.constant 0 : i32
    return %c0_i32, %c0_i32_0 : i32, i32
  }
  func.func @transform_13(%arg0: i32, %arg1: i32) -> (i32, i32) {
    %c0_i32 = arith.constant 0 : i32
    %c0_i32_0 = arith.constant 0 : i32
    %c0_i32_1 = arith.constant 0 : i32
    return %c0_i32, %c0_i32_0 : i32, i32
  }
  func.func @transform_14(%arg0: i32, %arg1: i32) -> (i32, i32) {
    %c0_i32 = arith.constant 0 : i32
    %c0_i32_0 = arith.constant 0 : i32
    %c0_i32_1 = arith.constant 0 : i32
    return %c0_i32, %c0_i32_0 : i32, i32
  }
  func.func @transform_15(%arg0: i32, %arg1: i32) -> (i32, i32) {
    %c0_i32 = arith.constant 0 : i32
    %c0_i32_0 = arith.constant 0 : i32
    %c0_i32_1 = arith.constant 0 : i32
    return %c0_i32, %c0_i32_0 : i32, i32
  }
  func.func @transform_16(%arg0: i32, %arg1: i32) -> (i32, i32) {
    %c0_i32 = arith.constant 0 : i32
    %c0_i32_0 = arith.constant 0 : i32
    %c0_i32_1 = arith.constant 0 : i32
    return %c0_i32, %c0_i32_0 : i32, i32
  }
  func.func @transform_17(%arg0: i32, %arg1: i32) -> (i32, i32) {
    %c0_i32 = arith.constant 0 : i32
    %c0_i32_0 = arith.constant 0 : i32
    %c0_i32_1 = arith.constant 0 : i32
    return %c0_i32, %c0_i32_0 : i32, i32
  }
  func.func @transform_18(%arg0: i32, %arg1: i32) -> (i32, i32) {
    %c0_i32 = arith.constant 0 : i32
    %c0_i32_0 = arith.constant 0 : i32
    %c0_i32_1 = arith.constant 0 : i32
    return %c0_i32, %c0_i32_0 : i32, i32
  }
  func.func @transform_19(%arg0: i32, %arg1: i32) -> (i32, i32, i32) {
    %c0_i32 = arith.constant 0 : i32
    %c0_i32_0 = arith.constant 0 : i32
    return %arg0, %arg1, %c0_i32 : i32, i32, i32
  }
}

module attributes {stable_mosaic.version = 11 : i64} {
  func.func @_last_layer_kernel(%arg0: i32, %arg1: memref<1x8x32xbf16, #tpu.memory_space<vmem>>, %arg2: memref<1x1x8xf32, #tpu.memory_space<vmem>>, %arg3: memref<32x32xbf16, #tpu.memory_space<vmem>>, %arg4: memref<32x32xbf16, #tpu.memory_space<vmem>>, %arg5: memref<32x32xbf16, #tpu.memory_space<vmem>>, %arg6: memref<1x32xf32, #tpu.memory_space<vmem>>, %arg7: memref<1x32xf32, #tpu.memory_space<vmem>>, %arg8: memref<1x32xf32, #tpu.memory_space<vmem>>, %arg9: memref<32x32xbf16, #tpu.memory_space<vmem>>, %arg10: memref<1x32xf32, #tpu.memory_space<vmem>>, %arg11: memref<1x32xf32, #tpu.memory_space<vmem>>, %arg12: memref<1x32xf32, #tpu.memory_space<vmem>>, %arg13: memref<32x64xbf16, #tpu.memory_space<vmem>>, %arg14: memref<1x64xf32, #tpu.memory_space<vmem>>, %arg15: memref<64x32xbf16, #tpu.memory_space<vmem>>, %arg16: memref<1x32xf32, #tpu.memory_space<vmem>>, %arg17: memref<1x32xf32, #tpu.memory_space<vmem>>, %arg18: memref<1x32xf32, #tpu.memory_space<vmem>>, %arg19: memref<32x16xbf16, #tpu.memory_space<vmem>>, %arg20: memref<1x16xf32, #tpu.memory_space<vmem>>, %arg21: memref<1x1x16xf32, #tpu.memory_space<vmem>>, %arg22: memref<8x32xf32, #tpu.memory_space<vmem>>) attributes {dimension_semantics = [#tpu.dimension_semantics<parallel>], iteration_bounds = array<i64: 2>, scalar_prefetch = 0 : i64, scratch_operands = 1 : i64, tpu.core_type = #tpu.core_type<tc>, window_params = [{transform_indices = @transform_0, window_bounds = array<i64: 1, 8, 32>}, {transform_indices = @transform_1, window_bounds = array<i64: 1, 1, 8>}, {pipeline_mode = #tpu.pipeline_mode<synchronous>, transform_indices = @transform_2, window_bounds = array<i64: 32, 32>}, {pipeline_mode = #tpu.pipeline_mode<synchronous>, transform_indices = @transform_3, window_bounds = array<i64: 32, 32>}, {pipeline_mode = #tpu.pipeline_mode<synchronous>, transform_indices = @transform_4, window_bounds = array<i64: 32, 32>}, {pipeline_mode = #tpu.pipeline_mode<synchronous>, transform_indices = @transform_5, window_bounds = array<i64: 1, 32>}, {pipeline_mode = #tpu.pipeline_mode<synchronous>, transform_indices = @transform_6, window_bounds = array<i64: 1, 32>}, {pipeline_mode = #tpu.pipeline_mode<synchronous>, transform_indices = @transform_7, window_bounds = array<i64: 1, 32>}, {pipeline_mode = #tpu.pipeline_mode<synchronous>, transform_indices = @transform_8, window_bounds = array<i64: 32, 32>}, {pipeline_mode = #tpu.pipeline_mode<synchronous>, transform_indices = @transform_9, window_bounds = array<i64: 1, 32>}, {pipeline_mode = #tpu.pipeline_mode<synchronous>, transform_indices = @transform_10, window_bounds = array<i64: 1, 32>}, {pipeline_mode = #tpu.pipeline_mode<synchronous>, transform_indices = @transform_11, window_bounds = array<i64: 1, 32>}, {pipeline_mode = #tpu.pipeline_mode<synchronous>, transform_indices = @transform_12, window_bounds = array<i64: 32, 64>}, {pipeline_mode = #tpu.pipeline_mode<synchronous>, transform_indices = @transform_13, window_bounds = array<i64: 1, 64>}, {pipeline_mode = #tpu.pipeline_mode<synchronous>, transform_indices = @transform_14, window_bounds = array<i64: 64, 32>}, {pipeline_mode = #tpu.pipeline_mode<synchronous>, transform_indices = @transform_15, window_bounds = array<i64: 1, 32>}, {pipeline_mode = #tpu.pipeline_mode<synchronous>, transform_indices = @transform_16, window_bounds = array<i64: 1, 32>}, {pipeline_mode = #tpu.pipeline_mode<synchronous>, transform_indices = @transform_17, window_bounds = array<i64: 1, 32>}, {pipeline_mode = #tpu.pipeline_mode<synchronous>, transform_indices = @transform_18, window_bounds = array<i64: 32, 16>}, {pipeline_mode = #tpu.pipeline_mode<synchronous>, transform_indices = @transform_19, window_bounds = array<i64: 1, 16>}, {transform_indices = @transform_20, window_bounds = array<i64: 1, 1, 16>}]} {
    %c0 = arith.constant 0 : index
    %c0_0 = arith.constant 0 : index
    %c0_1 = arith.constant 0 : index
    %0 = vector.load %arg1[%c0, %c0_0, %c0_1] : memref<1x8x32xbf16, #tpu.memory_space<vmem>>, vector<1x8x32xbf16>
    %1 = vector.shape_cast %0 : vector<1x8x32xbf16> to vector<8x32xbf16>
    %c0_2 = arith.constant 0 : index
    %c0_3 = arith.constant 0 : index
    %c0_4 = arith.constant 0 : index
    %2 = vector.load %arg2[%c0_2, %c0_3, %c0_4] : memref<1x1x8xf32, #tpu.memory_space<vmem>>, vector<1x1x8xf32>
    %3 = vector.shape_cast %2 : vector<1x1x8xf32> to vector<1x8xf32>
    %c0_5 = arith.constant 0 : index
    %c0_6 = arith.constant 0 : index
    %4 = vector.load %arg3[%c0_5, %c0_6] : memref<32x32xbf16, #tpu.memory_space<vmem>>, vector<32x32xbf16>
    %cst = arith.constant dense<0.000000e+00> : vector<8x32xf32>
    %5 = tpu.matmul %1, %4, %cst {dimension_numbers = #tpu.dot_dimension_numbers<[1], [0], [0], [1], [0, 0, 1, 1], [], []>} : vector<8x32xbf16>, vector<32x32xbf16>, vector<8x32xf32> -> vector<8x32xf32>
    %c0_7 = arith.constant 0 : index
    %c0_8 = arith.constant 0 : index
    %6 = vector.load %arg6[%c0_7, %c0_8] : memref<1x32xf32, #tpu.memory_space<vmem>>, vector<1x32xf32>
    %7 = vector.broadcast %6 : vector<1x32xf32> to vector<8x32xf32>
    %8 = arith.addf %5, %7 : vector<8x32xf32>
    %9 = arith.truncf %8 : vector<8x32xf32> to vector<8x32xbf16>
    %c0_9 = arith.constant 0 : index
    %c0_10 = arith.constant 0 : index
    %10 = vector.load %arg4[%c0_9, %c0_10] : memref<32x32xbf16, #tpu.memory_space<vmem>>, vector<32x32xbf16>
    %cst_11 = arith.constant dense<0.000000e+00> : vector<8x32xf32>
    %11 = tpu.matmul %1, %10, %cst_11 {dimension_numbers = #tpu.dot_dimension_numbers<[1], [0], [0], [1], [0, 0, 1, 1], [], []>} : vector<8x32xbf16>, vector<32x32xbf16>, vector<8x32xf32> -> vector<8x32xf32>
    %c0_12 = arith.constant 0 : index
    %c0_13 = arith.constant 0 : index
    %12 = vector.load %arg7[%c0_12, %c0_13] : memref<1x32xf32, #tpu.memory_space<vmem>>, vector<1x32xf32>
    %13 = vector.broadcast %12 : vector<1x32xf32> to vector<8x32xf32>
    %14 = arith.addf %11, %13 : vector<8x32xf32>
    %15 = arith.truncf %14 : vector<8x32xf32> to vector<8x32xbf16>
    %c0_14 = arith.constant 0 : index
    %c0_15 = arith.constant 0 : index
    %16 = vector.load %arg5[%c0_14, %c0_15] : memref<32x32xbf16, #tpu.memory_space<vmem>>, vector<32x32xbf16>
    %cst_16 = arith.constant dense<0.000000e+00> : vector<8x32xf32>
    %17 = tpu.matmul %1, %16, %cst_16 {dimension_numbers = #tpu.dot_dimension_numbers<[1], [0], [0], [1], [0, 0, 1, 1], [], []>} : vector<8x32xbf16>, vector<32x32xbf16>, vector<8x32xf32> -> vector<8x32xf32>
    %c0_17 = arith.constant 0 : index
    %c0_18 = arith.constant 0 : index
    %18 = vector.load %arg8[%c0_17, %c0_18] : memref<1x32xf32, #tpu.memory_space<vmem>>, vector<1x32xf32>
    %19 = vector.broadcast %18 : vector<1x32xf32> to vector<8x32xf32>
    %20 = arith.addf %17, %19 : vector<8x32xf32>
    %21 = arith.truncf %20 : vector<8x32xf32> to vector<8x32xbf16>
    %22 = vector.extract_strided_slice %9 {offsets = [0, 0], sizes = [8, 8], strides = [1, 1]} : vector<8x32xbf16> to vector<8x8xbf16>
    %23 = vector.extract_strided_slice %15 {offsets = [0, 0], sizes = [8, 8], strides = [1, 1]} : vector<8x32xbf16> to vector<8x8xbf16>
    %cst_19 = arith.constant dense<0.000000e+00> : vector<8x8xf32>
    %24 = tpu.matmul %22, %23, %cst_19 {dimension_numbers = #tpu.dot_dimension_numbers<[1], [1], [0], [0], [0, 0, 1, 0], [], []>} : vector<8x8xbf16>, vector<8x8xbf16>, vector<8x8xf32> -> vector<8x8xf32>
    %cst_20 = arith.constant 0.353553385 : f32
    %25 = vector.broadcast %cst_20 : f32 to vector<8x8xf32>
    %26 = arith.mulf %24, %25 : vector<8x8xf32>
    %27 = vector.broadcast %3 : vector<1x8xf32> to vector<8x8xf32>
    %28 = arith.addf %26, %27 : vector<8x8xf32>
    %cst_21 = arith.constant dense<0xFF800000> : vector<8xf32>
    %29 = vector.multi_reduction <maximumf>, %28, %cst_21 [1] : vector<8x8xf32> to vector<8xf32>
    %30 = vector.shape_cast %29 : vector<8xf32> to vector<8x1xf32>
    %31 = vector.broadcast %30 : vector<8x1xf32> to vector<8x8xf32>
    %32 = arith.subf %28, %31 : vector<8x8xf32>
    %33 = math.exp %32 : vector<8x8xf32>
    %cst_22 = arith.constant dense<0.000000e+00> : vector<8xf32>
    %34 = vector.multi_reduction <add>, %33, %cst_22 [1] : vector<8x8xf32> to vector<8xf32>
    %35 = vector.shape_cast %34 : vector<8xf32> to vector<8x1xf32>
    %36 = tpu.reciprocal %35 {approx = true} : vector<8x1xf32> -> vector<8x1xf32>
    %37 = vector.broadcast %36 : vector<8x1xf32> to vector<8x8xf32>
    %38 = arith.mulf %33, %37 : vector<8x8xf32>
    %39 = arith.truncf %38 : vector<8x8xf32> to vector<8x8xbf16>
    %40 = vector.extract_strided_slice %21 {offsets = [0, 0], sizes = [8, 8], strides = [1, 1]} : vector<8x32xbf16> to vector<8x8xbf16>
    %cst_23 = arith.constant dense<0.000000e+00> : vector<8x8xf32>
    %41 = tpu.matmul %39, %40, %cst_23 {dimension_numbers = #tpu.dot_dimension_numbers<[1], [0], [0], [1], [0, 0, 1, 1], [], []>} : vector<8x8xbf16>, vector<8x8xbf16>, vector<8x8xf32> -> vector<8x8xf32>
    %c0_24 = arith.constant 0 : index
    %c0_25 = arith.constant 0 : index
    %42 = vector.load %arg22[%c0_24, %c0_25] : memref<8x32xf32, #tpu.memory_space<vmem>>, vector<8x8xf32>
    tpu.vector_store %arg22[%c0_24, %c0_25], %41 {strides = array<i32>} : memref<8x32xf32, #tpu.memory_space<vmem>>, vector<8x8xf32>,
    %43 = vector.extract_strided_slice %9 {offsets = [0, 8], sizes = [8, 8], strides = [1, 1]} : vector<8x32xbf16> to vector<8x8xbf16>
    %44 = vector.extract_strided_slice %15 {offsets = [0, 8], sizes = [8, 8], strides = [1, 1]} : vector<8x32xbf16> to vector<8x8xbf16>
    %cst_26 = arith.constant dense<0.000000e+00> : vector<8x8xf32>
    %45 = tpu.matmul %43, %44, %cst_26 {dimension_numbers = #tpu.dot_dimension_numbers<[1], [1], [0], [0], [0, 0, 1, 0], [], []>} : vector<8x8xbf16>, vector<8x8xbf16>, vector<8x8xf32> -> vector<8x8xf32>
    %cst_27 = arith.constant 0.353553385 : f32
    %46 = vector.broadcast %cst_27 : f32 to vector<8x8xf32>
    %47 = arith.mulf %45, %46 : vector<8x8xf32>
    %48 = vector.broadcast %3 : vector<1x8xf32> to vector<8x8xf32>
    %49 = arith.addf %47, %48 : vector<8x8xf32>
    %cst_28 = arith.constant dense<0xFF800000> : vector<8xf32>
    %50 = vector.multi_reduction <maximumf>, %49, %cst_28 [1] : vector<8x8xf32> to vector<8xf32>
    %51 = vector.shape_cast %50 : vector<8xf32> to vector<8x1xf32>
    %52 = vector.broadcast %51 : vector<8x1xf32> to vector<8x8xf32>
    %53 = arith.subf %49, %52 : vector<8x8xf32>
    %54 = math.exp %53 : vector<8x8xf32>
    %cst_29 = arith.constant dense<0.000000e+00> : vector<8xf32>
    %55 = vector.multi_reduction <add>, %54, %cst_29 [1] : vector<8x8xf32> to vector<8xf32>
    %56 = vector.shape_cast %55 : vector<8xf32> to vector<8x1xf32>
    %57 = tpu.reciprocal %56 {approx = true} : vector<8x1xf32> -> vector<8x1xf32>
    %58 = vector.broadcast %57 : vector<8x1xf32> to vector<8x8xf32>
    %59 = arith.mulf %54, %58 : vector<8x8xf32>
    %60 = arith.truncf %59 : vector<8x8xf32> to vector<8x8xbf16>
    %61 = vector.extract_strided_slice %21 {offsets = [0, 8], sizes = [8, 8], strides = [1, 1]} : vector<8x32xbf16> to vector<8x8xbf16>
    %cst_30 = arith.constant dense<0.000000e+00> : vector<8x8xf32>
    %62 = tpu.matmul %60, %61, %cst_30 {dimension_numbers = #tpu.dot_dimension_numbers<[1], [0], [0], [1], [0, 0, 1, 1], [], []>} : vector<8x8xbf16>, vector<8x8xbf16>, vector<8x8xf32> -> vector<8x8xf32>
    %c0_31 = arith.constant 0 : index
    %c8 = arith.constant 8 : index
    %63 = vector.load %arg22[%c0_31, %c8] : memref<8x32xf32, #tpu.memory_space<vmem>>, vector<8x8xf32>
    tpu.vector_store %arg22[%c0_31, %c8], %62 {strides = array<i32>} : memref<8x32xf32, #tpu.memory_space<vmem>>, vector<8x8xf32>,
    %64 = vector.extract_strided_slice %9 {offsets = [0, 16], sizes = [8, 8], strides = [1, 1]} : vector<8x32xbf16> to vector<8x8xbf16>
    %65 = vector.extract_strided_slice %15 {offsets = [0, 16], sizes = [8, 8], strides = [1, 1]} : vector<8x32xbf16> to vector<8x8xbf16>
    %cst_32 = arith.constant dense<0.000000e+00> : vector<8x8xf32>
    %66 = tpu.matmul %64, %65, %cst_32 {dimension_numbers = #tpu.dot_dimension_numbers<[1], [1], [0], [0], [0, 0, 1, 0], [], []>} : vector<8x8xbf16>, vector<8x8xbf16>, vector<8x8xf32> -> vector<8x8xf32>
    %cst_33 = arith.constant 0.353553385 : f32
    %67 = vector.broadcast %cst_33 : f32 to vector<8x8xf32>
    %68 = arith.mulf %66, %67 : vector<8x8xf32>
    %69 = vector.broadcast %3 : vector<1x8xf32> to vector<8x8xf32>
    %70 = arith.addf %68, %69 : vector<8x8xf32>
    %cst_34 = arith.constant dense<0xFF800000> : vector<8xf32>
    %71 = vector.multi_reduction <maximumf>, %70, %cst_34 [1] : vector<8x8xf32> to vector<8xf32>
    %72 = vector.shape_cast %71 : vector<8xf32> to vector<8x1xf32>
    %73 = vector.broadcast %72 : vector<8x1xf32> to vector<8x8xf32>
    %74 = arith.subf %70, %73 : vector<8x8xf32>
    %75 = math.exp %74 : vector<8x8xf32>
    %cst_35 = arith.constant dense<0.000000e+00> : vector<8xf32>
    %76 = vector.multi_reduction <add>, %75, %cst_35 [1] : vector<8x8xf32> to vector<8xf32>
    %77 = vector.shape_cast %76 : vector<8xf32> to vector<8x1xf32>
    %78 = tpu.reciprocal %77 {approx = true} : vector<8x1xf32> -> vector<8x1xf32>
    %79 = vector.broadcast %78 : vector<8x1xf32> to vector<8x8xf32>
    %80 = arith.mulf %75, %79 : vector<8x8xf32>
    %81 = arith.truncf %80 : vector<8x8xf32> to vector<8x8xbf16>
    %82 = vector.extract_strided_slice %21 {offsets = [0, 16], sizes = [8, 8], strides = [1, 1]} : vector<8x32xbf16> to vector<8x8xbf16>
    %cst_36 = arith.constant dense<0.000000e+00> : vector<8x8xf32>
    %83 = tpu.matmul %81, %82, %cst_36 {dimension_numbers = #tpu.dot_dimension_numbers<[1], [0], [0], [1], [0, 0, 1, 1], [], []>} : vector<8x8xbf16>, vector<8x8xbf16>, vector<8x8xf32> -> vector<8x8xf32>
    %c0_37 = arith.constant 0 : index
    %c16 = arith.constant 16 : index
    %84 = vector.load %arg22[%c0_37, %c16] : memref<8x32xf32, #tpu.memory_space<vmem>>, vector<8x8xf32>
    tpu.vector_store %arg22[%c0_37, %c16], %83 {strides = array<i32>} : memref<8x32xf32, #tpu.memory_space<vmem>>, vector<8x8xf32>,
    %85 = vector.extract_strided_slice %9 {offsets = [0, 24], sizes = [8, 8], strides = [1, 1]} : vector<8x32xbf16> to vector<8x8xbf16>
    %86 = vector.extract_strided_slice %15 {offsets = [0, 24], sizes = [8, 8], strides = [1, 1]} : vector<8x32xbf16> to vector<8x8xbf16>
    %cst_38 = arith.constant dense<0.000000e+00> : vector<8x8xf32>
    %87 = tpu.matmul %85, %86, %cst_38 {dimension_numbers = #tpu.dot_dimension_numbers<[1], [1], [0], [0], [0, 0, 1, 0], [], []>} : vector<8x8xbf16>, vector<8x8xbf16>, vector<8x8xf32> -> vector<8x8xf32>
    %cst_39 = arith.constant 0.353553385 : f32
    %88 = vector.broadcast %cst_39 : f32 to vector<8x8xf32>
    %89 = arith.mulf %87, %88 : vector<8x8xf32>
    %90 = vector.broadcast %3 : vector<1x8xf32> to vector<8x8xf32>
    %91 = arith.addf %89, %90 : vector<8x8xf32>
    %cst_40 = arith.constant dense<0xFF800000> : vector<8xf32>
    %92 = vector.multi_reduction <maximumf>, %91, %cst_40 [1] : vector<8x8xf32> to vector<8xf32>
    %93 = vector.shape_cast %92 : vector<8xf32> to vector<8x1xf32>
    %94 = vector.broadcast %93 : vector<8x1xf32> to vector<8x8xf32>
    %95 = arith.subf %91, %94 : vector<8x8xf32>
    %96 = math.exp %95 : vector<8x8xf32>
    %cst_41 = arith.constant dense<0.000000e+00> : vector<8xf32>
    %97 = vector.multi_reduction <add>, %96, %cst_41 [1] : vector<8x8xf32> to vector<8xf32>
    %98 = vector.shape_cast %97 : vector<8xf32> to vector<8x1xf32>
    %99 = tpu.reciprocal %98 {approx = true} : vector<8x1xf32> -> vector<8x1xf32>
    %100 = vector.broadcast %99 : vector<8x1xf32> to vector<8x8xf32>
    %101 = arith.mulf %96, %100 : vector<8x8xf32>
    %102 = arith.truncf %101 : vector<8x8xf32> to vector<8x8xbf16>
    %103 = vector.extract_strided_slice %21 {offsets = [0, 24], sizes = [8, 8], strides = [1, 1]} : vector<8x32xbf16> to vector<8x8xbf16>
    %cst_42 = arith.constant dense<0.000000e+00> : vector<8x8xf32>
    %104 = tpu.matmul %102, %103, %cst_42 {dimension_numbers = #tpu.dot_dimension_numbers<[1], [0], [0], [1], [0, 0, 1, 1], [], []>} : vector<8x8xbf16>, vector<8x8xbf16>, vector<8x8xf32> -> vector<8x8xf32>
    %c0_43 = arith.constant 0 : index
    %c24 = arith.constant 24 : index
    %105 = vector.load %arg22[%c0_43, %c24] : memref<8x32xf32, #tpu.memory_space<vmem>>, vector<8x8xf32>
    tpu.vector_store %arg22[%c0_43, %c24], %104 {strides = array<i32>} : memref<8x32xf32, #tpu.memory_space<vmem>>, vector<8x8xf32>,
    %c0_44 = arith.constant 0 : index
    %c0_45 = arith.constant 0 : index
    %106 = vector.load %arg22[%c0_44, %c0_45] : memref<8x32xf32, #tpu.memory_space<vmem>>, vector<8x32xf32>
    %c0_46 = arith.constant 0 : index
    %c0_47 = arith.constant 0 : index
    %107 = vector.load %arg9[%c0_46, %c0_47] : memref<32x32xbf16, #tpu.memory_space<vmem>>, vector<32x32xbf16>
    %108 = arith.truncf %106 : vector<8x32xf32> to vector<8x32xbf16>
    %cst_48 = arith.constant dense<0.000000e+00> : vector<8x32xf32>
    %109 = tpu.matmul %108, %107, %cst_48 {dimension_numbers = #tpu.dot_dimension_numbers<[1], [0], [0], [1], [0, 0, 1, 1], [], []>} : vector<8x32xbf16>, vector<32x32xbf16>, vector<8x32xf32> -> vector<8x32xf32>
    %c0_49 = arith.constant 0 : index
    %c0_50 = arith.constant 0 : index
    %110 = vector.load %arg10[%c0_49, %c0_50] : memref<1x32xf32, #tpu.memory_space<vmem>>, vector<1x32xf32>
    %111 = vector.broadcast %110 : vector<1x32xf32> to vector<8x32xf32>
    %112 = arith.addf %109, %111 : vector<8x32xf32>
    %113 = arith.extf %1 : vector<8x32xbf16> to vector<8x32xf32>
    %114 = arith.addf %113, %112 : vector<8x32xf32>
    %c0_51 = arith.constant 0 : index
    %c0_52 = arith.constant 0 : index
    %115 = vector.load %arg11[%c0_51, %c0_52] : memref<1x32xf32, #tpu.memory_space<vmem>>, vector<1x32xf32>
    %c0_53 = arith.constant 0 : index
    %c0_54 = arith.constant 0 : index
    %116 = vector.load %arg12[%c0_53, %c0_54] : memref<1x32xf32, #tpu.memory_space<vmem>>, vector<1x32xf32>
    %cst_55 = arith.constant dense<0.000000e+00> : vector<8xf32>
    %117 = vector.multi_reduction <add>, %114, %cst_55 [1] : vector<8x32xf32> to vector<8xf32>
    %118 = vector.shape_cast %117 : vector<8xf32> to vector<8x1xf32>
    %cst_56 = arith.constant 3.200000e+01 : f32
    %119 = vector.broadcast %cst_56 : f32 to vector<8x1xf32>
    %120 = arith.divf %118, %119 : vector<8x1xf32>
    %121 = vector.broadcast %120 : vector<8x1xf32> to vector<8x32xf32>
    %122 = arith.subf %114, %121 : vector<8x32xf32>
    %123 = arith.mulf %122, %122 : vector<8x32xf32>
    %cst_57 = arith.constant dense<0.000000e+00> : vector<8xf32>
    %124 = vector.multi_reduction <add>, %123, %cst_57 [1] : vector<8x32xf32> to vector<8xf32>
    %125 = vector.shape_cast %124 : vector<8xf32> to vector<8x1xf32>
    %cst_58 = arith.constant 3.200000e+01 : f32
    %126 = vector.broadcast %cst_58 : f32 to vector<8x1xf32>
    %127 = arith.divf %125, %126 : vector<8x1xf32>
    %cst_59 = arith.constant 9.99999974E-6 : f32
    %128 = vector.broadcast %cst_59 : f32 to vector<8x1xf32>
    %129 = arith.addf %127, %128 : vector<8x1xf32>
    %130 = math.rsqrt %129 : vector<8x1xf32>
    %131 = vector.broadcast %130 : vector<8x1xf32> to vector<8x32xf32>
    %132 = arith.mulf %122, %131 : vector<8x32xf32>
    %133 = vector.broadcast %115 : vector<1x32xf32> to vector<8x32xf32>
    %134 = arith.mulf %132, %133 : vector<8x32xf32>
    %135 = vector.broadcast %116 : vector<1x32xf32> to vector<8x32xf32>
    %136 = arith.addf %134, %135 : vector<8x32xf32>
    %c0_60 = arith.constant 0 : index
    %c0_61 = arith.constant 0 : index
    %137 = vector.load %arg13[%c0_60, %c0_61] : memref<32x64xbf16, #tpu.memory_space<vmem>>, vector<32x64xbf16>
    %138 = arith.truncf %136 : vector<8x32xf32> to vector<8x32xbf16>
    %cst_62 = arith.constant dense<0.000000e+00> : vector<8x64xf32>
    %139 = tpu.matmul %138, %137, %cst_62 {dimension_numbers = #tpu.dot_dimension_numbers<[1], [0], [0], [1], [0, 0, 1, 1], [], []>} : vector<8x32xbf16>, vector<32x64xbf16>, vector<8x64xf32> -> vector<8x64xf32>
    %c0_63 = arith.constant 0 : index
    %c0_64 = arith.constant 0 : index
    %140 = vector.load %arg14[%c0_63, %c0_64] : memref<1x64xf32, #tpu.memory_space<vmem>>, vector<1x64xf32>
    %141 = vector.broadcast %140 : vector<1x64xf32> to vector<8x64xf32>
    %142 = arith.addf %139, %141 : vector<8x64xf32>
    %cst_65 = arith.constant 0.000000e+00 : f32
    %143 = vector.broadcast %cst_65 : f32 to vector<8x64xf32>
    %144 = arith.maximumf %142, %143 : vector<8x64xf32>
    %c0_66 = arith.constant 0 : index
    %c0_67 = arith.constant 0 : index
    %145 = vector.load %arg15[%c0_66, %c0_67] : memref<64x32xbf16, #tpu.memory_space<vmem>>, vector<64x32xbf16>
    %146 = arith.truncf %144 : vector<8x64xf32> to vector<8x64xbf16>
    %cst_68 = arith.constant dense<0.000000e+00> : vector<8x32xf32>
    %147 = tpu.matmul %146, %145, %cst_68 {dimension_numbers = #tpu.dot_dimension_numbers<[1], [0], [0], [1], [0, 0, 1, 1], [], []>} : vector<8x64xbf16>, vector<64x32xbf16>, vector<8x32xf32> -> vector<8x32xf32>
    %c0_69 = arith.constant 0 : index
    %c0_70 = arith.constant 0 : index
    %148 = vector.load %arg16[%c0_69, %c0_70] : memref<1x32xf32, #tpu.memory_space<vmem>>, vector<1x32xf32>
    %149 = vector.broadcast %148 : vector<1x32xf32> to vector<8x32xf32>
    %150 = arith.addf %147, %149 : vector<8x32xf32>
    %151 = arith.addf %136, %150 : vector<8x32xf32>
    %c0_71 = arith.constant 0 : index
    %c0_72 = arith.constant 0 : index
    %152 = vector.load %arg17[%c0_71, %c0_72] : memref<1x32xf32, #tpu.memory_space<vmem>>, vector<1x32xf32>
    %c0_73 = arith.constant 0 : index
    %c0_74 = arith.constant 0 : index
    %153 = vector.load %arg18[%c0_73, %c0_74] : memref<1x32xf32, #tpu.memory_space<vmem>>, vector<1x32xf32>
    %cst_75 = arith.constant dense<0.000000e+00> : vector<8xf32>
    %154 = vector.multi_reduction <add>, %151, %cst_75 [1] : vector<8x32xf32> to vector<8xf32>
    %155 = vector.shape_cast %154 : vector<8xf32> to vector<8x1xf32>
    %cst_76 = arith.constant 3.200000e+01 : f32
    %156 = vector.broadcast %cst_76 : f32 to vector<8x1xf32>
    %157 = arith.divf %155, %156 : vector<8x1xf32>
    %158 = vector.broadcast %157 : vector<8x1xf32> to vector<8x32xf32>
    %159 = arith.subf %151, %158 : vector<8x32xf32>
    %160 = arith.mulf %159, %159 : vector<8x32xf32>
    %cst_77 = arith.constant dense<0.000000e+00> : vector<8xf32>
    %161 = vector.multi_reduction <add>, %160, %cst_77 [1] : vector<8x32xf32> to vector<8xf32>
    %162 = vector.shape_cast %161 : vector<8xf32> to vector<8x1xf32>
    %cst_78 = arith.constant 3.200000e+01 : f32
    %163 = vector.broadcast %cst_78 : f32 to vector<8x1xf32>
    %164 = arith.divf %162, %163 : vector<8x1xf32>
    %cst_79 = arith.constant 9.99999974E-6 : f32
    %165 = vector.broadcast %cst_79 : f32 to vector<8x1xf32>
    %166 = arith.addf %164, %165 : vector<8x1xf32>
    %167 = math.rsqrt %166 : vector<8x1xf32>
    %168 = vector.broadcast %167 : vector<8x1xf32> to vector<8x32xf32>
    %169 = arith.mulf %159, %168 : vector<8x32xf32>
    %170 = vector.broadcast %152 : vector<1x32xf32> to vector<8x32xf32>
    %171 = arith.mulf %169, %170 : vector<8x32xf32>
    %172 = vector.broadcast %153 : vector<1x32xf32> to vector<8x32xf32>
    %173 = arith.addf %171, %172 : vector<8x32xf32>
    %cst_80 = arith.constant dense<0.000000e+00> : vector<32xf32>
    %174 = vector.multi_reduction <add>, %173, %cst_80 [0] : vector<8x32xf32> to vector<32xf32>
    %175 = vector.shape_cast %174 : vector<32xf32> to vector<1x32xf32>
    %cst_81 = arith.constant 8.000000e+00 : f32
    %176 = vector.broadcast %cst_81 : f32 to vector<1x32xf32>
    %177 = arith.divf %175, %176 : vector<1x32xf32>
    %c0_82 = arith.constant 0 : index
    %c0_83 = arith.constant 0 : index
    %178 = vector.load %arg19[%c0_82, %c0_83] : memref<32x16xbf16, #tpu.memory_space<vmem>>, vector<32x16xbf16>
    %179 = arith.truncf %177 : vector<1x32xf32> to vector<1x32xbf16>
    %cst_84 = arith.constant dense<0.000000e+00> : vector<1x16xf32>
    %180 = tpu.matmul %179, %178, %cst_84 {dimension_numbers = #tpu.dot_dimension_numbers<[1], [0], [0], [1], [0, 0, 1, 1], [], []>} : vector<1x32xbf16>, vector<32x16xbf16>, vector<1x16xf32> -> vector<1x16xf32>
    %c0_85 = arith.constant 0 : index
    %c0_86 = arith.constant 0 : index
    %181 = vector.load %arg20[%c0_85, %c0_86] : memref<1x16xf32, #tpu.memory_space<vmem>>, vector<1x16xf32>
    %182 = arith.addf %180, %181 : vector<1x16xf32>
    %c0_87 = arith.constant 0 : index
    %c0_88 = arith.constant 0 : index
    %c0_89 = arith.constant 0 : index
    %183 = vector.load %arg21[%c0_87, %c0_88, %c0_89] : memref<1x1x16xf32, #tpu.memory_space<vmem>>, vector<1x1x16xf32>
    %184 = vector.shape_cast %183 : vector<1x1x16xf32> to vector<1x16xf32>
    %185 = vector.shape_cast %182 : vector<1x16xf32> to vector<1x1x16xf32>
    tpu.vector_store %arg21[%c0_87, %c0_88, %c0_89], %185 {strides = array<i32>} : memref<1x1x16xf32, #tpu.memory_space<vmem>>, vector<1x1x16xf32>,
    return
  }
  func.func @transform_0(%arg0: i32) -> (i32, i32, i32) {
    %c0_i32 = arith.constant 0 : i32
    %c0_i32_0 = arith.constant 0 : i32
    %c0_i32_1 = arith.constant 0 : i32
    return %arg0, %c0_i32, %c0_i32_0 : i32, i32, i32
  }
  func.func @transform_1(%arg0: i32) -> (i32, i32, i32) {
    %c0_i32 = arith.constant 0 : i32
    %c0_i32_0 = arith.constant 0 : i32
    %c0_i32_1 = arith.constant 0 : i32
    return %arg0, %c0_i32, %c0_i32_0 : i32, i32, i32
  }
  func.func @transform_2(%arg0: i32) -> (i32, i32) {
    %c0_i32 = arith.constant 0 : i32
    %c0_i32_0 = arith.constant 0 : i32
    %c0_i32_1 = arith.constant 0 : i32
    return %c0_i32, %c0_i32_0 : i32, i32
  }
  func.func @transform_3(%arg0: i32) -> (i32, i32) {
    %c0_i32 = arith.constant 0 : i32
    %c0_i32_0 = arith.constant 0 : i32
    %c0_i32_1 = arith.constant 0 : i32
    return %c0_i32, %c0_i32_0 : i32, i32
  }
  func.func @transform_4(%arg0: i32) -> (i32, i32) {
    %c0_i32 = arith.constant 0 : i32
    %c0_i32_0 = arith.constant 0 : i32
    %c0_i32_1 = arith.constant 0 : i32
    return %c0_i32, %c0_i32_0 : i32, i32
  }
  func.func @transform_5(%arg0: i32) -> (i32, i32) {
    %c0_i32 = arith.constant 0 : i32
    %c0_i32_0 = arith.constant 0 : i32
    %c0_i32_1 = arith.constant 0 : i32
    return %c0_i32, %c0_i32_0 : i32, i32
  }
  func.func @transform_6(%arg0: i32) -> (i32, i32) {
    %c0_i32 = arith.constant 0 : i32
    %c0_i32_0 = arith.constant 0 : i32
    %c0_i32_1 = arith.constant 0 : i32
    return %c0_i32, %c0_i32_0 : i32, i32
  }
  func.func @transform_7(%arg0: i32) -> (i32, i32) {
    %c0_i32 = arith.constant 0 : i32
    %c0_i32_0 = arith.constant 0 : i32
    %c0_i32_1 = arith.constant 0 : i32
    return %c0_i32, %c0_i32_0 : i32, i32
  }
  func.func @transform_8(%arg0: i32) -> (i32, i32) {
    %c0_i32 = arith.constant 0 : i32
    %c0_i32_0 = arith.constant 0 : i32
    %c0_i32_1 = arith.constant 0 : i32
    return %c0_i32, %c0_i32_0 : i32, i32
  }
  func.func @transform_9(%arg0: i32) -> (i32, i32) {
    %c0_i32 = arith.constant 0 : i32
    %c0_i32_0 = arith.constant 0 : i32
    %c0_i32_1 = arith.constant 0 : i32
    return %c0_i32, %c0_i32_0 : i32, i32
  }
  func.func @transform_10(%arg0: i32) -> (i32, i32) {
    %c0_i32 = arith.constant 0 : i32
    %c0_i32_0 = arith.constant 0 : i32
    %c0_i32_1 = arith.constant 0 : i32
    return %c0_i32, %c0_i32_0 : i32, i32
  }
  func.func @transform_11(%arg0: i32) -> (i32, i32) {
    %c0_i32 = arith.constant 0 : i32
    %c0_i32_0 = arith.constant 0 : i32
    %c0_i32_1 = arith.constant 0 : i32
    return %c0_i32, %c0_i32_0 : i32, i32
  }
  func.func @transform_12(%arg0: i32) -> (i32, i32) {
    %c0_i32 = arith.constant 0 : i32
    %c0_i32_0 = arith.constant 0 : i32
    %c0_i32_1 = arith.constant 0 : i32
    return %c0_i32, %c0_i32_0 : i32, i32
  }
  func.func @transform_13(%arg0: i32) -> (i32, i32) {
    %c0_i32 = arith.constant 0 : i32
    %c0_i32_0 = arith.constant 0 : i32
    %c0_i32_1 = arith.constant 0 : i32
    return %c0_i32, %c0_i32_0 : i32, i32
  }
  func.func @transform_14(%arg0: i32) -> (i32, i32) {
    %c0_i32 = arith.constant 0 : i32
    %c0_i32_0 = arith.constant 0 : i32
    %c0_i32_1 = arith.constant 0 : i32
    return %c0_i32, %c0_i32_0 : i32, i32
  }
  func.func @transform_15(%arg0: i32) -> (i32, i32) {
    %c0_i32 = arith.constant 0 : i32
    %c0_i32_0 = arith.constant 0 : i32
    %c0_i32_1 = arith.constant 0 : i32
    return %c0_i32, %c0_i32_0 : i32, i32
  }
  func.func @transform_16(%arg0: i32) -> (i32, i32) {
    %c0_i32 = arith.constant 0 : i32
    %c0_i32_0 = arith.constant 0 : i32
    %c0_i32_1 = arith.constant 0 : i32
    return %c0_i32, %c0_i32_0 : i32, i32
  }
  func.func @transform_17(%arg0: i32) -> (i32, i32) {
    %c0_i32 = arith.constant 0 : i32
    %c0_i32_0 = arith.constant 0 : i32
    %c0_i32_1 = arith.constant 0 : i32
    return %c0_i32, %c0_i32_0 : i32, i32
  }
  func.func @transform_18(%arg0: i32) -> (i32, i32) {
    %c0_i32 = arith.constant 0 : i32
    %c0_i32_0 = arith.constant 0 : i32
    %c0_i32_1 = arith.constant 0 : i32
    return %c0_i32, %c0_i32_0 : i32, i32
  }
  func.func @transform_19(%arg0: i32) -> (i32, i32) {
    %c0_i32 = arith.constant 0 : i32
    %c0_i32_0 = arith.constant 0 : i32
    %c0_i32_1 = arith.constant 0 : i32
    return %c0_i32, %c0_i32_0 : i32, i32
  }
  func.func @transform_20(%arg0: i32) -> (i32, i32, i32) {
    %c0_i32 = arith.constant 0 : i32
    %c0_i32_0 = arith.constant 0 : i32
    %c0_i32_1 = arith.constant 0 : i32
    return %arg0, %c0_i32, %c0_i32_0 : i32, i32, i32
  }
}

</mosaic_0001>

<llo_original>
// kernel: bert_encoder_forward.3
$region0: #{bert_encoder_forward.3}
  #allocation0 [shape = 'u32[]', space=smem, size = 0x4, offset = 0x4, fixed_abs, tag = 'smem constant byte address 0x4 - core index']
  #allocation1 [shape = 'u32[144,128]{1,0:T(1,128)}', space=vmem, size = 0x12000, scoped, tag = 'internal scratch']
  %s0 = inlined_call_operand.hbm [shape: f32[2,8,2], index: 0, kind: input, shape index: {}]
  %s1 = inlined_call_operand.hbm [shape: f32[2,32], index: 1, kind: input, shape index: {}]
  %s2 = inlined_call_operand.hbm [shape: f32[1,32], index: 2, kind: input, shape index: {}]
  %s3 = inlined_call_operand.hbm [shape: f32[8,32], index: 3, kind: input, shape index: {}]
  %s4 = inlined_call_operand.hbm [shape: bf16[2,8,32], index: 4, kind: output, shape index: {}]
  %s5 = sld [smem:[#allocation0]]
  $region65: #{bert_encoder_forward.3} parent=0
    _
  %s7 = ssub.s32 1, %s5
  %s8 = scalar_select 0, %s7, %s5
  $region1: #{bert_encoder_forward.3} parent=0
    #allocation2 [shape = 'u8[8192]{0}', space=vmem, size = 0x2000, scoped, tag = 'input window, operand 0']
    #allocation3 [shape = 's32[2]{0}', space=sflag, size = 0x8, scoped, tag = 'scoped memory for bert_encoder_forward.3']
    #allocation4 [shape = 's32[2]{0}', space=sflag, size = 0x8, scoped, tag = 'scoped memory for bert_encoder_forward.3']
    #allocation5 [shape = 'u8[1024]{0}', space=vmem, size = 0x400, scoped, tag = 'input window, operand 1, single buffered']
    #allocation6 [shape = 's32[1]{0}', space=sflag, size = 0x4, scoped, tag = 'scoped memory for bert_encoder_forward.3']
    #allocation7 [shape = 'u8[512]{0}', space=vmem, size = 0x400, scoped, tag = 'input window, operand 2, single buffered']
    #allocation8 [shape = 'u8[4096]{0}', space=vmem, size = 0x1000, scoped, tag = 'input window, operand 3, single buffered']
    #allocation9 [shape = 's32[1]{0}', space=sflag, size = 0x4, scoped, tag = 'scoped memory for bert_encoder_forward.3']
    #allocation10 [shape = 'u8[4096]{0}', space=vmem, size = 0x1000, scoped, tag = 'output window, operand 0']
    %9 = vsyncpa [#allocation3], 0
    %s10 = scalar_lea.sflag [#allocation3], 1
    %11 = vsyncpa %s10, 0
    %12 = vsyncpa [#allocation6], 0
    %13 = vsyncpa [#allocation9], 0
    %14 = vsyncpa [#allocation4], 0
    %s15 = scalar_lea.sflag [#allocation4], 1
    %16 = vsyncpa %s15, 0
    loop: start=0, step=1, limit=4
    $region2: #{bert_encoder_forward.3} parent=1 // loop_pre_header
      _
    $region3: #{bert_encoder_forward.3} parent=1 // loop_header
      %s18 = sphi 0, %s22
      %p19 = scmp.ge.s32.totalorder %s18, 4
      %s28 = sphi 0, %s30
      %s31 = sphi 0, %s28
      %s32 = sphi 0, %s31
      %s48 = sphi 0, %s32
      %s52 = sphi 0, %s52
      %s54 = sphi 0, %s52
      %s55 = sphi 0, %s54
      %s69 = sphi 0, %s55
      %s73 = sphi 0, %s73
      %s75 = sphi 0, %s73
      %s76 = sphi 0, %s75
      %s90 = sphi 0, %s76
      %s94 = sphi 0, %s94
      %s96 = sphi 0, %s94
      %s97 = sphi 0, %s96
      %s111 = sphi 0, %s97
      %s117 = sphi 0, %s119
      %s120 = sphi 0, %s117
      %s121 = sphi 0, %s120
      %s137 = sphi 0, %s121
    $region4: #{bert_encoder_forward.3} parent=1 // loop_header_branch
      %21 = sbr.rel (%p19) target = $region8
    $region5: #{bert_encoder_forward.3} parent=1 // loop_body
      %s23 = ssub.s32 %s18, 1
      %s24 = ssub.s32 %s18, 2
      %s25 = sadd.s32 %s18, 1
      %s26 = ssub.s32 %s18, %s25
      %p27 = scmp.eq.s32.totalorder %s26, 0
      %s29 = sadd.s32 %s28, 1
      %s30 = scalar_select %p27, %s28, %s29
      %p33 = pneg %p27
      %p34 = scmp.eq.s32.totalorder %s18, 1
      %p35 = por %p33, %p34
      %p36 = scmp.ne.s32.totalorder %s28, %s31
      %p37 = scmp.eq.s32.totalorder %s18, 0
      %p38 = por %p36, %p37
      %p39 = scmp.ne.s32.totalorder %s28, %s31
      %p40 = scmp.eq.s32.totalorder %s23, 1
      %p41 = por %p39, %p40
      %p42 = scmp.ne.s32.totalorder %s31, %s32
      %p43 = scmp.eq.s32.totalorder %s23, 0
      %p44 = por %p42, %p43
      %p45 = scmp.ne.s32.totalorder %s31, %s32
      %p46 = scmp.eq.s32.totalorder %s24, 1
      %p47 = por %p45, %p46
      %p49 = scmp.ne.s32.totalorder %s32, %s48
      %p50 = scmp.eq.s32.totalorder %s24, 0
      %p51 = por %p49, %p50
      %s53 = sadd.s32 %s52, 1
      %p56 = scmp.eq.s32.totalorder %s18, 1
      %p57 = scmp.ne.s32.totalorder %s52, %s54
      %p58 = scmp.eq.s32.totalorder %s18, 0
      %p59 = por %p57, %p58
      %p60 = scmp.ne.s32.totalorder %s52, %s54
      %p61 = scmp.eq.s32.totalorder %s23, 1
      %p62 = por %p60, %p61
      %p63 = scmp.ne.s32.totalorder %s54, %s55
      %p64 = scmp.eq.s32.totalorder %s23, 0
      %p65 = por %p63, %p64
      %p66 = scmp.ne.s32.totalorder %s54, %s55
      %p67 = scmp.eq.s32.totalorder %s24, 1
      %p68 = por %p66, %p67
      %p70 = scmp.ne.s32.totalorder %s55, %s69
      %p71 = scmp.eq.s32.totalorder %s24, 0
      %p72 = por %p70, %p71
      %s74 = sadd.s32 %s73, 1
      %p77 = scmp.eq.s32.totalorder %s18, 1
      %p78 = scmp.ne.s32.totalorder %s73, %s75
      %p79 = scmp.eq.s32.totalorder %s18, 0
      %p80 = por %p78, %p79
      %p81 = scmp.ne.s32.totalorder %s73, %s75
      %p82 = scmp.eq.s32.totalorder %s23, 1
      %p83 = por %p81, %p82
      %p84 = scmp.ne.s32.totalorder %s75, %s76
      %p85 = scmp.eq.s32.totalorder %s23, 0
      %p86 = por %p84, %p85
      %p87 = scmp.ne.s32.totalorder %s75, %s76
      %p88 = scmp.eq.s32.totalorder %s24, 1
      %p89 = por %p87, %p88
      %p91 = scmp.ne.s32.totalorder %s76, %s90
      %p92 = scmp.eq.s32.totalorder %s24, 0
      %p93 = por %p91, %p92
      %s95 = sadd.s32 %s94, 1
      %p98 = scmp.eq.s32.totalorder %s18, 1
      %p99 = scmp.ne.s32.totalorder %s94, %s96
      %p100 = scmp.eq.s32.totalorder %s18, 0
      %p101 = por %p99, %p100
      %p102 = scmp.ne.s32.totalorder %s94, %s96
      %p103 = scmp.eq.s32.totalorder %s23, 1
      %p104 = por %p102, %p103
      %p105 = scmp.ne.s32.totalorder %s96, %s97
      %p106 = scmp.eq.s32.totalorder %s23, 0
      %p107 = por %p105, %p106
      %p108 = scmp.ne.s32.totalorder %s96, %s97
      %p109 = scmp.eq.s32.totalorder %s24, 1
      %p110 = por %p108, %p109
      %p112 = scmp.ne.s32.totalorder %s97, %s111
      %p113 = scmp.eq.s32.totalorder %s24, 0
      %p114 = por %p112, %p113
      %s115 = ssub.s32 %s18, %s25
      %p116 = scmp.eq.s32.totalorder %s115, 0
      %s118 = sadd.s32 %s117, 1
      %s119 = scalar_select %p116, %s117, %s118
      %p122 = pneg %p116
      %p123 = scmp.eq.s32.totalorder %s18, 1
      %p124 = por %p122, %p123
      %p125 = scmp.ne.s32.totalorder %s117, %s120
      %p126 = scmp.eq.s32.totalorder %s18, 0
      %p127 = por %p125, %p126
      %p128 = scmp.ne.s32.totalorder %s117, %s120
      %p129 = scmp.eq.s32.totalorder %s23, 1
      %p130 = por %p128, %p129
      %p131 = scmp.ne.s32.totalorder %s120, %s121
      %p132 = scmp.eq.s32.totalorder %s23, 0
      %p133 = por %p131, %p132
      %p134 = scmp.ne.s32.totalorder %s120, %s121
      %p135 = scmp.eq.s32.totalorder %s24, 1
      %p136 = por %p134, %p135
      %p138 = scmp.ne.s32.totalorder %s121, %s137
      %p139 = scmp.eq.s32.totalorder %s24, 0
      %p140 = por %p138, %p139
      %p141 = scmp.le.s32.totalorder 1, %s18
      %p142 = scmp.lt.s32.totalorder %s18, 3
      %p143 = pnand %p141, %p142
      %p144 = pneg %p143
      // Predicated region
      $region9: #{bert_encoder_forward.3} parent=5 // pred_check
        _
      $region10: #{bert_encoder_forward.3} parent=5 // pred_check_branch
        %146 = sbr.rel (%p143) target = $region12
      $region11: #{bert_encoder_forward.3} parent=5 // pred_region
        %s147 = ssub.s32 %s18, 1
        // Predicated region
        $region13: #{bert_encoder_forward.3} parent=11 // pred_check
          %p148 = pneg %p65
        $region14: #{bert_encoder_forward.3} parent=11 // pred_check_branch
          %150 = sbr.rel (%p148) target = $region16
        $region15: #{bert_encoder_forward.3} parent=11 // pred_region
          %s152 = ssub.s32 32, 32
          %153 = vsyncadd [#allocation6], %s152
          %s155 = sshll.u32 [#allocation5], 4
          %s156 = int_to_ptr.vmem [resolvable:$true] %s155
          %158 = dma.hbm_to_vmem [thread:$0]  %s1, 32, %s156, [#allocation6]
        $region16: #{bert_encoder_forward.3} parent=11 // pred_fallthru
          _
        // Predicated region
        $region17: #{bert_encoder_forward.3} parent=11 // pred_check
          %p159 = pneg %p86
        $region18: #{bert_encoder_forward.3} parent=11 // pred_check_branch
          %161 = sbr.rel (%p159) target = $region20
        $region19: #{bert_encoder_forward.3} parent=11 // pred_region
          %s163 = ssub.s32 16, 16
          %164 = vsyncadd [#allocation6], %s163
          %s166 = sshll.u32 [#allocation7], 4
          %s167 = int_to_ptr.vmem [resolvable:$true] %s166
          %169 = dma.hbm_to_vmem [thread:$0]  %s2, 16, %s167, [#allocation6]
        $region20: #{bert_encoder_forward.3} parent=11 // pred_fallthru
          _
        // Predicated region
        $region21: #{bert_encoder_forward.3} parent=11 // pred_check
          %p170 = pneg %p107
        $region22: #{bert_encoder_forward.3} parent=11 // pred_check_branch
          %172 = sbr.rel (%p170) target = $region24
        $region23: #{bert_encoder_forward.3} parent=11 // pred_region
          %s174 = ssub.s32 128, 128
          %175 = vsyncadd [#allocation9], %s174
          %s177 = sshll.u32 [#allocation8], 4
          %s178 = int_to_ptr.vmem [resolvable:$true] %s177
          %180 = dma.hbm_to_vmem [thread:$0]  %s3, 128, %s178, [#allocation9]
        $region24: #{bert_encoder_forward.3} parent=11 // pred_fallthru
          _
      $region12: #{bert_encoder_forward.3} parent=5 // pred_fallthru
        _
      %p181 = scmp.lt.s32.totalorder %s18, 2
      // Predicated region
      $region25: #{bert_encoder_forward.3} parent=5 // pred_check
        %p182 = pneg %p181
      $region26: #{bert_encoder_forward.3} parent=5 // pred_check_branch
        %184 = sbr.rel (%p182) target = $region28
      $region27: #{bert_encoder_forward.3} parent=5 // pred_region
        // Predicated region
        $region29: #{bert_encoder_forward.3} parent=27 // pred_check
          %p185 = pneg %p38
        $region30: #{bert_encoder_forward.3} parent=27 // pred_check_branch
          %187 = sbr.rel (%p185) target = $region32
        $region31: #{bert_encoder_forward.3} parent=27 // pred_region
          %s188 = sand.u32 %s28, 1
          %s189 = scalar_lea.sflag [#allocation3], %s188
          %s190 = sand.u32 %s28, 1
          %s191 = smul.addr %s190, 8
          %s192 = scalar_lea.vmem [#allocation2], %s191
          %s194 = ssub.s32 128, 128
          %195 = vsyncadd %s189, %s194
          %s196 = smul.addr %s18, 128
          %s197 = scalar_lea.hbm %s0, %s196
          %s199 = sshll.u32 %s192, 4
          %s200 = int_to_ptr.vmem [resolvable:$true] %s199
          %202 = dma.hbm_to_vmem [thread:$0]  %s197, 128, %s200, %s189
        $region32: #{bert_encoder_forward.3} parent=27 // pred_fallthru
          _
      $region28: #{bert_encoder_forward.3} parent=5 // pred_fallthru
        _
      %p203 = scmp.le.s32.totalorder 1, %s18
      %p204 = scmp.lt.s32.totalorder %s18, 3
      %p205 = pnand %p203, %p204
      %p206 = pneg %p205
      // Predicated region
      $region33: #{bert_encoder_forward.3} parent=5 // pred_check
        _
      $region34: #{bert_encoder_forward.3} parent=5 // pred_check_branch
        %208 = sbr.rel (%p205) target = $region36
      $region35: #{bert_encoder_forward.3} parent=5 // pred_region
        %s209 = ssub.s32 %s18, 1
        %s210 = sand.u32 %s31, 1
        %s211 = scalar_lea.sflag [#allocation3], %s210
        %s212 = sand.u32 %s31, 1
        %s213 = smul.addr %s212, 8
        %s214 = scalar_lea.vmem [#allocation2], %s213
        // Predicated region
        $region37: #{bert_encoder_forward.3} parent=35 // pred_check
          %p215 = pneg %p44
        $region38: #{bert_encoder_forward.3} parent=35 // pred_check_branch
          %217 = sbr.rel (%p215) target = $region40
        $region39: #{bert_encoder_forward.3} parent=35 // pred_region
          %218 = dma.done %s211, 128
        $region40: #{bert_encoder_forward.3} parent=35 // pred_fallthru
          _
        // Predicated region
        $region41: #{bert_encoder_forward.3} parent=35 // pred_check
          %p219 = pneg %p65
        $region42: #{bert_encoder_forward.3} parent=35 // pred_check_branch
          %221 = sbr.rel (%p219) target = $region44
        $region43: #{bert_encoder_forward.3} parent=35 // pred_region
          %222 = dma.done [#allocation6], 32
        $region44: #{bert_encoder_forward.3} parent=35 // pred_fallthru
          _
        // Predicated region
        $region45: #{bert_encoder_forward.3} parent=35 // pred_check
          %p223 = pneg %p86
        $region46: #{bert_encoder_forward.3} parent=35 // pred_check_branch
          %225 = sbr.rel (%p223) target = $region48
        $region47: #{bert_encoder_forward.3} parent=35 // pred_region
          %226 = dma.done [#allocation6], 16
        $region48: #{bert_encoder_forward.3} parent=35 // pred_fallthru
          _
        // Predicated region
        $region49: #{bert_encoder_forward.3} parent=35 // pred_check
          %p227 = pneg %p107
        $region50: #{bert_encoder_forward.3} parent=35 // pred_check_branch
          %229 = sbr.rel (%p227) target = $region52
        $region51: #{bert_encoder_forward.3} parent=35 // pred_region
          %230 = dma.done [#allocation9], 128
        $region52: #{bert_encoder_forward.3} parent=35 // pred_fallthru
          _
        %s231 = sand.u32 %s31, 1
        %s232 = scalar_lea.sflag [#allocation3], %s231
        %s233 = sand.u32 %s31, 1
        %s234 = smul.addr %s233, 8
        %s235 = scalar_lea.vmem [#allocation2], %s234
        %p236 = pneg %p44
        %p237 = pneg %p41
        %p238 = pneg %p65
        %p239 = pneg %p62
        %p240 = pneg %p86
        %p241 = pneg %p83
        %p242 = pneg %p107
        %p243 = pneg %p104
        %p244 = pneg %p133
        %p245 = pneg %p130
        %s246 = sand.u32 %s120, 1
        %s247 = scalar_lea.sflag [#allocation4], %s246
        %s248 = sand.u32 %s120, 1
        %s249 = smul.addr %s248, 4
        %s250 = scalar_lea.vmem [#allocation10], %s249
        %v251 = vld [vmem:[%s214] sm:$0xff]
        %v252 = vld [vmem:[#allocation5] sm:$0x3]
        %254 = vset.pattern.permute.xlu0 0
        %255 = vperm.xlu0 %254, %v251
        %v256 = vpop.permute.xlu0 %255
        %v258 = vlaneseq
        %v259 = vshrl.u32 %v258, 7
        %v260 = vsub.s32 0, %v259
        %v261 = vrot.slane %v252, %v260
        %v262 = vmul.f32 %v256, %v261
        %263 = vset.pattern.permute.xlu0 1
        %264 = vperm.xlu0 %263, %v251
        %v265 = vpop.permute.xlu0 %264
        %v267 = vlaneseq
        %v268 = vshrl.u32 %v267, 7
        %v269 = vsub.s32 1, %v268
        %v270 = vrot.slane %v252, %v269
        %v271 = vmul.f32 %v265, %v270
        %v272 = vadd.f32 %v262, %v271
        %v273 = vld [vmem:[#allocation7] sm:$0x1]
        %v275 = vlaneseq
        %v276 = vshrl.u32 %v275, 7
        %v277 = vsub.s32 0, %v276
        %v278 = vrot.slane %v273, %v277
        %v280 = vadd.f32 %v272, %v278
        %v281 = vmul.f32 %v280, 5.656854
        %v282 = vld [vmem:[#allocation8] sm:$0xff]
        %v283 = vadd.f32 %v281, %v282
        %v284 = vpack.c.bf16 %v283, %v283
        %vm285 = vcmask 257024
        %286 = vst.msk [vmem:[%s250] sm:$0xf] %vm285, %v284
        %s287 = sand.u32 %s120, 1
        %s288 = scalar_lea.sflag [#allocation4], %s287
        %s289 = sand.u32 %s120, 1
        %s290 = smul.addr %s289, 4
        %s291 = scalar_lea.vmem [#allocation10], %s290
        // Predicated region
        $region53: #{bert_encoder_forward.3} parent=35 // pred_check
          %p292 = pneg %p130
        $region54: #{bert_encoder_forward.3} parent=35 // pred_check_branch
          %294 = sbr.rel (%p292) target = $region56
        $region55: #{bert_encoder_forward.3} parent=35 // pred_region
          %s296 = ssub.s32 64, 64
          %297 = vsyncadd %s288, %s296
          %s298 = smul.addr %s23, 64
          %s299 = scalar_lea.hbm %s4, %s298
          %s301 = sshll.u32 %s291, 4
          %s302 = int_to_ptr.vmem [resolvable:$true] %s301
          %304 = dma.vmem_to_hbm [thread:$0]  %s302, 64, %s299, %s288
        $region56: #{bert_encoder_forward.3} parent=35 // pred_fallthru
          _
      $region36: #{bert_encoder_forward.3} parent=5 // pred_fallthru
        _
      %p305 = scmp.le.s32.totalorder 2, %s18
      // Predicated region
      $region57: #{bert_encoder_forward.3} parent=5 // pred_check
        %p306 = pneg %p305
      $region58: #{bert_encoder_forward.3} parent=5 // pred_check_branch
        %308 = sbr.rel (%p306) target = $region60
      $region59: #{bert_encoder_forward.3} parent=5 // pred_region
        %s309 = ssub.s32 %s18, 2
        // Predicated region
        $region61: #{bert_encoder_forward.3} parent=59 // pred_check
          %p310 = pneg %p136
        $region62: #{bert_encoder_forward.3} parent=59 // pred_check_branch
          %312 = sbr.rel (%p310) target = $region64
        $region63: #{bert_encoder_forward.3} parent=59 // pred_region
          %s313 = sand.u32 %s121, 1
          %s314 = scalar_lea.sflag [#allocation4], %s313
          %s315 = sand.u32 %s121, 1
          %s316 = smul.addr %s315, 4
          %s317 = scalar_lea.vmem [#allocation10], %s316
          %318 = dma.done %s314, 64
        $region64: #{bert_encoder_forward.3} parent=59 // pred_fallthru
          _
      $region60: #{bert_encoder_forward.3} parent=5 // pred_fallthru
        _
    $region6: #{bert_encoder_forward.3} parent=1 // loop_footer
      %s22 = sadd.s32 1, %s18
    $region7: #{bert_encoder_forward.3} parent=1 // loop_footer_branch
      %17 = sbr.rel target = $region3
    $region8: #{bert_encoder_forward.3} parent=1 // loop_exit
      _
    %319 = vsyncpa [#allocation3], 1
    %s320 = scalar_lea.sflag [#allocation3], 1
    %321 = vsyncpa %s320, 1
    %322 = vsyncpa [#allocation6], 1
    %323 = vsyncpa [#allocation9], 1
    %324 = vsyncpa [#allocation4], 1
    %s325 = scalar_lea.sflag [#allocation4], 1
    %326 = vsyncpa %s325, 1

// kernel: bert_encoder_forward.4
$region0: #{bert_encoder_forward.4}
  #allocation0 [shape = 'u32[]', space=smem, size = 0x4, offset = 0x4, fixed_abs, tag = 'smem constant byte address 0x4 - core index']
  #allocation1 [shape = 'u32[144,128]{1,0:T(1,128)}', space=vmem, size = 0x12000, scoped, tag = 'internal scratch']
  #allocation2 [shape = 'f32[8,32]{1,0:T(8,128)}', space=vmem, size = 0x1000, scoped, tag = 'scratch operand']
  %s0 = inlined_call_operand.hbm [shape: bf16[2,8,32], index: 0, kind: input, shape index: {}, may-alias: {0,1}]
  %s1 = inlined_call_operand.hbm [shape: bf16[2,8,32], index: 1, kind: input, shape index: {}, may-alias: {0,1}]
  %s2 = inlined_call_operand.hbm [shape: f32[2,1,8], index: 2, kind: input, shape index: {}]
  %s3 = inlined_call_operand.hbm [shape: bf16[32,32], index: 3, kind: input, shape index: {}]
  %s4 = inlined_call_operand.hbm [shape: bf16[32,32], index: 4, kind: input, shape index: {}]
  %s5 = inlined_call_operand.hbm [shape: bf16[32,32], index: 5, kind: input, shape index: {}]
  %s6 = inlined_call_operand.hbm [shape: f32[1,32], index: 6, kind: input, shape index: {}]
  %s7 = inlined_call_operand.hbm [shape: f32[1,32], index: 7, kind: input, shape index: {}]
  %s8 = inlined_call_operand.hbm [shape: f32[1,32], index: 8, kind: input, shape index: {}]
  %s9 = inlined_call_operand.hbm [shape: bf16[32,32], index: 9, kind: input, shape index: {}]
  %s10 = inlined_call_operand.hbm [shape: f32[1,32], index: 10, kind: input, shape index: {}]
  %s11 = inlined_call_operand.hbm [shape: f32[1,32], index: 11, kind: input, shape index: {}]
  %s12 = inlined_call_operand.hbm [shape: f32[1,32], index: 12, kind: input, shape index: {}]
  %s13 = inlined_call_operand.hbm [shape: bf16[32,64], index: 13, kind: input, shape index: {}]
  %s14 = inlined_call_operand.hbm [shape: f32[1,64], index: 14, kind: input, shape index: {}]
  %s15 = inlined_call_operand.hbm [shape: bf16[64,32], index: 15, kind: input, shape index: {}]
  %s16 = inlined_call_operand.hbm [shape: f32[1,32], index: 16, kind: input, shape index: {}]
  %s17 = inlined_call_operand.hbm [shape: f32[1,32], index: 17, kind: input, shape index: {}]
  %s18 = inlined_call_operand.hbm [shape: f32[1,32], index: 18, kind: input, shape index: {}]
  %s19 = inlined_call_operand.hbm [shape: bf16[2,8,32], index: 19, kind: output, shape index: {}]
  %s20 = sld [smem:[#allocation0]]
  $region185: #{bert_encoder_forward.4} parent=0
    _
  %s22 = ssub.s32 1, %s20
  %s23 = scalar_select 0, %s22, %s20
  $region1: #{bert_encoder_forward.4} parent=0
    #allocation3 [shape = 'u8[4096]{0}', space=vmem, size = 0x1000, scoped, tag = 'input window, operand 0']
    #allocation4 [shape = 's32[2]{0}', space=sflag, size = 0x8, scoped, tag = 'scoped memory for bert_encoder_forward.4']
    #allocation5 [shape = 's32[2]{0}', space=sflag, size = 0x8, scoped, tag = 'scoped memory for bert_encoder_forward.4']
    #allocation6 [shape = 'u8[4096]{0}', space=vmem, size = 0x1000, scoped, tag = 'input window, operand 1']
    #allocation7 [shape = 's32[2]{0}', space=sflag, size = 0x8, scoped, tag = 'scoped memory for bert_encoder_forward.4']
    #allocation8 [shape = 'u8[1024]{0}', space=vmem, size = 0x400, scoped, tag = 'input window, operand 2']
    #allocation9 [shape = 'u8[8192]{0}', space=vmem, size = 0x2000, scoped, tag = 'input window, operand 3, single buffered']
    #allocation10 [shape = 's32[1]{0}', space=sflag, size = 0x4, scoped, tag = 'scoped memory for bert_encoder_forward.4']
    #allocation11 [shape = 'u8[8192]{0}', space=vmem, size = 0x2000, scoped, tag = 'input window, operand 4, single buffered']
    #allocation12 [shape = 'u8[8192]{0}', space=vmem, size = 0x2000, scoped, tag = 'input window, operand 5, single buffered']
    #allocation13 [shape = 's32[1]{0}', space=sflag, size = 0x4, scoped, tag = 'scoped memory for bert_encoder_forward.4']
    #allocation14 [shape = 'u8[512]{0}', space=vmem, size = 0x400, scoped, tag = 'input window, operand 6, single buffered']
    #allocation15 [shape = 'u8[512]{0}', space=vmem, size = 0x400, scoped, tag = 'input window, operand 7, single buffered']
    #allocation16 [shape = 's32[1]{0}', space=sflag, size = 0x4, scoped, tag = 'scoped memory for bert_encoder_forward.4']
    #allocation17 [shape = 'u8[512]{0}', space=vmem, size = 0x400, scoped, tag = 'input window, operand 8, single buffered']
    #allocation18 [shape = 'u8[8192]{0}', space=vmem, size = 0x2000, scoped, tag = 'input window, operand 9, single buffered']
    #allocation19 [shape = 's32[1]{0}', space=sflag, size = 0x4, scoped, tag = 'scoped memory for bert_encoder_forward.4']
    #allocation20 [shape = 'u8[512]{0}', space=vmem, size = 0x400, scoped, tag = 'input window, operand 10, single buffered']
    #allocation21 [shape = 'u8[512]{0}', space=vmem, size = 0x400, scoped, tag = 'input window, operand 11, single buffered']
    #allocation22 [shape = 's32[1]{0}', space=sflag, size = 0x4, scoped, tag = 'scoped memory for bert_encoder_forward.4']
    #allocation23 [shape = 'u8[512]{0}', space=vmem, size = 0x400, scoped, tag = 'input window, operand 12, single buffered']
    #allocation24 [shape = 'u8[8192]{0}', space=vmem, size = 0x2000, scoped, tag = 'input window, operand 13, single buffered']
    #allocation25 [shape = 's32[1]{0}', space=sflag, size = 0x4, scoped, tag = 'scoped memory for bert_encoder_forward.4']
    #allocation26 [shape = 'u8[512]{0}', space=vmem, size = 0x400, scoped, tag = 'input window, operand 14, single buffered']
    #allocation27 [shape = 'u8[16384]{0}', space=vmem, size = 0x4000, scoped, tag = 'input window, operand 15, single buffered']
    #allocation28 [shape = 's32[1]{0}', space=sflag, size = 0x4, scoped, tag = 'scoped memory for bert_encoder_forward.4']
    #allocation29 [shape = 'u8[512]{0}', space=vmem, size = 0x400, scoped, tag = 'input window, operand 16, single buffered']
    #allocation30 [shape = 'u8[512]{0}', space=vmem, size = 0x400, scoped, tag = 'input window, operand 17, single buffered']
    #allocation31 [shape = 's32[1]{0}', space=sflag, size = 0x4, scoped, tag = 'scoped memory for bert_encoder_forward.4']
    #allocation32 [shape = 'u8[512]{0}', space=vmem, size = 0x400, scoped, tag = 'input window, operand 18, single buffered']
    #allocation33 [shape = 'u8[4096]{0}', space=vmem, size = 0x1000, scoped, tag = 'output window, operand 0']
    %24 = vsyncpa [#allocation4], 0
    %s25 = scalar_lea.sflag [#allocation4], 1
    %26 = vsyncpa %s25, 0
    %27 = vsyncpa [#allocation7], 0
    %s28 = scalar_lea.sflag [#allocation7], 1
    %29 = vsyncpa %s28, 0
    %30 = vsyncpa [#allocation10], 0
    %31 = vsyncpa [#allocation13], 0
    %32 = vsyncpa [#allocation16], 0
    %33 = vsyncpa [#allocation19], 0
    %34 = vsyncpa [#allocation22], 0
    %35 = vsyncpa [#allocation25], 0
    %36 = vsyncpa [#allocation28], 0
    %37 = vsyncpa [#allocation31], 0
    %38 = vsyncpa [#allocation5], 0
    %s39 = scalar_lea.sflag [#allocation5], 1
    %40 = vsyncpa %s39, 0
    loop: start=0, step=1, limit=4
    $region2: #{bert_encoder_forward.4} parent=1 // loop_pre_header
      _
    $region3: #{bert_encoder_forward.4} parent=1 // loop_header
      %s42 = sphi 0, %s46
      %p43 = scmp.ge.s32.totalorder %s42, 4
      %s49 = sphi 0, %s61
      %s50 = sphi 0, %s57
      %s51 = sphi 0, %s49
      %s52 = sphi 0, %s50
      %s53 = sphi 0, %s51
      %s54 = sphi 0, %s52
      %s64 = sphi 0, %s66
      %s67 = sphi 0, %s64
      %s68 = sphi 0, %s67
      %s84 = sphi 0, %s68
      %s92 = sphi 0, %s94
      %s95 = sphi 0, %s92
      %s96 = sphi 0, %s95
      %s112 = sphi 0, %s96
      %s118 = sphi 0, %s120
      %s121 = sphi 0, %s118
      %s122 = sphi 0, %s121
      %s138 = sphi 0, %s122
      %s142 = sphi 0, %s142
      %s144 = sphi 0, %s142
      %s145 = sphi 0, %s144
      %s159 = sphi 0, %s145
      %s163 = sphi 0, %s163
      %s165 = sphi 0, %s163
      %s166 = sphi 0, %s165
      %s180 = sphi 0, %s166
      %s184 = sphi 0, %s184
      %s186 = sphi 0, %s184
      %s187 = sphi 0, %s186
      %s201 = sphi 0, %s187
      %s205 = sphi 0, %s205
      %s207 = sphi 0, %s205
      %s208 = sphi 0, %s207
      %s222 = sphi 0, %s208
      %s226 = sphi 0, %s226
      %s228 = sphi 0, %s226
      %s229 = sphi 0, %s228
      %s243 = sphi 0, %s229
      %s247 = sphi 0, %s247
      %s249 = sphi 0, %s247
      %s250 = sphi 0, %s249
      %s264 = sphi 0, %s250
      %s268 = sphi 0, %s268
      %s270 = sphi 0, %s268
      %s271 = sphi 0, %s270
      %s285 = sphi 0, %s271
      %s289 = sphi 0, %s289
      %s291 = sphi 0, %s289
      %s292 = sphi 0, %s291
      %s306 = sphi 0, %s292
      %s310 = sphi 0, %s310
      %s312 = sphi 0, %s310
      %s313 = sphi 0, %s312
      %s327 = sphi 0, %s313
      %s331 = sphi 0, %s331
      %s333 = sphi 0, %s331
      %s334 = sphi 0, %s333
      %s348 = sphi 0, %s334
      %s352 = sphi 0, %s352
      %s354 = sphi 0, %s352
      %s355 = sphi 0, %s354
      %s369 = sphi 0, %s355
      %s373 = sphi 0, %s373
      %s375 = sphi 0, %s373
      %s376 = sphi 0, %s375
      %s390 = sphi 0, %s376
      %s394 = sphi 0, %s394
      %s396 = sphi 0, %s394
      %s397 = sphi 0, %s396
      %s411 = sphi 0, %s397
      %s415 = sphi 0, %s415
      %s417 = sphi 0, %s415
      %s418 = sphi 0, %s417
      %s432 = sphi 0, %s418
      %s436 = sphi 0, %s436
      %s438 = sphi 0, %s436
      %s439 = sphi 0, %s438
      %s453 = sphi 0, %s439
      %s457 = sphi 0, %s457
      %s459 = sphi 0, %s457
      %s460 = sphi 0, %s459
      %s474 = sphi 0, %s460
      %s482 = sphi 0, %s484
      %s485 = sphi 0, %s482
      %s486 = sphi 0, %s485
      %s502 = sphi 0, %s486
    $region4: #{bert_encoder_forward.4} parent=1 // loop_header_branch
      %45 = sbr.rel (%p43) target = $region8
    $region5: #{bert_encoder_forward.4} parent=1 // loop_body
      %s47 = ssub.s32 %s42, 1
      %s48 = ssub.s32 %s42, 2
      %s55 = sadd.s32 1, %s50
      %p56 = scmp.ge.s32.totalorder %s55, 1
      %s57 = scalar_select %p56, 0, %s55
      %s58 = sadd.s32 1, %s49
      %s59 = scalar_select %p56, %s58, %s49
      %p60 = scmp.ge.s32.totalorder %s59, 2
      %s61 = scalar_select %p60, 0, %s59
      %s62 = ssub.s32 %s49, %s61
      %p63 = scmp.eq.s32.totalorder %s62, 0
      %s65 = sadd.s32 %s64, 1
      %s66 = scalar_select %p63, %s64, %s65
      %p69 = pneg %p63
      %p70 = scmp.eq.s32.totalorder %s42, 1
      %p71 = por %p69, %p70
      %p72 = scmp.ne.s32.totalorder %s64, %s67
      %p73 = scmp.eq.s32.totalorder %s42, 0
      %p74 = por %p72, %p73
      %p75 = scmp.ne.s32.totalorder %s64, %s67
      %p76 = scmp.eq.s32.totalorder %s47, 1
      %p77 = por %p75, %p76
      %p78 = scmp.ne.s32.totalorder %s67, %s68
      %p79 = scmp.eq.s32.totalorder %s47, 0
      %p80 = por %p78, %p79
      %p81 = scmp.ne.s32.totalorder %s67, %s68
      %p82 = scmp.eq.s32.totalorder %s48, 1
      %p83 = por %p81, %p82
      %p85 = scmp.ne.s32.totalorder %s68, %s84
      %p86 = scmp.eq.s32.totalorder %s48, 0
      %p87 = por %p85, %p86
      %s88 = ssub.s32 %s49, %s61
      %s89 = ssub.s32 %s50, %s57
      %s90 = sor.u32 %s88, %s89
      %p91 = scmp.eq.s32.totalorder %s90, 0
      %s93 = sadd.s32 %s92, 1
      %s94 = scalar_select %p91, %s92, %s93
      %p97 = pneg %p91
      %p98 = scmp.eq.s32.totalorder %s42, 1
      %p99 = por %p97, %p98
      %p100 = scmp.ne.s32.totalorder %s92, %s95
      %p101 = scmp.eq.s32.totalorder %s42, 0
      %p102 = por %p100, %p101
      %p103 = scmp.ne.s32.totalorder %s92, %s95
      %p104 = scmp.eq.s32.totalorder %s47, 1
      %p105 = por %p103, %p104
      %p106 = scmp.ne.s32.totalorder %s95, %s96
      %p107 = scmp.eq.s32.totalorder %s47, 0
      %p108 = por %p106, %p107
      %p109 = scmp.ne.s32.totalorder %s95, %s96
      %p110 = scmp.eq.s32.totalorder %s48, 1
      %p111 = por %p109, %p110
      %p113 = scmp.ne.s32.totalorder %s96, %s112
      %p114 = scmp.eq.s32.totalorder %s48, 0
      %p115 = por %p113, %p114
      %s116 = ssub.s32 %s49, %s61
      %p117 = scmp.eq.s32.totalorder %s116, 0
      %s119 = sadd.s32 %s118, 1
      %s120 = scalar_select %p117, %s118, %s119
      %p123 = pneg %p117
      %p124 = scmp.eq.s32.totalorder %s42, 1
      %p125 = por %p123, %p124
      %p126 = scmp.ne.s32.totalorder %s118, %s121
      %p127 = scmp.eq.s32.totalorder %s42, 0
      %p128 = por %p126, %p127
      %p129 = scmp.ne.s32.totalorder %s118, %s121
      %p130 = scmp.eq.s32.totalorder %s47, 1
      %p131 = por %p129, %p130
      %p132 = scmp.ne.s32.totalorder %s121, %s122
      %p133 = scmp.eq.s32.totalorder %s47, 0
      %p134 = por %p132, %p133
      %p135 = scmp.ne.s32.totalorder %s121, %s122
      %p136 = scmp.eq.s32.totalorder %s48, 1
      %p137 = por %p135, %p136
      %p139 = scmp.ne.s32.totalorder %s122, %s138
      %p140 = scmp.eq.s32.totalorder %s48, 0
      %p141 = por %p139, %p140
      %s143 = sadd.s32 %s142, 1
      %p146 = scmp.eq.s32.totalorder %s42, 1
      %p147 = scmp.ne.s32.totalorder %s142, %s144
      %p148 = scmp.eq.s32.totalorder %s42, 0
      %p149 = por %p147, %p148
      %p150 = scmp.ne.s32.totalorder %s142, %s144
      %p151 = scmp.eq.s32.totalorder %s47, 1
      %p152 = por %p150, %p151
      %p153 = scmp.ne.s32.totalorder %s144, %s145
      %p154 = scmp.eq.s32.totalorder %s47, 0
      %p155 = por %p153, %p154
      %p156 = scmp.ne.s32.totalorder %s144, %s145
      %p157 = scmp.eq.s32.totalorder %s48, 1
      %p158 = por %p156, %p157
      %p160 = scmp.ne.s32.totalorder %s145, %s159
      %p161 = scmp.eq.s32.totalorder %s48, 0
      %p162 = por %p160, %p161
      %s164 = sadd.s32 %s163, 1
      %p167 = scmp.eq.s32.totalorder %s42, 1
      %p168 = scmp.ne.s32.totalorder %s163, %s165
      %p169 = scmp.eq.s32.totalorder %s42, 0
      %p170 = por %p168, %p169
      %p171 = scmp.ne.s32.totalorder %s163, %s165
      %p172 = scmp.eq.s32.totalorder %s47, 1
      %p173 = por %p171, %p172
      %p174 = scmp.ne.s32.totalorder %s165, %s166
      %p175 = scmp.eq.s32.totalorder %s47, 0
      %p176 = por %p174, %p175
      %p177 = scmp.ne.s32.totalorder %s165, %s166
      %p178 = scmp.eq.s32.totalorder %s48, 1
      %p179 = por %p177, %p178
      %p181 = scmp.ne.s32.totalorder %s166, %s180
      %p182 = scmp.eq.s32.totalorder %s48, 0
      %p183 = por %p181, %p182
      %s185 = sadd.s32 %s184, 1
      %p188 = scmp.eq.s32.totalorder %s42, 1
      %p189 = scmp.ne.s32.totalorder %s184, %s186
      %p190 = scmp.eq.s32.totalorder %s42, 0
      %p191 = por %p189, %p190
      %p192 = scmp.ne.s32.totalorder %s184, %s186
      %p193 = scmp.eq.s32.totalorder %s47, 1
      %p194 = por %p192, %p193
      %p195 = scmp.ne.s32.totalorder %s186, %s187
      %p196 = scmp.eq.s32.totalorder %s47, 0
      %p197 = por %p195, %p196
      %p198 = scmp.ne.s32.totalorder %s186, %s187
      %p199 = scmp.eq.s32.totalorder %s48, 1
      %p200 = por %p198, %p199
      %p202 = scmp.ne.s32.totalorder %s187, %s201
      %p203 = scmp.eq.s32.totalorder %s48, 0
      %p204 = por %p202, %p203
      %s206 = sadd.s32 %s205, 1
      %p209 = scmp.eq.s32.totalorder %s42, 1
      %p210 = scmp.ne.s32.totalorder %s205, %s207
      %p211 = scmp.eq.s32.totalorder %s42, 0
      %p212 = por %p210, %p211
      %p213 = scmp.ne.s32.totalorder %s205, %s207
      %p214 = scmp.eq.s32.totalorder %s47, 1
      %p215 = por %p213, %p214
      %p216 = scmp.ne.s32.totalorder %s207, %s208
      %p217 = scmp.eq.s32.totalorder %s47, 0
      %p218 = por %p216, %p217
      %p219 = scmp.ne.s32.totalorder %s207, %s208
      %p220 = scmp.eq.s32.totalorder %s48, 1
      %p221 = por %p219, %p220
      %p223 = scmp.ne.s32.totalorder %s208, %s222
      %p224 = scmp.eq.s32.totalorder %s48, 0
      %p225 = por %p223, %p224
      %s227 = sadd.s32 %s226, 1
      %p230 = scmp.eq.s32.totalorder %s42, 1
      %p231 = scmp.ne.s32.totalorder %s226, %s228
      %p232 = scmp.eq.s32.totalorder %s42, 0
      %p233 = por %p231, %p232
      %p234 = scmp.ne.s32.totalorder %s226, %s228
      %p235 = scmp.eq.s32.totalorder %s47, 1
      %p236 = por %p234, %p235
      %p237 = scmp.ne.s32.totalorder %s228, %s229
      %p238 = scmp.eq.s32.totalorder %s47, 0
      %p239 = por %p237, %p238
      %p240 = scmp.ne.s32.totalorder %s228, %s229
      %p241 = scmp.eq.s32.totalorder %s48, 1
      %p242 = por %p240, %p241
      %p244 = scmp.ne.s32.totalorder %s229, %s243
      %p245 = scmp.eq.s32.totalorder %s48, 0
      %p246 = por %p244, %p245
      %s248 = sadd.s32 %s247, 1
      %p251 = scmp.eq.s32.totalorder %s42, 1
      %p252 = scmp.ne.s32.totalorder %s247, %s249
      %p253 = scmp.eq.s32.totalorder %s42, 0
      %p254 = por %p252, %p253
      %p255 = scmp.ne.s32.totalorder %s247, %s249
      %p256 = scmp.eq.s32.totalorder %s47, 1
      %p257 = por %p255, %p256
      %p258 = scmp.ne.s32.totalorder %s249, %s250
      %p259 = scmp.eq.s32.totalorder %s47, 0
      %p260 = por %p258, %p259
      %p261 = scmp.ne.s32.totalorder %s249, %s250
      %p262 = scmp.eq.s32.totalorder %s48, 1
      %p263 = por %p261, %p262
      %p265 = scmp.ne.s32.totalorder %s250, %s264
      %p266 = scmp.eq.s32.totalorder %s48, 0
      %p267 = por %p265, %p266
      %s269 = sadd.s32 %s268, 1
      %p272 = scmp.eq.s32.totalorder %s42, 1
      %p273 = scmp.ne.s32.totalorder %s268, %s270
      %p274 = scmp.eq.s32.totalorder %s42, 0
      %p275 = por %p273, %p274
      %p276 = scmp.ne.s32.totalorder %s268, %s270
      %p277 = scmp.eq.s32.totalorder %s47, 1
      %p278 = por %p276, %p277
      %p279 = scmp.ne.s32.totalorder %s270, %s271
      %p280 = scmp.eq.s32.totalorder %s47, 0
      %p281 = por %p279, %p280
      %p282 = scmp.ne.s32.totalorder %s270, %s271
      %p283 = scmp.eq.s32.totalorder %s48, 1
      %p284 = por %p282, %p283
      %p286 = scmp.ne.s32.totalorder %s271, %s285
      %p287 = scmp.eq.s32.totalorder %s48, 0
      %p288 = por %p286, %p287
      %s290 = sadd.s32 %s289, 1
      %p293 = scmp.eq.s32.totalorder %s42, 1
      %p294 = scmp.ne.s32.totalorder %s289, %s291
      %p295 = scmp.eq.s32.totalorder %s42, 0
      %p296 = por %p294, %p295
      %p297 = scmp.ne.s32.totalorder %s289, %s291
      %p298 = scmp.eq.s32.totalorder %s47, 1
      %p299 = por %p297, %p298
      %p300 = scmp.ne.s32.totalorder %s291, %s292
      %p301 = scmp.eq.s32.totalorder %s47, 0
      %p302 = por %p300, %p301
      %p303 = scmp.ne.s32.totalorder %s291, %s292
      %p304 = scmp.eq.s32.totalorder %s48, 1
      %p305 = por %p303, %p304
      %p307 = scmp.ne.s32.totalorder %s292, %s306
      %p308 = scmp.eq.s32.totalorder %s48, 0
      %p309 = por %p307, %p308
      %s311 = sadd.s32 %s310, 1
      %p314 = scmp.eq.s32.totalorder %s42, 1
      %p315 = scmp.ne.s32.totalorder %s310, %s312
      %p316 = scmp.eq.s32.totalorder %s42, 0
      %p317 = por %p315, %p316
      %p318 = scmp.ne.s32.totalorder %s310, %s312
      %p319 = scmp.eq.s32.totalorder %s47, 1
      %p320 = por %p318, %p319
      %p321 = scmp.ne.s32.totalorder %s312, %s313
      %p322 = scmp.eq.s32.totalorder %s47, 0
      %p323 = por %p321, %p322
      %p324 = scmp.ne.s32.totalorder %s312, %s313
      %p325 = scmp.eq.s32.totalorder %s48, 1
      %p326 = por %p324, %p325
      %p328 = scmp.ne.s32.totalorder %s313, %s327
      %p329 = scmp.eq.s32.totalorder %s48, 0
      %p330 = por %p328, %p329
      %s332 = sadd.s32 %s331, 1
      %p335 = scmp.eq.s32.totalorder %s42, 1
      %p336 = scmp.ne.s32.totalorder %s331, %s333
      %p337 = scmp.eq.s32.totalorder %s42, 0
      %p338 = por %p336, %p337
      %p339 = scmp.ne.s32.totalorder %s331, %s333
      %p340 = scmp.eq.s32.totalorder %s47, 1
      %p341 = por %p339, %p340
      %p342 = scmp.ne.s32.totalorder %s333, %s334
      %p343 = scmp.eq.s32.totalorder %s47, 0
      %p344 = por %p342, %p343
      %p345 = scmp.ne.s32.totalorder %s333, %s334
      %p346 = scmp.eq.s32.totalorder %s48, 1
      %p347 = por %p345, %p346
      %p349 = scmp.ne.s32.totalorder %s334, %s348
      %p350 = scmp.eq.s32.totalorder %s48, 0
      %p351 = por %p349, %p350
      %s353 = sadd.s32 %s352, 1
      %p356 = scmp.eq.s32.totalorder %s42, 1
      %p357 = scmp.ne.s32.totalorder %s352, %s354
      %p358 = scmp.eq.s32.totalorder %s42, 0
      %p359 = por %p357, %p358
      %p360 = scmp.ne.s32.totalorder %s352, %s354
      %p361 = scmp.eq.s32.totalorder %s47, 1
      %p362 = por %p360, %p361
      %p363 = scmp.ne.s32.totalorder %s354, %s355
      %p364 = scmp.eq.s32.totalorder %s47, 0
      %p365 = por %p363, %p364
      %p366 = scmp.ne.s32.totalorder %s354, %s355
      %p367 = scmp.eq.s32.totalorder %s48, 1
      %p368 = por %p366, %p367
      %p370 = scmp.ne.s32.totalorder %s355, %s369
      %p371 = scmp.eq.s32.totalorder %s48, 0
      %p372 = por %p370, %p371
      %s374 = sadd.s32 %s373, 1
      %p377 = scmp.eq.s32.totalorder %s42, 1
      %p378 = scmp.ne.s32.totalorder %s373, %s375
      %p379 = scmp.eq.s32.totalorder %s42, 0
      %p380 = por %p378, %p379
      %p381 = scmp.ne.s32.totalorder %s373, %s375
      %p382 = scmp.eq.s32.totalorder %s47, 1
      %p383 = por %p381, %p382
      %p384 = scmp.ne.s32.totalorder %s375, %s376
      %p385 = scmp.eq.s32.totalorder %s47, 0
      %p386 = por %p384, %p385
      %p387 = scmp.ne.s32.totalorder %s375, %s376
      %p388 = scmp.eq.s32.totalorder %s48, 1
      %p389 = por %p387, %p388
      %p391 = scmp.ne.s32.totalorder %s376, %s390
      %p392 = scmp.eq.s32.totalorder %s48, 0
      %p393 = por %p391, %p392
      %s395 = sadd.s32 %s394, 1
      %p398 = scmp.eq.s32.totalorder %s42, 1
      %p399 = scmp.ne.s32.totalorder %s394, %s396
      %p400 = scmp.eq.s32.totalorder %s42, 0
      %p401 = por %p399, %p400
      %p402 = scmp.ne.s32.totalorder %s394, %s396
      %p403 = scmp.eq.s32.totalorder %s47, 1
      %p404 = por %p402, %p403
      %p405 = scmp.ne.s32.totalorder %s396, %s397
      %p406 = scmp.eq.s32.totalorder %s47, 0
      %p407 = por %p405, %p406
      %p408 = scmp.ne.s32.totalorder %s396, %s397
      %p409 = scmp.eq.s32.totalorder %s48, 1
      %p410 = por %p408, %p409
      %p412 = scmp.ne.s32.totalorder %s397, %s411
      %p413 = scmp.eq.s32.totalorder %s48, 0
      %p414 = por %p412, %p413
      %s416 = sadd.s32 %s415, 1
      %p419 = scmp.eq.s32.totalorder %s42, 1
      %p420 = scmp.ne.s32.totalorder %s415, %s417
      %p421 = scmp.eq.s32.totalorder %s42, 0
      %p422 = por %p420, %p421
      %p423 = scmp.ne.s32.totalorder %s415, %s417
      %p424 = scmp.eq.s32.totalorder %s47, 1
      %p425 = por %p423, %p424
      %p426 = scmp.ne.s32.totalorder %s417, %s418
      %p427 = scmp.eq.s32.totalorder %s47, 0
      %p428 = por %p426, %p427
      %p429 = scmp.ne.s32.totalorder %s417, %s418
      %p430 = scmp.eq.s32.totalorder %s48, 1
      %p431 = por %p429, %p430
      %p433 = scmp.ne.s32.totalorder %s418, %s432
      %p434 = scmp.eq.s32.totalorder %s48, 0
      %p435 = por %p433, %p434
      %s437 = sadd.s32 %s436, 1
      %p440 = scmp.eq.s32.totalorder %s42, 1
      %p441 = scmp.ne.s32.totalorder %s436, %s438
      %p442 = scmp.eq.s32.totalorder %s42, 0
      %p443 = por %p441, %p442
      %p444 = scmp.ne.s32.totalorder %s436, %s438
      %p445 = scmp.eq.s32.totalorder %s47, 1
      %p446 = por %p444, %p445
      %p447 = scmp.ne.s32.totalorder %s438, %s439
      %p448 = scmp.eq.s32.totalorder %s47, 0
      %p449 = por %p447, %p448
      %p450 = scmp.ne.s32.totalorder %s438, %s439
      %p451 = scmp.eq.s32.totalorder %s48, 1
      %p452 = por %p450, %p451
      %p454 = scmp.ne.s32.totalorder %s439, %s453
      %p455 = scmp.eq.s32.totalorder %s48, 0
      %p456 = por %p454, %p455
      %s458 = sadd.s32 %s457, 1
      %p461 = scmp.eq.s32.totalorder %s42, 1
      %p462 = scmp.ne.s32.totalorder %s457, %s459
      %p463 = scmp.eq.s32.totalorder %s42, 0
      %p464 = por %p462, %p463
      %p465 = scmp.ne.s32.totalorder %s457, %s459
      %p466 = scmp.eq.s32.totalorder %s47, 1
      %p467 = por %p465, %p466
      %p468 = scmp.ne.s32.totalorder %s459, %s460
      %p469 = scmp.eq.s32.totalorder %s47, 0
      %p470 = por %p468, %p469
      %p471 = scmp.ne.s32.totalorder %s459, %s460
      %p472 = scmp.eq.s32.totalorder %s48, 1
      %p473 = por %p471, %p472
      %p475 = scmp.ne.s32.totalorder %s460, %s474
      %p476 = scmp.eq.s32.totalorder %s48, 0
      %p477 = por %p475, %p476
      %s478 = ssub.s32 %s49, %s61
      %s479 = ssub.s32 %s50, %s57
      %s480 = sor.u32 %s478, %s479
      %p481 = scmp.eq.s32.totalorder %s480, 0
      %s483 = sadd.s32 %s482, 1
      %s484 = scalar_select %p481, %s482, %s483
      %p487 = pneg %p481
      %p488 = scmp.eq.s32.totalorder %s42, 1
      %p489 = por %p487, %p488
      %p490 = scmp.ne.s32.totalorder %s482, %s485
      %p491 = scmp.eq.s32.totalorder %s42, 0
      %p492 = por %p490, %p491
      %p493 = scmp.ne.s32.totalorder %s482, %s485
      %p494 = scmp.eq.s32.totalorder %s47, 1
      %p495 = por %p493, %p494
      %p496 = scmp.ne.s32.totalorder %s485, %s486
      %p497 = scmp.eq.s32.totalorder %s47, 0
      %p498 = por %p496, %p497
      %p499 = scmp.ne.s32.totalorder %s485, %s486
      %p500 = scmp.eq.s32.totalorder %s48, 1
      %p501 = por %p499, %p500
      %p503 = scmp.ne.s32.totalorder %s486, %s502
      %p504 = scmp.eq.s32.totalorder %s48, 0
      %p505 = por %p503, %p504
      %p506 = scmp.le.s32.totalorder 1, %s42
      %p507 = scmp.lt.s32.totalorder %s42, 3
      %p508 = pnand %p506, %p507
      %p509 = pneg %p508
      // Predicated region
      $region9: #{bert_encoder_forward.4} parent=5 // pred_check
        _
      $region10: #{bert_encoder_forward.4} parent=5 // pred_check_branch
        %511 = sbr.rel (%p508) target = $region12
      $region11: #{bert_encoder_forward.4} parent=5 // pred_region
        %s512 = ssub.s32 %s42, 1
        // Predicated region
        $region13: #{bert_encoder_forward.4} parent=11 // pred_check
          %p513 = pneg %p155
        $region14: #{bert_encoder_forward.4} parent=11 // pred_check_branch
          %515 = sbr.rel (%p513) target = $region16
        $region15: #{bert_encoder_forward.4} parent=11 // pred_region
          %s517 = ssub.s32 256, 256
          %518 = vsyncadd [#allocation10], %s517
          %s519 = sshll.u32 [#allocation9], 4
          %s520 = int_to_ptr.vmem [resolvable:$true] %s519
          %525 = dma.hbm_to_vmem [thread:$0]  %s3, 256, %s520, [#allocation10], 64, 64, 4
        $region16: #{bert_encoder_forward.4} parent=11 // pred_fallthru
          _
        // Predicated region
        $region17: #{bert_encoder_forward.4} parent=11 // pred_check
          %p526 = pneg %p176
        $region18: #{bert_encoder_forward.4} parent=11 // pred_check_branch
          %528 = sbr.rel (%p526) target = $region20
        $region19: #{bert_encoder_forward.4} parent=11 // pred_region
          %s530 = ssub.s32 256, 256
          %531 = vsyncadd [#allocation10], %s530
          %s532 = sshll.u32 [#allocation11], 4
          %s533 = int_to_ptr.vmem [resolvable:$true] %s532
          %538 = dma.hbm_to_vmem [thread:$0]  %s4, 256, %s533, [#allocation10], 64, 64, 4
        $region20: #{bert_encoder_forward.4} parent=11 // pred_fallthru
          _
        // Predicated region
        $region21: #{bert_encoder_forward.4} parent=11 // pred_check
          %p539 = pneg %p197
        $region22: #{bert_encoder_forward.4} parent=11 // pred_check_branch
          %541 = sbr.rel (%p539) target = $region24
        $region23: #{bert_encoder_forward.4} parent=11 // pred_region
          %s543 = ssub.s32 256, 256
          %544 = vsyncadd [#allocation13], %s543
          %s545 = sshll.u32 [#allocation12], 4
          %s546 = int_to_ptr.vmem [resolvable:$true] %s545
          %551 = dma.hbm_to_vmem [thread:$0]  %s5, 256, %s546, [#allocation13], 64, 64, 4
        $region24: #{bert_encoder_forward.4} parent=11 // pred_fallthru
          _
        // Predicated region
        $region25: #{bert_encoder_forward.4} parent=11 // pred_check
          %p552 = pneg %p218
        $region26: #{bert_encoder_forward.4} parent=11 // pred_check_branch
          %554 = sbr.rel (%p552) target = $region28
        $region27: #{bert_encoder_forward.4} parent=11 // pred_region
          %s556 = ssub.s32 16, 16
          %557 = vsyncadd [#allocation13], %s556
          %s559 = sshll.u32 [#allocation14], 4
          %s560 = int_to_ptr.vmem [resolvable:$true] %s559
          %562 = dma.hbm_to_vmem [thread:$0]  %s6, 16, %s560, [#allocation13]
        $region28: #{bert_encoder_forward.4} parent=11 // pred_fallthru
          _
        // Predicated region
        $region29: #{bert_encoder_forward.4} parent=11 // pred_check
          %p563 = pneg %p239
        $region30: #{bert_encoder_forward.4} parent=11 // pred_check_branch
          %565 = sbr.rel (%p563) target = $region32
        $region31: #{bert_encoder_forward.4} parent=11 // pred_region
          %s567 = ssub.s32 16, 16
          %568 = vsyncadd [#allocation16], %s567
          %s570 = sshll.u32 [#allocation15], 4
          %s571 = int_to_ptr.vmem [resolvable:$true] %s570
          %573 = dma.hbm_to_vmem [thread:$0]  %s7, 16, %s571, [#allocation16]
        $region32: #{bert_encoder_forward.4} parent=11 // pred_fallthru
          _
        // Predicated region
        $region33: #{bert_encoder_forward.4} parent=11 // pred_check
          %p574 = pneg %p260
        $region34: #{bert_encoder_forward.4} parent=11 // pred_check_branch
          %576 = sbr.rel (%p574) target = $region36
        $region35: #{bert_encoder_forward.4} parent=11 // pred_region
          %s578 = ssub.s32 16, 16
          %579 = vsyncadd [#allocation16], %s578
          %s581 = sshll.u32 [#allocation17], 4
          %s582 = int_to_ptr.vmem [resolvable:$true] %s581
          %584 = dma.hbm_to_vmem [thread:$0]  %s8, 16, %s582, [#allocation16]
        $region36: #{bert_encoder_forward.4} parent=11 // pred_fallthru
          _
        // Predicated region
        $region37: #{bert_encoder_forward.4} parent=11 // pred_check
          %p585 = pneg %p281
        $region38: #{bert_encoder_forward.4} parent=11 // pred_check_branch
          %587 = sbr.rel (%p585) target = $region40
        $region39: #{bert_encoder_forward.4} parent=11 // pred_region
          %s589 = ssub.s32 256, 256
          %590 = vsyncadd [#allocation19], %s589
          %s591 = sshll.u32 [#allocation18], 4
          %s592 = int_to_ptr.vmem [resolvable:$true] %s591
          %597 = dma.hbm_to_vmem [thread:$0]  %s9, 256, %s592, [#allocation19], 64, 64, 4
        $region40: #{bert_encoder_forward.4} parent=11 // pred_fallthru
          _
        // Predicated region
        $region41: #{bert_encoder_forward.4} parent=11 // pred_check
          %p598 = pneg %p302
        $region42: #{bert_encoder_forward.4} parent=11 // pred_check_branch
          %600 = sbr.rel (%p598) target = $region44
        $region43: #{bert_encoder_forward.4} parent=11 // pred_region
          %s602 = ssub.s32 16, 16
          %603 = vsyncadd [#allocation19], %s602
          %s605 = sshll.u32 [#allocation20], 4
          %s606 = int_to_ptr.vmem [resolvable:$true] %s605
          %608 = dma.hbm_to_vmem [thread:$0]  %s10, 16, %s606, [#allocation19]
        $region44: #{bert_encoder_forward.4} parent=11 // pred_fallthru
          _
        // Predicated region
        $region45: #{bert_encoder_forward.4} parent=11 // pred_check
          %p609 = pneg %p323
        $region46: #{bert_encoder_forward.4} parent=11 // pred_check_branch
          %611 = sbr.rel (%p609) target = $region48
        $region47: #{bert_encoder_forward.4} parent=11 // pred_region
          %s613 = ssub.s32 16, 16
          %614 = vsyncadd [#allocation22], %s613
          %s616 = sshll.u32 [#allocation21], 4
          %s617 = int_to_ptr.vmem [resolvable:$true] %s616
          %619 = dma.hbm_to_vmem [thread:$0]  %s11, 16, %s617, [#allocation22]
        $region48: #{bert_encoder_forward.4} parent=11 // pred_fallthru
          _
        // Predicated region
        $region49: #{bert_encoder_forward.4} parent=11 // pred_check
          %p620 = pneg %p344
        $region50: #{bert_encoder_forward.4} parent=11 // pred_check_branch
          %622 = sbr.rel (%p620) target = $region52
        $region51: #{bert_encoder_forward.4} parent=11 // pred_region
          %s624 = ssub.s32 16, 16
          %625 = vsyncadd [#allocation22], %s624
          %s627 = sshll.u32 [#allocation23], 4
          %s628 = int_to_ptr.vmem [resolvable:$true] %s627
          %630 = dma.hbm_to_vmem [thread:$0]  %s12, 16, %s628, [#allocation22]
        $region52: #{bert_encoder_forward.4} parent=11 // pred_fallthru
          _
        // Predicated region
        $region53: #{bert_encoder_forward.4} parent=11 // pred_check
          %p631 = pneg %p365
        $region54: #{bert_encoder_forward.4} parent=11 // pred_check_branch
          %633 = sbr.rel (%p631) target = $region56
        $region55: #{bert_encoder_forward.4} parent=11 // pred_region
          %s635 = ssub.s32 256, 256
          %636 = vsyncadd [#allocation25], %s635
          %s637 = sshll.u32 [#allocation24], 4
          %s638 = int_to_ptr.vmem [resolvable:$true] %s637
          %643 = dma.hbm_to_vmem [thread:$0]  %s13, 256, %s638, [#allocation25], 64, 64, 4
        $region56: #{bert_encoder_forward.4} parent=11 // pred_fallthru
          _
        // Predicated region
        $region57: #{bert_encoder_forward.4} parent=11 // pred_check
          %p644 = pneg %p386
        $region58: #{bert_encoder_forward.4} parent=11 // pred_check_branch
          %646 = sbr.rel (%p644) target = $region60
        $region59: #{bert_encoder_forward.4} parent=11 // pred_region
          %s648 = ssub.s32 16, 16
          %649 = vsyncadd [#allocation25], %s648
          %s651 = sshll.u32 [#allocation26], 4
          %s652 = int_to_ptr.vmem [resolvable:$true] %s651
          %654 = dma.hbm_to_vmem [thread:$0]  %s14, 16, %s652, [#allocation25]
        $region60: #{bert_encoder_forward.4} parent=11 // pred_fallthru
          _
        // Predicated region
        $region61: #{bert_encoder_forward.4} parent=11 // pred_check
          %p655 = pneg %p407
        $region62: #{bert_encoder_forward.4} parent=11 // pred_check_branch
          %657 = sbr.rel (%p655) target = $region64
        $region63: #{bert_encoder_forward.4} parent=11 // pred_region
          %s659 = ssub.s32 512, 512
          %660 = vsyncadd [#allocation28], %s659
          %s661 = sshll.u32 [#allocation27], 4
          %s662 = int_to_ptr.vmem [resolvable:$true] %s661
          %667 = dma.hbm_to_vmem [thread:$0]  %s15, 512, %s662, [#allocation28], 64, 64, 4
        $region64: #{bert_encoder_forward.4} parent=11 // pred_fallthru
          _
        // Predicated region
        $region65: #{bert_encoder_forward.4} parent=11 // pred_check
          %p668 = pneg %p428
        $region66: #{bert_encoder_forward.4} parent=11 // pred_check_branch
          %670 = sbr.rel (%p668) target = $region68
        $region67: #{bert_encoder_forward.4} parent=11 // pred_region
          %s672 = ssub.s32 16, 16
          %673 = vsyncadd [#allocation28], %s672
          %s675 = sshll.u32 [#allocation29], 4
          %s676 = int_to_ptr.vmem [resolvable:$true] %s675
          %678 = dma.hbm_to_vmem [thread:$0]  %s16, 16, %s676, [#allocation28]
        $region68: #{bert_encoder_forward.4} parent=11 // pred_fallthru
          _
        // Predicated region
        $region69: #{bert_encoder_forward.4} parent=11 // pred_check
          %p679 = pneg %p449
        $region70: #{bert_encoder_forward.4} parent=11 // pred_check_branch
          %681 = sbr.rel (%p679) target = $region72
        $region71: #{bert_encoder_forward.4} parent=11 // pred_region
          %s683 = ssub.s32 16, 16
          %684 = vsyncadd [#allocation31], %s683
          %s686 = sshll.u32 [#allocation30], 4
          %s687 = int_to_ptr.vmem [resolvable:$true] %s686
          %689 = dma.hbm_to_vmem [thread:$0]  %s17, 16, %s687, [#allocation31]
        $region72: #{bert_encoder_forward.4} parent=11 // pred_fallthru
          _
        // Predicated region
        $region73: #{bert_encoder_forward.4} parent=11 // pred_check
          %p690 = pneg %p470
        $region74: #{bert_encoder_forward.4} parent=11 // pred_check_branch
          %692 = sbr.rel (%p690) target = $region76
        $region75: #{bert_encoder_forward.4} parent=11 // pred_region
          %s694 = ssub.s32 16, 16
          %695 = vsyncadd [#allocation31], %s694
          %s697 = sshll.u32 [#allocation32], 4
          %s698 = int_to_ptr.vmem [resolvable:$true] %s697
          %700 = dma.hbm_to_vmem [thread:$0]  %s18, 16, %s698, [#allocation31]
        $region76: #{bert_encoder_forward.4} parent=11 // pred_fallthru
          _
      $region12: #{bert_encoder_forward.4} parent=5 // pred_fallthru
        _
      %p701 = scmp.lt.s32.totalorder %s42, 2
      // Predicated region
      $region77: #{bert_encoder_forward.4} parent=5 // pred_check
        %p702 = pneg %p701
      $region78: #{bert_encoder_forward.4} parent=5 // pred_check_branch
        %704 = sbr.rel (%p702) target = $region80
      $region79: #{bert_encoder_forward.4} parent=5 // pred_region
        // Predicated region
        $region81: #{bert_encoder_forward.4} parent=79 // pred_check
          %p705 = pneg %p74
        $region82: #{bert_encoder_forward.4} parent=79 // pred_check_branch
          %707 = sbr.rel (%p705) target = $region84
        $region83: #{bert_encoder_forward.4} parent=79 // pred_region
          %s708 = sand.u32 %s64, 1
          %s709 = scalar_lea.sflag [#allocation4], %s708
          %s710 = sand.u32 %s64, 1
          %s711 = smul.addr %s710, 4
          %s712 = scalar_lea.vmem [#allocation3], %s711
          %s714 = ssub.s32 64, 64
          %715 = vsyncadd %s709, %s714
          %s716 = smul.addr %s49, 64
          %s717 = scalar_lea.hbm %s0, %s716
          %s719 = sshll.u32 %s712, 4
          %s720 = int_to_ptr.vmem [resolvable:$true] %s719
          %722 = dma.hbm_to_vmem [thread:$0]  %s717, 64, %s720, %s709
        $region84: #{bert_encoder_forward.4} parent=79 // pred_fallthru
          _
        // Predicated region
        $region85: #{bert_encoder_forward.4} parent=79 // pred_check
          %p723 = pneg %p102
        $region86: #{bert_encoder_forward.4} parent=79 // pred_check_branch
          %725 = sbr.rel (%p723) target = $region88
        $region87: #{bert_encoder_forward.4} parent=79 // pred_region
          %s726 = sand.u32 %s42, 1
          %s727 = scalar_lea.sflag [#allocation7], %s726
          %s728 = sand.u32 %s92, 1
          %s729 = smul.addr %s728, 4
          %s730 = scalar_lea.vmem [#allocation6], %s729
          %s732 = ssub.s32 64, 64
          %733 = vsyncadd %s727, %s732
          %s734 = sadd.s32 %s50, %s49
          %s735 = smul.addr %s734, 64
          %s736 = scalar_lea.hbm %s1, %s735
          %s738 = sshll.u32 %s730, 4
          %s739 = int_to_ptr.vmem [resolvable:$true] %s738
          %741 = dma.hbm_to_vmem [thread:$0]  %s736, 64, %s739, %s727
        $region88: #{bert_encoder_forward.4} parent=79 // pred_fallthru
          _
        // Predicated region
        $region89: #{bert_encoder_forward.4} parent=79 // pred_check
          %p742 = pneg %p128
        $region90: #{bert_encoder_forward.4} parent=79 // pred_check_branch
          %744 = sbr.rel (%p742) target = $region92
        $region91: #{bert_encoder_forward.4} parent=79 // pred_region
          %s745 = sand.u32 %s42, 1
          %s746 = scalar_lea.sflag [#allocation7], %s745
          %s747 = sand.u32 %s118, 1
          %s748 = scalar_lea.vmem [#allocation8], %s747
          %s750 = ssub.s32 16, 16
          %751 = vsyncadd %s746, %s750
          %s752 = smul.addr %s49, 16
          %s753 = scalar_lea.hbm %s2, %s752
          %s755 = sshll.u32 %s748, 4
          %s756 = int_to_ptr.vmem [resolvable:$true] %s755
          %758 = dma.hbm_to_vmem [thread:$0]  %s753, 16, %s756, %s746
        $region92: #{bert_encoder_forward.4} parent=79 // pred_fallthru
          _
      $region80: #{bert_encoder_forward.4} parent=5 // pred_fallthru
        _
      %p759 = scmp.le.s32.totalorder 1, %s42
      %p760 = scmp.lt.s32.totalorder %s42, 3
      %p761 = pnand %p759, %p760
      %p762 = pneg %p761
      // Predicated region
      $region93: #{bert_encoder_forward.4} parent=5 // pred_check
        _
      $region94: #{bert_encoder_forward.4} parent=5 // pred_check_branch
        %764 = sbr.rel (%p761) target = $region96
      $region95: #{bert_encoder_forward.4} parent=5 // pred_region
        %s765 = ssub.s32 %s42, 1
        %s766 = sand.u32 %s67, 1
        %s767 = scalar_lea.sflag [#allocation4], %s766
        %s768 = sand.u32 %s67, 1
        %s769 = smul.addr %s768, 4
        %s770 = scalar_lea.vmem [#allocation3], %s769
        // Predicated region
        $region97: #{bert_encoder_forward.4} parent=95 // pred_check
          %p771 = pneg %p80
        $region98: #{bert_encoder_forward.4} parent=95 // pred_check_branch
          %773 = sbr.rel (%p771) target = $region100
        $region99: #{bert_encoder_forward.4} parent=95 // pred_region
          %774 = dma.done %s767, 64
        $region100: #{bert_encoder_forward.4} parent=95 // pred_fallthru
          _
        %s775 = sand.u32 %s47, 1
        %s776 = scalar_lea.sflag [#allocation7], %s775
        %s777 = sand.u32 %s95, 1
        %s778 = smul.addr %s777, 4
        %s779 = scalar_lea.vmem [#allocation6], %s778
        // Predicated region
        $region101: #{bert_encoder_forward.4} parent=95 // pred_check
          %p780 = pneg %p108
        $region102: #{bert_encoder_forward.4} parent=95 // pred_check_branch
          %782 = sbr.rel (%p780) target = $region104
        $region103: #{bert_encoder_forward.4} parent=95 // pred_region
          %783 = dma.done %s776, 64
        $region104: #{bert_encoder_forward.4} parent=95 // pred_fallthru
          _
        %s784 = sand.u32 %s47, 1
        %s785 = scalar_lea.sflag [#allocation7], %s784
        %s786 = sand.u32 %s121, 1
        %s787 = scalar_lea.vmem [#allocation8], %s786
        // Predicated region
        $region105: #{bert_encoder_forward.4} parent=95 // pred_check
          %p788 = pneg %p134
        $region106: #{bert_encoder_forward.4} parent=95 // pred_check_branch
          %790 = sbr.rel (%p788) target = $region108
        $region107: #{bert_encoder_forward.4} parent=95 // pred_region
          %791 = dma.done %s785, 16
        $region108: #{bert_encoder_forward.4} parent=95 // pred_fallthru
          _
        // Predicated region
        $region109: #{bert_encoder_forward.4} parent=95 // pred_check
          %p792 = pneg %p155
        $region110: #{bert_encoder_forward.4} parent=95 // pred_check_branch
          %794 = sbr.rel (%p792) target = $region112
        $region111: #{bert_encoder_forward.4} parent=95 // pred_region
          %795 = dma.done [#allocation10], 256
        $region112: #{bert_encoder_forward.4} parent=95 // pred_fallthru
          _
        // Predicated region
        $region113: #{bert_encoder_forward.4} parent=95 // pred_check
          %p796 = pneg %p176
        $region114: #{bert_encoder_forward.4} parent=95 // pred_check_branch
          %798 = sbr.rel (%p796) target = $region116
        $region115: #{bert_encoder_forward.4} parent=95 // pred_region
          %799 = dma.done [#allocation10], 256
        $region116: #{bert_encoder_forward.4} parent=95 // pred_fallthru
          _
        // Predicated region
        $region117: #{bert_encoder_forward.4} parent=95 // pred_check
          %p800 = pneg %p197
        $region118: #{bert_encoder_forward.4} parent=95 // pred_check_branch
          %802 = sbr.rel (%p800) target = $region120
        $region119: #{bert_encoder_forward.4} parent=95 // pred_region
          %803 = dma.done [#allocation13], 256
        $region120: #{bert_encoder_forward.4} parent=95 // pred_fallthru
          _
        // Predicated region
        $region121: #{bert_encoder_forward.4} parent=95 // pred_check
          %p804 = pneg %p218
        $region122: #{bert_encoder_forward.4} parent=95 // pred_check_branch
          %806 = sbr.rel (%p804) target = $region124
        $region123: #{bert_encoder_forward.4} parent=95 // pred_region
          %807 = dma.done [#allocation13], 16
        $region124: #{bert_encoder_forward.4} parent=95 // pred_fallthru
          _
        // Predicated region
        $region125: #{bert_encoder_forward.4} parent=95 // pred_check
          %p808 = pneg %p239
        $region126: #{bert_encoder_forward.4} parent=95 // pred_check_branch
          %810 = sbr.rel (%p808) target = $region128
        $region127: #{bert_encoder_forward.4} parent=95 // pred_region
          %811 = dma.done [#allocation16], 16
        $region128: #{bert_encoder_forward.4} parent=95 // pred_fallthru
          _
        // Predicated region
        $region129: #{bert_encoder_forward.4} parent=95 // pred_check
          %p812 = pneg %p260
        $region130: #{bert_encoder_forward.4} parent=95 // pred_check_branch
          %814 = sbr.rel (%p812) target = $region132
        $region131: #{bert_encoder_forward.4} parent=95 // pred_region
          %815 = dma.done [#allocation16], 16
        $region132: #{bert_encoder_forward.4} parent=95 // pred_fallthru
          _
        // Predicated region
        $region133: #{bert_encoder_forward.4} parent=95 // pred_check
          %p816 = pneg %p281
        $region134: #{bert_encoder_forward.4} parent=95 // pred_check_branch
          %818 = sbr.rel (%p816) target = $region136
        $region135: #{bert_encoder_forward.4} parent=95 // pred_region
          %819 = dma.done [#allocation19], 256
        $region136: #{bert_encoder_forward.4} parent=95 // pred_fallthru
          _
        // Predicated region
        $region137: #{bert_encoder_forward.4} parent=95 // pred_check
          %p820 = pneg %p302
        $region138: #{bert_encoder_forward.4} parent=95 // pred_check_branch
          %822 = sbr.rel (%p820) target = $region140
        $region139: #{bert_encoder_forward.4} parent=95 // pred_region
          %823 = dma.done [#allocation19], 16
        $region140: #{bert_encoder_forward.4} parent=95 // pred_fallthru
          _
        // Predicated region
        $region141: #{bert_encoder_forward.4} parent=95 // pred_check
          %p824 = pneg %p323
        $region142: #{bert_encoder_forward.4} parent=95 // pred_check_branch
          %826 = sbr.rel (%p824) target = $region144
        $region143: #{bert_encoder_forward.4} parent=95 // pred_region
          %827 = dma.done [#allocation22], 16
        $region144: #{bert_encoder_forward.4} parent=95 // pred_fallthru
          _
        // Predicated region
        $region145: #{bert_encoder_forward.4} parent=95 // pred_check
          %p828 = pneg %p344
        $region146: #{bert_encoder_forward.4} parent=95 // pred_check_branch
          %830 = sbr.rel (%p828) target = $region148
        $region147: #{bert_encoder_forward.4} parent=95 // pred_region
          %831 = dma.done [#allocation22], 16
        $region148: #{bert_encoder_forward.4} parent=95 // pred_fallthru
          _
        // Predicated region
        $region149: #{bert_encoder_forward.4} parent=95 // pred_check
          %p832 = pneg %p365
        $region150: #{bert_encoder_forward.4} parent=95 // pred_check_branch
          %834 = sbr.rel (%p832) target = $region152
        $region151: #{bert_encoder_forward.4} parent=95 // pred_region
          %835 = dma.done [#allocation25], 256
        $region152: #{bert_encoder_forward.4} parent=95 // pred_fallthru
          _
        // Predicated region
        $region153: #{bert_encoder_forward.4} parent=95 // pred_check
          %p836 = pneg %p386
        $region154: #{bert_encoder_forward.4} parent=95 // pred_check_branch
          %838 = sbr.rel (%p836) target = $region156
        $region155: #{bert_encoder_forward.4} parent=95 // pred_region
          %839 = dma.done [#allocation25], 16
        $region156: #{bert_encoder_forward.4} parent=95 // pred_fallthru
          _
        // Predicated region
        $region157: #{bert_encoder_forward.4} parent=95 // pred_check
          %p840 = pneg %p407
        $region158: #{bert_encoder_forward.4} parent=95 // pred_check_branch
          %842 = sbr.rel (%p840) target = $region160
        $region159: #{bert_encoder_forward.4} parent=95 // pred_region
          %843 = dma.done [#allocation28], 512
        $region160: #{bert_encoder_forward.4} parent=95 // pred_fallthru
          _
        // Predicated region
        $region161: #{bert_encoder_forward.4} parent=95 // pred_check
          %p844 = pneg %p428
        $region162: #{bert_encoder_forward.4} parent=95 // pred_check_branch
          %846 = sbr.rel (%p844) target = $region164
        $region163: #{bert_encoder_forward.4} parent=95 // pred_region
          %847 = dma.done [#allocation28], 16
        $region164: #{bert_encoder_forward.4} parent=95 // pred_fallthru
          _
        // Predicated region
        $region165: #{bert_encoder_forward.4} parent=95 // pred_check
          %p848 = pneg %p449
        $region166: #{bert_encoder_forward.4} parent=95 // pred_check_branch
          %850 = sbr.rel (%p848) target = $region168
        $region167: #{bert_encoder_forward.4} parent=95 // pred_region
          %851 = dma.done [#allocation31], 16
        $region168: #{bert_encoder_forward.4} parent=95 // pred_fallthru
          _
        // Predicated region
        $region169: #{bert_encoder_forward.4} parent=95 // pred_check
          %p852 = pneg %p470
        $region170: #{bert_encoder_forward.4} parent=95 // pred_check_branch
          %854 = sbr.rel (%p852) target = $region172
        $region171: #{bert_encoder_forward.4} parent=95 // pred_region
          %855 = dma.done [#allocation31], 16
        $region172: #{bert_encoder_forward.4} parent=95 // pred_fallthru
          _
        %s856 = sand.u32 %s67, 1
        %s857 = scalar_lea.sflag [#allocation4], %s856
        %s858 = sand.u32 %s67, 1
        %s859 = smul.addr %s858, 4
        %s860 = scalar_lea.vmem [#allocation3], %s859
        %p861 = pneg %p80
        %p862 = pneg %p77
        %s863 = sand.u32 %s47, 1
        %s864 = scalar_lea.sflag [#allocation7], %s863
        %s865 = sand.u32 %s95, 1
        %s866 = smul.addr %s865, 4
        %s867 = scalar_lea.vmem [#allocation6], %s866
        %p868 = pneg %p108
        %p869 = pneg %p105
        %s870 = sand.u32 %s47, 1
        %s871 = scalar_lea.sflag [#allocation7], %s870
        %s872 = sand.u32 %s121, 1
        %s873 = scalar_lea.vmem [#allocation8], %s872
        %p874 = pneg %p134
        %p875 = pneg %p131
        %p876 = pneg %p155
        %p877 = pneg %p152
        %p878 = pneg %p176
        %p879 = pneg %p173
        %p880 = pneg %p197
        %p881 = pneg %p194
        %p882 = pneg %p218
        %p883 = pneg %p215
        %p884 = pneg %p239
        %p885 = pneg %p236
        %p886 = pneg %p260
        %p887 = pneg %p257
        %p888 = pneg %p281
        %p889 = pneg %p278
        %p890 = pneg %p302
        %p891 = pneg %p299
        %p892 = pneg %p323
        %p893 = pneg %p320
        %p894 = pneg %p344
        %p895 = pneg %p341
        %p896 = pneg %p365
        %p897 = pneg %p362
        %p898 = pneg %p386
        %p899 = pneg %p383
        %p900 = pneg %p407
        %p901 = pneg %p404
        %p902 = pneg %p428
        %p903 = pneg %p425
        %p904 = pneg %p449
        %p905 = pneg %p446
        %p906 = pneg %p470
        %p907 = pneg %p467
        %p908 = pneg %p498
        %p909 = pneg %p495
        %s910 = sand.u32 %s485, 1
        %s911 = scalar_lea.sflag [#allocation5], %s910
        %s912 = sand.u32 %s485, 1
        %s913 = smul.addr %s912, 4
        %s914 = scalar_lea.vmem [#allocation33], %s913
        %v916 = vld [vmem:[%s779] sm:$0xf]
        %v917 = vld [vmem:[%s770] sm:$0xf]
        %v918 = vld [vmem:[%s787] sm:$0x1]
        %v919 = vld [vmem:[#allocation9] sm:$0xf]
        %v920 = vld [vmem:[#allocation9 + $0x4] sm:$0xf]
        %v921 = vld [vmem:[#allocation9 + $0x8] sm:$0xf]
        %v922 = vld [vmem:[#allocation9 + $0xc] sm:$0xf]
        %v923 = vld [vmem:[#allocation14] sm:$0x1]
        %v925 = vlaneseq
        %v926 = vshrl.u32 %v925, 7
        %v927 = vsub.s32 0, %v926
        %v928 = vrot.slane %v923, %v927
        %v934 = vunpack.c.l.b16 %v919
        %v935 = vunpack.c.l.b16 %v920
        %v936 = vunpack.c.l.b16 %v921
        %v937 = vunpack.c.l.b16 %v922
        %v938 = vpack.c.b16 %v935, %v934
        %v939 = vpack.c.b16 %v937, %v936
        %vm942 = vcmask 261120
        %v944 = vsel %vm942, %v916, 0
        %946 = vmatprep.subr.bf16.mxu0 0
        %947 = vmatpush1.bf16.msra.mxu0 %v938
        %948 = vmatprep.subr.bf16.mxu0 0
        %949 = vmatpush1.bf16.msra.mxu0 %v939
        %950 = vmatprep.subr.bf16.mxu0 0
        %951 = vmatpush1.bf16.msra.mxu0 0
        %952 = vmatprep.subr.bf16.mxu0 0
        %953 = vmatpush1.bf16.msra.mxu0 0
        %954 = vmatprep.subr.bf16.mxu0 0
        %955 = vmatpush1.bf16.msra.mxu0 0
        %956 = vmatprep.subr.bf16.mxu0 0
        %957 = vmatpush1.bf16.msra.mxu0 0
        %958 = vmatprep.subr.bf16.mxu0 0
        %959 = vmatpush1.bf16.msra.mxu0 0
        %960 = vmatprep.subr.bf16.mxu0 0
        %961 = vmatpush1.bf16.msra.mxu0 0
        %962 = vmatprep.subr.bf16.mxu0 0
        %963 = vmatpush1.bf16.msra.mxu0 0
        %964 = vmatprep.subr.bf16.mxu0 0
        %965 = vmatpush1.bf16.msra.mxu0 0
        %966 = vmatprep.subr.bf16.mxu0 0
        %967 = vmatpush1.bf16.msra.mxu0 0
        %968 = vmatprep.subr.bf16.mxu0 0
        %969 = vmatpush1.bf16.msra.mxu0 0
        %970 = vmatprep.subr.bf16.mxu0 0
        %971 = vmatpush1.bf16.msra.mxu0 0
        %972 = vmatprep.subr.bf16.mxu0 0
        %973 = vmatpush1.bf16.msra.mxu0 0
        %974 = vmatprep.subr.bf16.mxu0 0
        %975 = vmatpush1.bf16.msra.mxu0 0
        %976 = vmatprep.subr.bf16.mxu0 0
        %977 = vmatpush1.bf16.msra.mxu0 0
        %978 = vmatprep.mubr.bf16.mxu0 0
        %979 = vmatmul.mubr.bf16.gmra.mrb[0].mxu0 %v944
        %v980 = vpop.f32.mrb[0].mxu0
        %v981 = vadd.f32 %v928, %v980
        %v982 = vpop.f32.mrb[0].mxu0
        %v983 = vpop.f32.mrb[0].mxu0
        %v984 = vpop.f32.mrb[0].mxu0
        %985 = vdwg.mxu0
        %v986 = vpack.c.bf16 %v981, %v981
        %v987 = vld [vmem:[#allocation11] sm:$0xf]
        %v988 = vld [vmem:[#allocation11 + $0x4] sm:$0xf]
        %v989 = vld [vmem:[#allocation11 + $0x8] sm:$0xf]
        %v990 = vld [vmem:[#allocation11 + $0xc] sm:$0xf]
        %v991 = vld [vmem:[#allocation15] sm:$0x1]
        %v993 = vlaneseq
        %v994 = vshrl.u32 %v993, 7
        %v995 = vsub.s32 0, %v994
        %v996 = vrot.slane %v991, %v995
        %v1002 = vunpack.c.l.b16 %v987
        %v1003 = vunpack.c.l.b16 %v988
        %v1004 = vunpack.c.l.b16 %v989
        %v1005 = vunpack.c.l.b16 %v990
        %v1006 = vpack.c.b16 %v1003, %v1002
        %v1007 = vpack.c.b16 %v1005, %v1004
        %v1011 = vsel %vm942, %v917, 0
        %1013 = vmatprep.subr.bf16.mxu0 0
        %1014 = vmatpush1.bf16.msra.mxu0 %v1006
        %1015 = vmatprep.subr.bf16.mxu0 0
        %1016 = vmatpush1.bf16.msra.mxu0 %v1007
        %1017 = vmatprep.subr.bf16.mxu0 0
        %1018 = vmatpush1.bf16.msra.mxu0 0
        %1019 = vmatprep.subr.bf16.mxu0 0
        %1020 = vmatpush1.bf16.msra.mxu0 0
        %1021 = vmatprep.subr.bf16.mxu0 0
        %1022 = vmatpush1.bf16.msra.mxu0 0
        %1023 = vmatprep.subr.bf16.mxu0 0
        %1024 = vmatpush1.bf16.msra.mxu0 0
        %1025 = vmatprep.subr.bf16.mxu0 0
        %1026 = vmatpush1.bf16.msra.mxu0 0
        %1027 = vmatprep.subr.bf16.mxu0 0
        %1028 = vmatpush1.bf16.msra.mxu0 0
        %1029 = vmatprep.subr.bf16.mxu0 0
        %1030 = vmatpush1.bf16.msra.mxu0 0
        %1031 = vmatprep.subr.bf16.mxu0 0
        %1032 = vmatpush1.bf16.msra.mxu0 0
        %1033 = vmatprep.subr.bf16.mxu0 0
        %1034 = vmatpush1.bf16.msra.mxu0 0
        %1035 = vmatprep.subr.bf16.mxu0 0
        %1036 = vmatpush1.bf16.msra.mxu0 0
        %1037 = vmatprep.subr.bf16.mxu0 0
        %1038 = vmatpush1.bf16.msra.mxu0 0
        %1039 = vmatprep.subr.bf16.mxu0 0
        %1040 = vmatpush1.bf16.msra.mxu0 0
        %1041 = vmatprep.subr.bf16.mxu0 0
        %1042 = vmatpush1.bf16.msra.mxu0 0
        %1043 = vmatprep.subr.bf16.mxu0 0
        %1044 = vmatpush1.bf16.msra.mxu0 0
        %1045 = vmatprep.mubr.bf16.mxu0 0
        %1046 = vmatmul.mubr.bf16.gmra.mrb[0].mxu0 %v1011
        %v1047 = vpop.f32.mrb[0].mxu0
        %v1048 = vadd.f32 %v996, %v1047
        %v1049 = vpop.f32.mrb[0].mxu0
        %v1050 = vpop.f32.mrb[0].mxu0
        %v1051 = vpop.f32.mrb[0].mxu0
        %1052 = vdwg.mxu0
        %v1053 = vpack.c.bf16 %v1048, %v1048
        %v1054 = vld [vmem:[#allocation12] sm:$0xf]
        %v1055 = vld [vmem:[#allocation12 + $0x4] sm:$0xf]
        %v1056 = vld [vmem:[#allocation12 + $0x8] sm:$0xf]
        %v1057 = vld [vmem:[#allocation12 + $0xc] sm:$0xf]
        %v1058 = vld [vmem:[#allocation17] sm:$0x1]
        %v1060 = vlaneseq
        %v1061 = vshrl.u32 %v1060, 7
        %v1062 = vsub.s32 0, %v1061
        %v1063 = vrot.slane %v1058, %v1062
        %v1069 = vunpack.c.l.b16 %v1054
        %v1070 = vunpack.c.l.b16 %v1055
        %v1071 = vunpack.c.l.b16 %v1056
        %v1072 = vunpack.c.l.b16 %v1057
        %v1073 = vpack.c.b16 %v1070, %v1069
        %v1074 = vpack.c.b16 %v1072, %v1071
        %1077 = vmatprep.subr.bf16.mxu0 0
        %1078 = vmatpush1.bf16.msra.mxu0 %v1073
        %1079 = vmatprep.subr.bf16.mxu0 0
        %1080 = vmatpush1.bf16.msra.mxu0 %v1074
        %1081 = vmatprep.subr.bf16.mxu0 0
        %1082 = vmatpush1.bf16.msra.mxu0 0
        %1083 = vmatprep.subr.bf16.mxu0 0
        %1084 = vmatpush1.bf16.msra.mxu0 0
        %1085 = vmatprep.subr.bf16.mxu0 0
        %1086 = vmatpush1.bf16.msra.mxu0 0
        %1087 = vmatprep.subr.bf16.mxu0 0
        %1088 = vmatpush1.bf16.msra.mxu0 0
        %1089 = vmatprep.subr.bf16.mxu0 0
        %1090 = vmatpush1.bf16.msra.mxu0 0
        %1091 = vmatprep.subr.bf16.mxu0 0
        %1092 = vmatpush1.bf16.msra.mxu0 0
        %1093 = vmatprep.subr.bf16.mxu0 0
        %1094 = vmatpush1.bf16.msra.mxu0 0
        %1095 = vmatprep.subr.bf16.mxu0 0
        %1096 = vmatpush1.bf16.msra.mxu0 0
        %1097 = vmatprep.subr.bf16.mxu0 0
        %1098 = vmatpush1.bf16.msra.mxu0 0
        %1099 = vmatprep.subr.bf16.mxu0 0
        %1100 = vmatpush1.bf16.msra.mxu0 0
        %1101 = vmatprep.subr.bf16.mxu0 0
        %1102 = vmatpush1.bf16.msra.mxu0 0
        %1103 = vmatprep.subr.bf16.mxu0 0
        %1104 = vmatpush1.bf16.msra.mxu0 0
        %1105 = vmatprep.subr.bf16.mxu0 0
        %1106 = vmatpush1.bf16.msra.mxu0 0
        %1107 = vmatprep.subr.bf16.mxu0 0
        %1108 = vmatpush1.bf16.msra.mxu0 0
        %1109 = vmatprep.mubr.bf16.mxu0 0
        %1110 = vmatmul.mubr.bf16.gmra.mrb[0].mxu0 %v1011
        %v1111 = vpop.f32.mrb[0].mxu0
        %v1112 = vadd.f32 %v1063, %v1111
        %v1113 = vpop.f32.mrb[0].mxu0
        %v1114 = vpop.f32.mrb[0].mxu0
        %v1115 = vpop.f32.mrb[0].mxu0
        %1116 = vdwg.mxu0
        %v1117 = vpack.c.bf16 %v1112, %v1112
        %vm1118 = vcmask 64512
        %v1120 = vsel %vm1118, %v986, 0
        %v1123 = vsel %vm1118, %v1053, 0
        %1125 = vmatprep.subr.bf16.mxu0 0
        %1126 = vmatpush1.bf16.xpose.msra.mxu0 %v1123
        %1127 = vmatprep.subr.bf16.mxu0 0
        %1128 = vmatpush1.bf16.xpose.msra.mxu0 0
        %1129 = vmatprep.subr.bf16.mxu0 0
        %1130 = vmatpush1.bf16.xpose.msra.mxu0 0
        %1131 = vmatprep.subr.bf16.mxu0 0
        %1132 = vmatpush1.bf16.xpose.msra.mxu0 0
        %1133 = vmatprep.subr.bf16.mxu0 0
        %1134 = vmatpush1.bf16.xpose.msra.mxu0 0
        %1135 = vmatprep.subr.bf16.mxu0 0
        %1136 = vmatpush1.bf16.xpose.msra.mxu0 0
        %1137 = vmatprep.subr.bf16.mxu0 0
        %1138 = vmatpush1.bf16.xpose.msra.mxu0 0
        %1139 = vmatprep.subr.bf16.mxu0 0
        %1140 = vmatpush1.bf16.xpose.msra.mxu0 0
        %1141 = vmatprep.subr.bf16.mxu0 0
        %1142 = vmatpush1.bf16.xpose.msra.mxu0 0
        %1143 = vmatprep.subr.bf16.mxu0 0
        %1144 = vmatpush1.bf16.xpose.msra.mxu0 0
        %1145 = vmatprep.subr.bf16.mxu0 0
        %1146 = vmatpush1.bf16.xpose.msra.mxu0 0
        %1147 = vmatprep.subr.bf16.mxu0 0
        %1148 = vmatpush1.bf16.xpose.msra.mxu0 0
        %1149 = vmatprep.subr.bf16.mxu0 0
        %1150 = vmatpush1.bf16.xpose.msra.mxu0 0
        %1151 = vmatprep.subr.bf16.mxu0 0
        %1152 = vmatpush1.bf16.xpose.msra.mxu0 0
        %1153 = vmatprep.subr.bf16.mxu0 0
        %1154 = vmatpush1.bf16.xpose.msra.mxu0 0
        %1155 = vmatprep.subr.bf16.mxu0 0
        %1156 = vmatpush1.bf16.xpose.msra.mxu0 0
        %1157 = vmatprep.mubr.bf16.mxu0 0
        %1158 = vmatmul.mubr.bf16.gmra.mrb[0].mxu0 %v1120
        %v1159 = vpop.f32.mrb[0].mxu0
        %v1160 = vadd.f32 0.0, %v1159
        %v1161 = vpop.f32.mrb[0].mxu0
        %v1162 = vpop.f32.mrb[0].mxu0
        %v1163 = vpop.f32.mrb[0].mxu0
        %1164 = vdwg.mxu0
        %v1165 = vmul.f32 %v1160, 0.35355338
        %v1167 = vlaneseq
        %v1168 = vshrl.u32 %v1167, 7
        %v1169 = vsub.s32 0, %v1168
        %v1170 = vrot.slane %v918, %v1169
        %v1172 = vadd.f32 %v1165, %v1170
        %v1173 = vsel %vm1118, %v1172, -inf
        %1174 = vmax.xlane.f32.xlu0 %v1173
        %v1175 = vpop.xlane.xlu0 %1174
        %v1176 = vsub.f32 %v1172, %v1175
        %v1177 = vmul.f32 %v1176, 1.442695
        %v1178 = vpow.pop %v1177
        %v1179 = vsel %vm1118, %v1178, 0.0
        %1180 = vadd.xlane.f32.xlu0 %v1179
        %v1181 = vpop.xlane.xlu0 %1180
        %v1182 = vrcp.pop %v1181
        %v1183 = vmul.f32 %v1178, %v1182
        %v1184 = vpack.c.bf16 %v1183, %v1183
        %v1186 = vsel %vm1118, %v1184, 0
        %vm1188 = vcmask 1043456
        %v1190 = vsel %vm1188, %v1117, 0
        %1192 = vmatprep.subr.bf16.mxu0 0
        %1193 = vmatpush1.bf16.msra.mxu0 %v1190
        %1194 = vmatprep.subr.bf16.mxu0 0
        %1195 = vmatpush1.bf16.msra.mxu0 0
        %1196 = vmatprep.subr.bf16.mxu0 0
        %1197 = vmatpush1.bf16.msra.mxu0 0
        %1198 = vmatprep.subr.bf16.mxu0 0
        %1199 = vmatpush1.bf16.msra.mxu0 0
        %1200 = vmatprep.subr.bf16.mxu0 0
        %1201 = vmatpush1.bf16.msra.mxu0 0
        %1202 = vmatprep.subr.bf16.mxu0 0
        %1203 = vmatpush1.bf16.msra.mxu0 0
        %1204 = vmatprep.subr.bf16.mxu0 0
        %1205 = vmatpush1.bf16.msra.mxu0 0
        %1206 = vmatprep.subr.bf16.mxu0 0
        %1207 = vmatpush1.bf16.msra.mxu0 0
        %1208 = vmatprep.subr.bf16.mxu0 0
        %1209 = vmatpush1.bf16.msra.mxu0 0
        %1210 = vmatprep.subr.bf16.mxu0 0
        %1211 = vmatpush1.bf16.msra.mxu0 0
        %1212 = vmatprep.subr.bf16.mxu0 0
        %1213 = vmatpush1.bf16.msra.mxu0 0
        %1214 = vmatprep.subr.bf16.mxu0 0
        %1215 = vmatpush1.bf16.msra.mxu0 0
        %1216 = vmatprep.subr.bf16.mxu0 0
        %1217 = vmatpush1.bf16.msra.mxu0 0
        %1218 = vmatprep.subr.bf16.mxu0 0
        %1219 = vmatpush1.bf16.msra.mxu0 0
        %1220 = vmatprep.subr.bf16.mxu0 0
        %1221 = vmatpush1.bf16.msra.mxu0 0
        %1222 = vmatprep.subr.bf16.mxu0 0
        %1223 = vmatpush1.bf16.msra.mxu0 0
        %1224 = vmatprep.mubr.bf16.mxu0 0
        %1225 = vmatmul.mubr.bf16.gmra.mrb[0].mxu0 %v1186
        %v1226 = vpop.f32.mrb[0].mxu0
        %v1227 = vadd.f32 0.0, %v1226
        %v1228 = vpop.f32.mrb[0].mxu0
        %v1229 = vpop.f32.mrb[0].mxu0
        %v1230 = vpop.f32.mrb[0].mxu0
        %1231 = vdwg.mxu0
        %1232 = vst.msk [vmem:[#allocation2] sm:$0xff] %vm1118, %v1227
        %1234 = vrot.lane.b32.xlu0 %v986, 120
        %v1235 = vpop.permute.xlu0 %1234
        %1237 = vrot.lane.b32.xlu0 %v1053, 120
        %v1238 = vpop.permute.xlu0 %1237
        %v1240 = vsel %vm1118, %v1235, 0
        %v1243 = vsel %vm1118, %v1238, 0
        %1245 = vmatprep.subr.bf16.mxu0 0
        %1246 = vmatpush1.bf16.xpose.msra.mxu0 %v1243
        %1247 = vmatprep.subr.bf16.mxu0 0
        %1248 = vmatpush1.bf16.xpose.msra.mxu0 0
        %1249 = vmatprep.subr.bf16.mxu0 0
        %1250 = vmatpush1.bf16.xpose.msra.mxu0 0
        %1251 = vmatprep.subr.bf16.mxu0 0
        %1252 = vmatpush1.bf16.xpose.msra.mxu0 0
        %1253 = vmatprep.subr.bf16.mxu0 0
        %1254 = vmatpush1.bf16.xpose.msra.mxu0 0
        %1255 = vmatprep.subr.bf16.mxu0 0
        %1256 = vmatpush1.bf16.xpose.msra.mxu0 0
        %1257 = vmatprep.subr.bf16.mxu0 0
        %1258 = vmatpush1.bf16.xpose.msra.mxu0 0
        %1259 = vmatprep.subr.bf16.mxu0 0
        %1260 = vmatpush1.bf16.xpose.msra.mxu0 0
        %1261 = vmatprep.subr.bf16.mxu0 0
        %1262 = vmatpush1.bf16.xpose.msra.mxu0 0
        %1263 = vmatprep.subr.bf16.mxu0 0
        %1264 = vmatpush1.bf16.xpose.msra.mxu0 0
        %1265 = vmatprep.subr.bf16.mxu0 0
        %1266 = vmatpush1.bf16.xpose.msra.mxu0 0
        %1267 = vmatprep.subr.bf16.mxu0 0
        %1268 = vmatpush1.bf16.xpose.msra.mxu0 0
        %1269 = vmatprep.subr.bf16.mxu0 0
        %1270 = vmatpush1.bf16.xpose.msra.mxu0 0
        %1271 = vmatprep.subr.bf16.mxu0 0
        %1272 = vmatpush1.bf16.xpose.msra.mxu0 0
        %1273 = vmatprep.subr.bf16.mxu0 0
        %1274 = vmatpush1.bf16.xpose.msra.mxu0 0
        %1275 = vmatprep.subr.bf16.mxu0 0
        %1276 = vmatpush1.bf16.xpose.msra.mxu0 0
        %1277 = vmatprep.mubr.bf16.mxu0 0
        %1278 = vmatmul.mubr.bf16.gmra.mrb[0].mxu0 %v1240
        %v1279 = vpop.f32.mrb[0].mxu0
        %v1280 = vadd.f32 0.0, %v1279
        %v1281 = vpop.f32.mrb[0].mxu0
        %v1282 = vpop.f32.mrb[0].mxu0
        %v1283 = vpop.f32.mrb[0].mxu0
        %1284 = vdwg.mxu0
        %v1285 = vmul.f32 %v1280, 0.35355338
        %v1286 = vadd.f32 %v1285, %v1170
        %v1287 = vsel %vm1118, %v1286, -inf
        %1288 = vmax.xlane.f32.xlu0 %v1287
        %v1289 = vpop.xlane.xlu0 %1288
        %v1290 = vsub.f32 %v1286, %v1289
        %v1291 = vmul.f32 %v1290, 1.442695
        %v1292 = vpow.pop %v1291
        %v1293 = vsel %vm1118, %v1292, 0.0
        %1294 = vadd.xlane.f32.xlu0 %v1293
        %v1295 = vpop.xlane.xlu0 %1294
        %v1296 = vrcp.pop %v1295
        %v1297 = vmul.f32 %v1292, %v1296
        %v1298 = vpack.c.bf16 %v1297, %v1297
        %1300 = vrot.lane.b32.xlu0 %v1117, 120
        %v1301 = vpop.permute.xlu0 %1300
        %v1303 = vsel %vm1118, %v1298, 0
        %v1306 = vsel %vm1188, %v1301, 0
        %1308 = vmatprep.subr.bf16.mxu0 0
        %1309 = vmatpush1.bf16.msra.mxu0 %v1306
        %1310 = vmatprep.subr.bf16.mxu0 0
        %1311 = vmatpush1.bf16.msra.mxu0 0
        %1312 = vmatprep.subr.bf16.mxu0 0
        %1313 = vmatpush1.bf16.msra.mxu0 0
        %1314 = vmatprep.subr.bf16.mxu0 0
        %1315 = vmatpush1.bf16.msra.mxu0 0
        %1316 = vmatprep.subr.bf16.mxu0 0
        %1317 = vmatpush1.bf16.msra.mxu0 0
        %1318 = vmatprep.subr.bf16.mxu0 0
        %1319 = vmatpush1.bf16.msra.mxu0 0
        %1320 = vmatprep.subr.bf16.mxu0 0
        %1321 = vmatpush1.bf16.msra.mxu0 0
        %1322 = vmatprep.subr.bf16.mxu0 0
        %1323 = vmatpush1.bf16.msra.mxu0 0
        %1324 = vmatprep.subr.bf16.mxu0 0
        %1325 = vmatpush1.bf16.msra.mxu0 0
        %1326 = vmatprep.subr.bf16.mxu0 0
        %1327 = vmatpush1.bf16.msra.mxu0 0
        %1328 = vmatprep.subr.bf16.mxu0 0
        %1329 = vmatpush1.bf16.msra.mxu0 0
        %1330 = vmatprep.subr.bf16.mxu0 0
        %1331 = vmatpush1.bf16.msra.mxu0 0
        %1332 = vmatprep.subr.bf16.mxu0 0
        %1333 = vmatpush1.bf16.msra.mxu0 0
        %1334 = vmatprep.subr.bf16.mxu0 0
        %1335 = vmatpush1.bf16.msra.mxu0 0
        %1336 = vmatprep.subr.bf16.mxu0 0
        %1337 = vmatpush1.bf16.msra.mxu0 0
        %1338 = vmatprep.subr.bf16.mxu0 0
        %1339 = vmatpush1.bf16.msra.mxu0 0
        %1340 = vmatprep.mubr.bf16.mxu0 0
        %1341 = vmatmul.mubr.bf16.gmra.mrb[0].mxu0 %v1303
        %v1342 = vpop.f32.mrb[0].mxu0
        %v1343 = vadd.f32 0.0, %v1342
        %v1344 = vpop.f32.mrb[0].mxu0
        %v1345 = vpop.f32.mrb[0].mxu0
        %v1346 = vpop.f32.mrb[0].mxu0
        %1347 = vdwg.mxu0
        %1349 = vrot.lane.b32.xlu0 %v1343, 8
        %v1350 = vpop.permute.xlu0 %1349
        %vm1352 = vcmask 130112
        %1353 = vst.msk [vmem:[#allocation2] sm:$0xff] %vm1352, %v1350
        %1354 = vrot.lane.b32.xlu0 %v986, 112
        %v1355 = vpop.permute.xlu0 %1354
        %1356 = vrot.lane.b32.xlu0 %v1053, 112
        %v1357 = vpop.permute.xlu0 %1356
        %v1359 = vsel %vm1118, %v1355, 0
        %v1362 = vsel %vm1118, %v1357, 0
        %1364 = vmatprep.subr.bf16.mxu0 0
        %1365 = vmatpush1.bf16.xpose.msra.mxu0 %v1362
        %1366 = vmatprep.subr.bf16.mxu0 0
        %1367 = vmatpush1.bf16.xpose.msra.mxu0 0
        %1368 = vmatprep.subr.bf16.mxu0 0
        %1369 = vmatpush1.bf16.xpose.msra.mxu0 0
        %1370 = vmatprep.subr.bf16.mxu0 0
        %1371 = vmatpush1.bf16.xpose.msra.mxu0 0
        %1372 = vmatprep.subr.bf16.mxu0 0
        %1373 = vmatpush1.bf16.xpose.msra.mxu0 0
        %1374 = vmatprep.subr.bf16.mxu0 0
        %1375 = vmatpush1.bf16.xpose.msra.mxu0 0
        %1376 = vmatprep.subr.bf16.mxu0 0
        %1377 = vmatpush1.bf16.xpose.msra.mxu0 0
        %1378 = vmatprep.subr.bf16.mxu0 0
        %1379 = vmatpush1.bf16.xpose.msra.mxu0 0
        %1380 = vmatprep.subr.bf16.mxu0 0
        %1381 = vmatpush1.bf16.xpose.msra.mxu0 0
        %1382 = vmatprep.subr.bf16.mxu0 0
        %1383 = vmatpush1.bf16.xpose.msra.mxu0 0
        %1384 = vmatprep.subr.bf16.mxu0 0
        %1385 = vmatpush1.bf16.xpose.msra.mxu0 0
        %1386 = vmatprep.subr.bf16.mxu0 0
        %1387 = vmatpush1.bf16.xpose.msra.mxu0 0
        %1388 = vmatprep.subr.bf16.mxu0 0
        %1389 = vmatpush1.bf16.xpose.msra.mxu0 0
        %1390 = vmatprep.subr.bf16.mxu0 0
        %1391 = vmatpush1.bf16.xpose.msra.mxu0 0
        %1392 = vmatprep.subr.bf16.mxu0 0
        %1393 = vmatpush1.bf16.xpose.msra.mxu0 0
        %1394 = vmatprep.subr.bf16.mxu0 0
        %1395 = vmatpush1.bf16.xpose.msra.mxu0 0
        %1396 = vmatprep.mubr.bf16.mxu0 0
        %1397 = vmatmul.mubr.bf16.gmra.mrb[0].mxu0 %v1359
        %v1398 = vpop.f32.mrb[0].mxu0
        %v1399 = vadd.f32 0.0, %v1398
        %v1400 = vpop.f32.mrb[0].mxu0
        %v1401 = vpop.f32.mrb[0].mxu0
        %v1402 = vpop.f32.mrb[0].mxu0
        %1403 = vdwg.mxu0
        %v1404 = vmul.f32 %v1399, 0.35355338
        %v1405 = vadd.f32 %v1404, %v1170
        %v1406 = vsel %vm1118, %v1405, -inf
        %1407 = vmax.xlane.f32.xlu0 %v1406
        %v1408 = vpop.xlane.xlu0 %1407
        %v1409 = vsub.f32 %v1405, %v1408
        %v1410 = vmul.f32 %v1409, 1.442695
        %v1411 = vpow.pop %v1410
        %v1412 = vsel %vm1118, %v1411, 0.0
        %1413 = vadd.xlane.f32.xlu0 %v1412
        %v1414 = vpop.xlane.xlu0 %1413
        %v1415 = vrcp.pop %v1414
        %v1416 = vmul.f32 %v1411, %v1415
        %v1417 = vpack.c.bf16 %v1416, %v1416
        %1418 = vrot.lane.b32.xlu0 %v1117, 112
        %v1419 = vpop.permute.xlu0 %1418
        %v1421 = vsel %vm1118, %v1417, 0
        %v1424 = vsel %vm1188, %v1419, 0
        %1426 = vmatprep.subr.bf16.mxu0 0
        %1427 = vmatpush1.bf16.msra.mxu0 %v1424
        %1428 = vmatprep.subr.bf16.mxu0 0
        %1429 = vmatpush1.bf16.msra.mxu0 0
        %1430 = vmatprep.subr.bf16.mxu0 0
        %1431 = vmatpush1.bf16.msra.mxu0 0
        %1432 = vmatprep.subr.bf16.mxu0 0
        %1433 = vmatpush1.bf16.msra.mxu0 0
        %1434 = vmatprep.subr.bf16.mxu0 0
        %1435 = vmatpush1.bf16.msra.mxu0 0
        %1436 = vmatprep.subr.bf16.mxu0 0
        %1437 = vmatpush1.bf16.msra.mxu0 0
        %1438 = vmatprep.subr.bf16.mxu0 0
        %1439 = vmatpush1.bf16.msra.mxu0 0
        %1440 = vmatprep.subr.bf16.mxu0 0
        %1441 = vmatpush1.bf16.msra.mxu0 0
        %1442 = vmatprep.subr.bf16.mxu0 0
        %1443 = vmatpush1.bf16.msra.mxu0 0
        %1444 = vmatprep.subr.bf16.mxu0 0
        %1445 = vmatpush1.bf16.msra.mxu0 0
        %1446 = vmatprep.subr.bf16.mxu0 0
        %1447 = vmatpush1.bf16.msra.mxu0 0
        %1448 = vmatprep.subr.bf16.mxu0 0
        %1449 = vmatpush1.bf16.msra.mxu0 0
        %1450 = vmatprep.subr.bf16.mxu0 0
        %1451 = vmatpush1.bf16.msra.mxu0 0
        %1452 = vmatprep.subr.bf16.mxu0 0
        %1453 = vmatpush1.bf16.msra.mxu0 0
        %1454 = vmatprep.subr.bf16.mxu0 0
        %1455 = vmatpush1.bf16.msra.mxu0 0
        %1456 = vmatprep.subr.bf16.mxu0 0
        %1457 = vmatpush1.bf16.msra.mxu0 0
        %1458 = vmatprep.mubr.bf16.mxu0 0
        %1459 = vmatmul.mubr.bf16.gmra.mrb[0].mxu0 %v1421
        %v1460 = vpop.f32.mrb[0].mxu0
        %v1461 = vadd.f32 0.0, %v1460
        %v1462 = vpop.f32.mrb[0].mxu0
        %v1463 = vpop.f32.mrb[0].mxu0
        %v1464 = vpop.f32.mrb[0].mxu0
        %1465 = vdwg.mxu0
        %1467 = vrot.lane.b32.xlu0 %v1461, 16
        %v1468 = vpop.permute.xlu0 %1467
        %vm1470 = vcmask 195712
        %1471 = vst.msk [vmem:[#allocation2] sm:$0xff] %vm1470, %v1468
        %1472 = vrot.lane.b32.xlu0 %v986, 104
        %v1473 = vpop.permute.xlu0 %1472
        %1474 = vrot.lane.b32.xlu0 %v1053, 104
        %v1475 = vpop.permute.xlu0 %1474
        %v1477 = vsel %vm1118, %v1473, 0
        %v1480 = vsel %vm1118, %v1475, 0
        %1482 = vmatprep.subr.bf16.mxu0 0
        %1483 = vmatpush1.bf16.xpose.msra.mxu0 %v1480
        %1484 = vmatprep.subr.bf16.mxu0 0
        %1485 = vmatpush1.bf16.xpose.msra.mxu0 0
        %1486 = vmatprep.subr.bf16.mxu0 0
        %1487 = vmatpush1.bf16.xpose.msra.mxu0 0
        %1488 = vmatprep.subr.bf16.mxu0 0
        %1489 = vmatpush1.bf16.xpose.msra.mxu0 0
        %1490 = vmatprep.subr.bf16.mxu0 0
        %1491 = vmatpush1.bf16.xpose.msra.mxu0 0
        %1492 = vmatprep.subr.bf16.mxu0 0
        %1493 = vmatpush1.bf16.xpose.msra.mxu0 0
        %1494 = vmatprep.subr.bf16.mxu0 0
        %1495 = vmatpush1.bf16.xpose.msra.mxu0 0
        %1496 = vmatprep.subr.bf16.mxu0 0
        %1497 = vmatpush1.bf16.xpose.msra.mxu0 0
        %1498 = vmatprep.subr.bf16.mxu0 0
        %1499 = vmatpush1.bf16.xpose.msra.mxu0 0
        %1500 = vmatprep.subr.bf16.mxu0 0
        %1501 = vmatpush1.bf16.xpose.msra.mxu0 0
        %1502 = vmatprep.subr.bf16.mxu0 0
        %1503 = vmatpush1.bf16.xpose.msra.mxu0 0
        %1504 = vmatprep.subr.bf16.mxu0 0
        %1505 = vmatpush1.bf16.xpose.msra.mxu0 0
        %1506 = vmatprep.subr.bf16.mxu0 0
        %1507 = vmatpush1.bf16.xpose.msra.mxu0 0
        %1508 = vmatprep.subr.bf16.mxu0 0
        %1509 = vmatpush1.bf16.xpose.msra.mxu0 0
        %1510 = vmatprep.subr.bf16.mxu0 0
        %1511 = vmatpush1.bf16.xpose.msra.mxu0 0
        %1512 = vmatprep.subr.bf16.mxu0 0
        %1513 = vmatpush1.bf16.xpose.msra.mxu0 0
        %1514 = vmatprep.mubr.bf16.mxu0 0
        %1515 = vmatmul.mubr.bf16.gmra.mrb[0].mxu0 %v1477
        %v1516 = vpop.f32.mrb[0].mxu0
        %v1517 = vadd.f32 0.0, %v1516
        %v1518 = vpop.f32.mrb[0].mxu0
        %v1519 = vpop.f32.mrb[0].mxu0
        %v1520 = vpop.f32.mrb[0].mxu0
        %1521 = vdwg.mxu0
        %v1522 = vmul.f32 %v1517, 0.35355338
        %v1523 = vadd.f32 %v1522, %v1170
        %v1524 = vsel %vm1118, %v1523, -inf
        %1525 = vmax.xlane.f32.xlu0 %v1524
        %v1526 = vpop.xlane.xlu0 %1525
        %v1527 = vsub.f32 %v1523, %v1526
        %v1528 = vmul.f32 %v1527, 1.442695
        %v1529 = vpow.pop %v1528
        %v1530 = vsel %vm1118, %v1529, 0.0
        %1531 = vadd.xlane.f32.xlu0 %v1530
        %v1532 = vpop.xlane.xlu0 %1531
        %v1533 = vrcp.pop %v1532
        %v1534 = vmul.f32 %v1529, %v1533
        %v1535 = vpack.c.bf16 %v1534, %v1534
        %1536 = vrot.lane.b32.xlu0 %v1117, 104
        %v1537 = vpop.permute.xlu0 %1536
        %v1539 = vsel %vm1118, %v1535, 0
        %v1542 = vsel %vm1188, %v1537, 0
        %1544 = vmatprep.subr.bf16.mxu0 0
        %1545 = vmatpush1.bf16.msra.mxu0 %v1542
        %1546 = vmatprep.subr.bf16.mxu0 0
        %1547 = vmatpush1.bf16.msra.mxu0 0
        %1548 = vmatprep.subr.bf16.mxu0 0
        %1549 = vmatpush1.bf16.msra.mxu0 0
        %1550 = vmatprep.subr.bf16.mxu0 0
        %1551 = vmatpush1.bf16.msra.mxu0 0
        %1552 = vmatprep.subr.bf16.mxu0 0
        %1553 = vmatpush1.bf16.msra.mxu0 0
        %1554 = vmatprep.subr.bf16.mxu0 0
        %1555 = vmatpush1.bf16.msra.mxu0 0
        %1556 = vmatprep.subr.bf16.mxu0 0
        %1557 = vmatpush1.bf16.msra.mxu0 0
        %1558 = vmatprep.subr.bf16.mxu0 0
        %1559 = vmatpush1.bf16.msra.mxu0 0
        %1560 = vmatprep.subr.bf16.mxu0 0
        %1561 = vmatpush1.bf16.msra.mxu0 0
        %1562 = vmatprep.subr.bf16.mxu0 0
        %1563 = vmatpush1.bf16.msra.mxu0 0
        %1564 = vmatprep.subr.bf16.mxu0 0
        %1565 = vmatpush1.bf16.msra.mxu0 0
        %1566 = vmatprep.subr.bf16.mxu0 0
        %1567 = vmatpush1.bf16.msra.mxu0 0
        %1568 = vmatprep.subr.bf16.mxu0 0
        %1569 = vmatpush1.bf16.msra.mxu0 0
        %1570 = vmatprep.subr.bf16.mxu0 0
        %1571 = vmatpush1.bf16.msra.mxu0 0
        %1572 = vmatprep.subr.bf16.mxu0 0
        %1573 = vmatpush1.bf16.msra.mxu0 0
        %1574 = vmatprep.subr.bf16.mxu0 0
        %1575 = vmatpush1.bf16.msra.mxu0 0
        %1576 = vmatprep.mubr.bf16.mxu0 0
        %1577 = vmatmul.mubr.bf16.gmra.mrb[0].mxu0 %v1539
        %v1578 = vpop.f32.mrb[0].mxu0
        %v1579 = vadd.f32 0.0, %v1578
        %v1580 = vpop.f32.mrb[0].mxu0
        %v1581 = vpop.f32.mrb[0].mxu0
        %v1582 = vpop.f32.mrb[0].mxu0
        %1583 = vdwg.mxu0
        %1585 = vrot.lane.b32.xlu0 %v1579, 24
        %v1586 = vpop.permute.xlu0 %1585
        %vm1588 = vcmask 261312
        %1589 = vst.msk [vmem:[#allocation2] sm:$0xff] %vm1588, %v1586
        %v1590 = vld [vmem:[#allocation2] sm:$0xff]
        %v1591 = vld [vmem:[#allocation18] sm:$0xf]
        %v1592 = vld [vmem:[#allocation18 + $0x4] sm:$0xf]
        %v1593 = vld [vmem:[#allocation18 + $0x8] sm:$0xf]
        %v1594 = vld [vmem:[#allocation18 + $0xc] sm:$0xf]
        %v1595 = vpack.c.bf16 %v1590, %v1590
        %v1596 = vld [vmem:[#allocation20] sm:$0x1]
        %v1598 = vlaneseq
        %v1599 = vshrl.u32 %v1598, 7
        %v1600 = vsub.s32 0, %v1599
        %v1601 = vrot.slane %v1596, %v1600
        %v1607 = vunpack.c.l.b16 %v1591
        %v1608 = vunpack.c.l.b16 %v1592
        %v1609 = vunpack.c.l.b16 %v1593
        %v1610 = vunpack.c.l.b16 %v1594
        %v1611 = vpack.c.b16 %v1608, %v1607
        %v1612 = vpack.c.b16 %v1610, %v1609
        %v1616 = vsel %vm942, %v1595, 0
        %1618 = vmatprep.subr.bf16.mxu0 0
        %1619 = vmatpush1.bf16.msra.mxu0 %v1611
        %1620 = vmatprep.subr.bf16.mxu0 0
        %1621 = vmatpush1.bf16.msra.mxu0 %v1612
        %1622 = vmatprep.subr.bf16.mxu0 0
        %1623 = vmatpush1.bf16.msra.mxu0 0
        %1624 = vmatprep.subr.bf16.mxu0 0
        %1625 = vmatpush1.bf16.msra.mxu0 0
        %1626 = vmatprep.subr.bf16.mxu0 0
        %1627 = vmatpush1.bf16.msra.mxu0 0
        %1628 = vmatprep.subr.bf16.mxu0 0
        %1629 = vmatpush1.bf16.msra.mxu0 0
        %1630 = vmatprep.subr.bf16.mxu0 0
        %1631 = vmatpush1.bf16.msra.mxu0 0
        %1632 = vmatprep.subr.bf16.mxu0 0
        %1633 = vmatpush1.bf16.msra.mxu0 0
        %1634 = vmatprep.subr.bf16.mxu0 0
        %1635 = vmatpush1.bf16.msra.mxu0 0
        %1636 = vmatprep.subr.bf16.mxu0 0
        %1637 = vmatpush1.bf16.msra.mxu0 0
        %1638 = vmatprep.subr.bf16.mxu0 0
        %1639 = vmatpush1.bf16.msra.mxu0 0
        %1640 = vmatprep.subr.bf16.mxu0 0
        %1641 = vmatpush1.bf16.msra.mxu0 0
        %1642 = vmatprep.subr.bf16.mxu0 0
        %1643 = vmatpush1.bf16.msra.mxu0 0
        %1644 = vmatprep.subr.bf16.mxu0 0
        %1645 = vmatpush1.bf16.msra.mxu0 0
        %1646 = vmatprep.subr.bf16.mxu0 0
        %1647 = vmatpush1.bf16.msra.mxu0 0
        %1648 = vmatprep.subr.bf16.mxu0 0
        %1649 = vmatpush1.bf16.msra.mxu0 0
        %1650 = vmatprep.mubr.bf16.mxu0 0
        %1651 = vmatmul.mubr.bf16.gmra.mrb[0].mxu0 %v1616
        %v1652 = vpop.f32.mrb[0].mxu0
        %v1653 = vadd.f32 %v1601, %v1652
        %v1654 = vpop.f32.mrb[0].mxu0
        %v1655 = vpop.f32.mrb[0].mxu0
        %v1656 = vpop.f32.mrb[0].mxu0
        %1657 = vdwg.mxu0
        %v1658 = vunpack.c.l.bf16 %v916
        %v1659 = vadd.f32 %v1658, %v1653
        %v1660 = vld [vmem:[#allocation21] sm:$0x1]
        %v1661 = vld [vmem:[#allocation23] sm:$0x1]
        %v1662 = vsel %vm942, %v1659, 0.0
        %1663 = vadd.xlane.f32.xlu0 %v1662
        %v1664 = vpop.xlane.xlu0 %1663
        %v1665 = vrcp.pop 32.0
        %v1666 = vmul.f32 %v1664, %v1665
        %v1667 = vsub.f32 %v1659, %v1666
        %v1668 = vmul.f32 %v1667, %v1667
        %v1669 = vsel %vm942, %v1668, 0.0
        %1670 = vadd.xlane.f32.xlu0 %v1669
        %v1671 = vpop.xlane.xlu0 %1670
        %v1672 = vmul.f32 %v1671, %v1665
        %v1673 = vadd.f32 %v1672, 1e-05
        %v1674 = vrsqrt.pop %v1673
        %v1675 = vmul.f32 %v1667, %v1674
        %v1677 = vlaneseq
        %v1678 = vshrl.u32 %v1677, 7
        %v1679 = vsub.s32 0, %v1678
        %v1680 = vrot.slane %v1660, %v1679
        %v1682 = vmul.f32 %v1675, %v1680
        %v1684 = vlaneseq
        %v1685 = vshrl.u32 %v1684, 7
        %v1686 = vsub.s32 0, %v1685
        %v1687 = vrot.slane %v1661, %v1686
        %v1689 = vadd.f32 %v1682, %v1687
        %v1690 = vld [vmem:[#allocation24] sm:$0xf]
        %v1691 = vld [vmem:[#allocation24 + $0x4] sm:$0xf]
        %v1692 = vld [vmem:[#allocation24 + $0x8] sm:$0xf]
        %v1693 = vld [vmem:[#allocation24 + $0xc] sm:$0xf]
        %v1694 = vpack.c.bf16 %v1689, %v1689
        %v1695 = vld [vmem:[#allocation26] sm:$0x1]
        %v1697 = vlaneseq
        %v1698 = vshrl.u32 %v1697, 7
        %v1699 = vsub.s32 0, %v1698
        %v1700 = vrot.slane %v1695, %v1699
        %v1706 = vunpack.c.l.b16 %v1690
        %v1707 = vunpack.c.l.b16 %v1691
        %v1708 = vunpack.c.l.b16 %v1692
        %v1709 = vunpack.c.l.b16 %v1693
        %v1710 = vpack.c.b16 %v1707, %v1706
        %v1711 = vpack.c.b16 %v1709, %v1708
        %v1715 = vsel %vm942, %v1694, 0
        %1717 = vmatprep.subr.bf16.mxu0 0
        %1718 = vmatpush1.bf16.msra.mxu0 %v1710
        %1719 = vmatprep.subr.bf16.mxu0 0
        %1720 = vmatpush1.bf16.msra.mxu0 %v1711
        %1721 = vmatprep.subr.bf16.mxu0 0
        %1722 = vmatpush1.bf16.msra.mxu0 0
        %1723 = vmatprep.subr.bf16.mxu0 0
        %1724 = vmatpush1.bf16.msra.mxu0 0
        %1725 = vmatprep.subr.bf16.mxu0 0
        %1726 = vmatpush1.bf16.msra.mxu0 0
        %1727 = vmatprep.subr.bf16.mxu0 0
        %1728 = vmatpush1.bf16.msra.mxu0 0
        %1729 = vmatprep.subr.bf16.mxu0 0
        %1730 = vmatpush1.bf16.msra.mxu0 0
        %1731 = vmatprep.subr.bf16.mxu0 0
        %1732 = vmatpush1.bf16.msra.mxu0 0
        %1733 = vmatprep.subr.bf16.mxu0 0
        %1734 = vmatpush1.bf16.msra.mxu0 0
        %1735 = vmatprep.subr.bf16.mxu0 0
        %1736 = vmatpush1.bf16.msra.mxu0 0
        %1737 = vmatprep.subr.bf16.mxu0 0
        %1738 = vmatpush1.bf16.msra.mxu0 0
        %1739 = vmatprep.subr.bf16.mxu0 0
        %1740 = vmatpush1.bf16.msra.mxu0 0
        %1741 = vmatprep.subr.bf16.mxu0 0
        %1742 = vmatpush1.bf16.msra.mxu0 0
        %1743 = vmatprep.subr.bf16.mxu0 0
        %1744 = vmatpush1.bf16.msra.mxu0 0
        %1745 = vmatprep.subr.bf16.mxu0 0
        %1746 = vmatpush1.bf16.msra.mxu0 0
        %1747 = vmatprep.subr.bf16.mxu0 0
        %1748 = vmatpush1.bf16.msra.mxu0 0
        %1749 = vmatprep.mubr.bf16.mxu0 0
        %1750 = vmatmul.mubr.bf16.gmra.mrb[0].mxu0 %v1715
        %v1751 = vpop.f32.mrb[0].mxu0
        %v1752 = vadd.f32 %v1700, %v1751
        %v1753 = vpop.f32.mrb[0].mxu0
        %v1754 = vpop.f32.mrb[0].mxu0
        %v1755 = vpop.f32.mrb[0].mxu0
        %1756 = vdwg.mxu0
        %v1757 = vmax.f32 %v1752, 0.0
        %v1758 = vld [vmem:[#allocation27] sm:$0xf]
        %v1759 = vld [vmem:[#allocation27 + $0x4] sm:$0xf]
        %v1760 = vld [vmem:[#allocation27 + $0x8] sm:$0xf]
        %v1761 = vld [vmem:[#allocation27 + $0xc] sm:$0xf]
        %v1762 = vld [vmem:[#allocation27 + $0x10] sm:$0xf]
        %v1763 = vld [vmem:[#allocation27 + $0x14] sm:$0xf]
        %v1764 = vld [vmem:[#allocation27 + $0x18] sm:$0xf]
        %v1765 = vld [vmem:[#allocation27 + $0x1c] sm:$0xf]
        %v1766 = vpack.c.bf16 %v1757, %v1757
        %v1767 = vld [vmem:[#allocation29] sm:$0x1]
        %v1769 = vlaneseq
        %v1770 = vshrl.u32 %v1769, 7
        %v1771 = vsub.s32 0, %v1770
        %v1772 = vrot.slane %v1767, %v1771
        %v1782 = vunpack.c.l.b16 %v1758
        %v1783 = vunpack.c.l.b16 %v1759
        %v1784 = vunpack.c.l.b16 %v1760
        %v1785 = vunpack.c.l.b16 %v1761
        %v1786 = vunpack.c.l.b16 %v1762
        %v1787 = vunpack.c.l.b16 %v1763
        %v1788 = vunpack.c.l.b16 %v1764
        %v1789 = vunpack.c.l.b16 %v1765
        %v1790 = vpack.c.b16 %v1783, %v1782
        %v1791 = vpack.c.b16 %v1785, %v1784
        %v1792 = vpack.c.b16 %v1787, %v1786
        %v1793 = vpack.c.b16 %v1789, %v1788
        %vm1798 = vcmask 523264
        %v1800 = vsel %vm1798, %v1766, 0
        %1802 = vmatprep.subr.bf16.mxu0 0
        %1803 = vmatpush1.bf16.msra.mxu0 %v1790
        %1804 = vmatprep.subr.bf16.mxu0 0
        %1805 = vmatpush1.bf16.msra.mxu0 %v1791
        %1806 = vmatprep.subr.bf16.mxu0 0
        %1807 = vmatpush1.bf16.msra.mxu0 %v1792
        %1808 = vmatprep.subr.bf16.mxu0 0
        %1809 = vmatpush1.bf16.msra.mxu0 %v1793
        %1810 = vmatprep.subr.bf16.mxu0 0
        %1811 = vmatpush1.bf16.msra.mxu0 0
        %1812 = vmatprep.subr.bf16.mxu0 0
        %1813 = vmatpush1.bf16.msra.mxu0 0
        %1814 = vmatprep.subr.bf16.mxu0 0
        %1815 = vmatpush1.bf16.msra.mxu0 0
        %1816 = vmatprep.subr.bf16.mxu0 0
        %1817 = vmatpush1.bf16.msra.mxu0 0
        %1818 = vmatprep.subr.bf16.mxu0 0
        %1819 = vmatpush1.bf16.msra.mxu0 0
        %1820 = vmatprep.subr.bf16.mxu0 0
        %1821 = vmatpush1.bf16.msra.mxu0 0
        %1822 = vmatprep.subr.bf16.mxu0 0
        %1823 = vmatpush1.bf16.msra.mxu0 0
        %1824 = vmatprep.subr.bf16.mxu0 0
        %1825 = vmatpush1.bf16.msra.mxu0 0
        %1826 = vmatprep.subr.bf16.mxu0 0
        %1827 = vmatpush1.bf16.msra.mxu0 0
        %1828 = vmatprep.subr.bf16.mxu0 0
        %1829 = vmatpush1.bf16.msra.mxu0 0
        %1830 = vmatprep.subr.bf16.mxu0 0
        %1831 = vmatpush1.bf16.msra.mxu0 0
        %1832 = vmatprep.subr.bf16.mxu0 0
        %1833 = vmatpush1.bf16.msra.mxu0 0
        %1834 = vmatprep.mubr.bf16.mxu0 0
        %1835 = vmatmul.mubr.bf16.gmra.mrb[0].mxu0 %v1800
        %v1836 = vpop.f32.mrb[0].mxu0
        %v1837 = vadd.f32 %v1772, %v1836
        %v1838 = vpop.f32.mrb[0].mxu0
        %v1839 = vpop.f32.mrb[0].mxu0
        %v1840 = vpop.f32.mrb[0].mxu0
        %1841 = vdwg.mxu0
        %v1842 = vadd.f32 %v1689, %v1837
        %v1843 = vld [vmem:[#allocation30] sm:$0x1]
        %v1844 = vld [vmem:[#allocation32] sm:$0x1]
        %v1845 = vsel %vm942, %v1842, 0.0
        %1846 = vadd.xlane.f32.xlu0 %v1845
        %v1847 = vpop.xlane.xlu0 %1846
        %v1848 = vmul.f32 %v1847, %v1665
        %v1849 = vsub.f32 %v1842, %v1848
        %v1850 = vmul.f32 %v1849, %v1849
        %v1851 = vsel %vm942, %v1850, 0.0
        %1852 = vadd.xlane.f32.xlu0 %v1851
        %v1853 = vpop.xlane.xlu0 %1852
        %v1854 = vmul.f32 %v1853, %v1665
        %v1855 = vadd.f32 %v1854, 1e-05
        %v1856 = vrsqrt.pop %v1855
        %v1857 = vmul.f32 %v1849, %v1856
        %v1859 = vlaneseq
        %v1860 = vshrl.u32 %v1859, 7
        %v1861 = vsub.s32 0, %v1860
        %v1862 = vrot.slane %v1843, %v1861
        %v1864 = vmul.f32 %v1857, %v1862
        %v1866 = vlaneseq
        %v1867 = vshrl.u32 %v1866, 7
        %v1868 = vsub.s32 0, %v1867
        %v1869 = vrot.slane %v1844, %v1868
        %v1871 = vadd.f32 %v1864, %v1869
        %v1872 = vpack.c.bf16 %v1871, %v1871
        %vm1873 = vcmask 257024
        %1874 = vst.msk [vmem:[%s914] sm:$0xf] %vm1873, %v1872
        %s1875 = sand.u32 %s485, 1
        %s1876 = scalar_lea.sflag [#allocation5], %s1875
        %s1877 = sand.u32 %s485, 1
        %s1878 = smul.addr %s1877, 4
        %s1879 = scalar_lea.vmem [#allocation33], %s1878
        // Predicated region
        $region173: #{bert_encoder_forward.4} parent=95 // pred_check
          %p1880 = pneg %p495
        $region174: #{bert_encoder_forward.4} parent=95 // pred_check_branch
          %1882 = sbr.rel (%p1880) target = $region176
        $region175: #{bert_encoder_forward.4} parent=95 // pred_region
          %s1884 = ssub.s32 64, 64
          %1885 = vsyncadd %s1876, %s1884
          %s1886 = sadd.s32 %s52, %s51
          %s1887 = smul.addr %s1886, 64
          %s1888 = scalar_lea.hbm %s19, %s1887
          %s1890 = sshll.u32 %s1879, 4
          %s1891 = int_to_ptr.vmem [resolvable:$true] %s1890
          %1893 = dma.vmem_to_hbm [thread:$0]  %s1891, 64, %s1888, %s1876
        $region176: #{bert_encoder_forward.4} parent=95 // pred_fallthru
          _
      $region96: #{bert_encoder_forward.4} parent=5 // pred_fallthru
        _
      %p1894 = scmp.le.s32.totalorder 2, %s42
      // Predicated region
      $region177: #{bert_encoder_forward.4} parent=5 // pred_check
        %p1895 = pneg %p1894
      $region178: #{bert_encoder_forward.4} parent=5 // pred_check_branch
        %1897 = sbr.rel (%p1895) target = $region180
      $region179: #{bert_encoder_forward.4} parent=5 // pred_region
        %s1898 = ssub.s32 %s42, 2
        // Predicated region
        $region181: #{bert_encoder_forward.4} parent=179 // pred_check
          %p1899 = pneg %p501
        $region182: #{bert_encoder_forward.4} parent=179 // pred_check_branch
          %1901 = sbr.rel (%p1899) target = $region184
        $region183: #{bert_encoder_forward.4} parent=179 // pred_region
          %s1902 = sand.u32 %s486, 1
          %s1903 = scalar_lea.sflag [#allocation5], %s1902
          %s1904 = sand.u32 %s486, 1
          %s1905 = smul.addr %s1904, 4
          %s1906 = scalar_lea.vmem [#allocation33], %s1905
          %1907 = dma.done %s1903, 64
        $region184: #{bert_encoder_forward.4} parent=179 // pred_fallthru
          _
      $region180: #{bert_encoder_forward.4} parent=5 // pred_fallthru
        _
    $region6: #{bert_encoder_forward.4} parent=1 // loop_footer
      %s46 = sadd.s32 1, %s42
    $region7: #{bert_encoder_forward.4} parent=1 // loop_footer_branch
      %41 = sbr.rel target = $region3
    $region8: #{bert_encoder_forward.4} parent=1 // loop_exit
      _
    %1908 = vsyncpa [#allocation4], 1
    %s1909 = scalar_lea.sflag [#allocation4], 1
    %1910 = vsyncpa %s1909, 1
    %1911 = vsyncpa [#allocation7], 1
    %s1912 = scalar_lea.sflag [#allocation7], 1
    %1913 = vsyncpa %s1912, 1
    %1914 = vsyncpa [#allocation10], 1
    %1915 = vsyncpa [#allocation13], 1
    %1916 = vsyncpa [#allocation16], 1
    %1917 = vsyncpa [#allocation19], 1
    %1918 = vsyncpa [#allocation22], 1
    %1919 = vsyncpa [#allocation25], 1
    %1920 = vsyncpa [#allocation28], 1
    %1921 = vsyncpa [#allocation31], 1
    %1922 = vsyncpa [#allocation5], 1
    %s1923 = scalar_lea.sflag [#allocation5], 1
    %1924 = vsyncpa %s1923, 1

// kernel: bert_encoder_forward.5
$region0: #{bert_encoder_forward.5}
  #allocation0 [shape = 'u32[]', space=smem, size = 0x4, offset = 0x4, fixed_abs, tag = 'smem constant byte address 0x4 - core index']
  #allocation1 [shape = 'u32[144,128]{1,0:T(1,128)}', space=vmem, size = 0x12000, scoped, tag = 'internal scratch']
  #allocation2 [shape = 'f32[8,32]{1,0:T(8,128)}', space=vmem, size = 0x1000, scoped, tag = 'scratch operand']
  %s0 = inlined_call_operand.hbm [shape: bf16[2,8,32], index: 0, kind: input, shape index: {}]
  %s1 = inlined_call_operand.hbm [shape: f32[2,1,8], index: 1, kind: input, shape index: {}]
  %s2 = inlined_call_operand.hbm [shape: bf16[32,32], index: 2, kind: input, shape index: {}]
  %s3 = inlined_call_operand.hbm [shape: bf16[32,32], index: 3, kind: input, shape index: {}]
  %s4 = inlined_call_operand.hbm [shape: bf16[32,32], index: 4, kind: input, shape index: {}]
  %s5 = inlined_call_operand.hbm [shape: f32[1,32], index: 5, kind: input, shape index: {}]
  %s6 = inlined_call_operand.hbm [shape: f32[1,32], index: 6, kind: input, shape index: {}]
  %s7 = inlined_call_operand.hbm [shape: f32[1,32], index: 7, kind: input, shape index: {}]
  %s8 = inlined_call_operand.hbm [shape: bf16[32,32], index: 8, kind: input, shape index: {}]
  %s9 = inlined_call_operand.hbm [shape: f32[1,32], index: 9, kind: input, shape index: {}]
  %s10 = inlined_call_operand.hbm [shape: f32[1,32], index: 10, kind: input, shape index: {}]
  %s11 = inlined_call_operand.hbm [shape: f32[1,32], index: 11, kind: input, shape index: {}]
  %s12 = inlined_call_operand.hbm [shape: bf16[32,64], index: 12, kind: input, shape index: {}]
  %s13 = inlined_call_operand.hbm [shape: f32[1,64], index: 13, kind: input, shape index: {}]
  %s14 = inlined_call_operand.hbm [shape: bf16[64,32], index: 14, kind: input, shape index: {}]
  %s15 = inlined_call_operand.hbm [shape: f32[1,32], index: 15, kind: input, shape index: {}]
  %s16 = inlined_call_operand.hbm [shape: f32[1,32], index: 16, kind: input, shape index: {}]
  %s17 = inlined_call_operand.hbm [shape: f32[1,32], index: 17, kind: input, shape index: {}]
  %s18 = inlined_call_operand.hbm [shape: bf16[32,16], index: 18, kind: input, shape index: {}]
  %s19 = inlined_call_operand.hbm [shape: f32[1,16], index: 19, kind: input, shape index: {}]
  %s20 = inlined_call_operand.hbm [shape: f32[2,1,16], index: 20, kind: output, shape index: {}]
  %s21 = sld [smem:[#allocation0]]
  $region193: #{bert_encoder_forward.5} parent=0
    _
  %s23 = ssub.s32 1, %s21
  %s24 = scalar_select 0, %s23, %s21
  $region1: #{bert_encoder_forward.5} parent=0
    #allocation3 [shape = 'u8[4096]{0}', space=vmem, size = 0x1000, scoped, tag = 'input window, operand 0']
    #allocation4 [shape = 's32[2]{0}', space=sflag, size = 0x8, scoped, tag = 'scoped memory for bert_encoder_forward.5']
    #allocation5 [shape = 's32[2]{0}', space=sflag, size = 0x8, scoped, tag = 'scoped memory for bert_encoder_forward.5']
    #allocation6 [shape = 'u8[1024]{0}', space=vmem, size = 0x400, scoped, tag = 'input window, operand 1']
    #allocation7 [shape = 's32[2]{0}', space=sflag, size = 0x8, scoped, tag = 'scoped memory for bert_encoder_forward.5']
    #allocation8 [shape = 'u8[8192]{0}', space=vmem, size = 0x2000, scoped, tag = 'input window, operand 2, single buffered']
    #allocation9 [shape = 'u8[8192]{0}', space=vmem, size = 0x2000, scoped, tag = 'input window, operand 3, single buffered']
    #allocation10 [shape = 's32[1]{0}', space=sflag, size = 0x4, scoped, tag = 'scoped memory for bert_encoder_forward.5']
    #allocation11 [shape = 'u8[8192]{0}', space=vmem, size = 0x2000, scoped, tag = 'input window, operand 4, single buffered']
    #allocation12 [shape = 'u8[512]{0}', space=vmem, size = 0x400, scoped, tag = 'input window, operand 5, single buffered']
    #allocation13 [shape = 's32[1]{0}', space=sflag, size = 0x4, scoped, tag = 'scoped memory for bert_encoder_forward.5']
    #allocation14 [shape = 'u8[512]{0}', space=vmem, size = 0x400, scoped, tag = 'input window, operand 6, single buffered']
    #allocation15 [shape = 'u8[512]{0}', space=vmem, size = 0x400, scoped, tag = 'input window, operand 7, single buffered']
    #allocation16 [shape = 's32[1]{0}', space=sflag, size = 0x4, scoped, tag = 'scoped memory for bert_encoder_forward.5']
    #allocation17 [shape = 'u8[8192]{0}', space=vmem, size = 0x2000, scoped, tag = 'input window, operand 8, single buffered']
    #allocation18 [shape = 'u8[512]{0}', space=vmem, size = 0x400, scoped, tag = 'input window, operand 9, single buffered']
    #allocation19 [shape = 's32[1]{0}', space=sflag, size = 0x4, scoped, tag = 'scoped memory for bert_encoder_forward.5']
    #allocation20 [shape = 'u8[512]{0}', space=vmem, size = 0x400, scoped, tag = 'input window, operand 10, single buffered']
    #allocation21 [shape = 'u8[512]{0}', space=vmem, size = 0x400, scoped, tag = 'input window, operand 11, single buffered']
    #allocation22 [shape = 's32[1]{0}', space=sflag, size = 0x4, scoped, tag = 'scoped memory for bert_encoder_forward.5']
    #allocation23 [shape = 'u8[8192]{0}', space=vmem, size = 0x2000, scoped, tag = 'input window, operand 12, single buffered']
    #allocation24 [shape = 'u8[512]{0}', space=vmem, size = 0x400, scoped, tag = 'input window, operand 13, single buffered']
    #allocation25 [shape = 's32[1]{0}', space=sflag, size = 0x4, scoped, tag = 'scoped memory for bert_encoder_forward.5']
    #allocation26 [shape = 'u8[16384]{0}', space=vmem, size = 0x4000, scoped, tag = 'input window, operand 14, single buffered']
    #allocation27 [shape = 'u8[512]{0}', space=vmem, size = 0x400, scoped, tag = 'input window, operand 15, single buffered']
    #allocation28 [shape = 's32[1]{0}', space=sflag, size = 0x4, scoped, tag = 'scoped memory for bert_encoder_forward.5']
    #allocation29 [shape = 'u8[512]{0}', space=vmem, size = 0x400, scoped, tag = 'input window, operand 16, single buffered']
    #allocation30 [shape = 'u8[512]{0}', space=vmem, size = 0x400, scoped, tag = 'input window, operand 17, single buffered']
    #allocation31 [shape = 's32[1]{0}', space=sflag, size = 0x4, scoped, tag = 'scoped memory for bert_encoder_forward.5']
    #allocation32 [shape = 'u8[8192]{0}', space=vmem, size = 0x2000, scoped, tag = 'input window, operand 18, single buffered']
    #allocation33 [shape = 'u8[512]{0}', space=vmem, size = 0x400, scoped, tag = 'input window, operand 19, single buffered']
    #allocation34 [shape = 's32[1]{0}', space=sflag, size = 0x4, scoped, tag = 'scoped memory for bert_encoder_forward.5']
    #allocation35 [shape = 'u8[1024]{0}', space=vmem, size = 0x400, scoped, tag = 'output window, operand 0']
    %25 = vsyncpa [#allocation4], 0
    %s26 = scalar_lea.sflag [#allocation4], 1
    %27 = vsyncpa %s26, 0
    %28 = vsyncpa [#allocation7], 0
    %s29 = scalar_lea.sflag [#allocation7], 1
    %30 = vsyncpa %s29, 0
    %31 = vsyncpa [#allocation10], 0
    %32 = vsyncpa [#allocation13], 0
    %33 = vsyncpa [#allocation16], 0
    %34 = vsyncpa [#allocation19], 0
    %35 = vsyncpa [#allocation22], 0
    %36 = vsyncpa [#allocation25], 0
    %37 = vsyncpa [#allocation28], 0
    %38 = vsyncpa [#allocation31], 0
    %39 = vsyncpa [#allocation34], 0
    %40 = vsyncpa [#allocation5], 0
    %s41 = scalar_lea.sflag [#allocation5], 1
    %42 = vsyncpa %s41, 0
    loop: start=0, step=1, limit=4
    $region2: #{bert_encoder_forward.5} parent=1 // loop_pre_header
      _
    $region3: #{bert_encoder_forward.5} parent=1 // loop_header
      %s44 = sphi 0, %s48
      %p45 = scmp.ge.s32.totalorder %s44, 4
      %s54 = sphi 0, %s56
      %s57 = sphi 0, %s54
      %s58 = sphi 0, %s57
      %s74 = sphi 0, %s58
      %s80 = sphi 0, %s82
      %s83 = sphi 0, %s80
      %s84 = sphi 0, %s83
      %s100 = sphi 0, %s84
      %s104 = sphi 0, %s104
      %s106 = sphi 0, %s104
      %s107 = sphi 0, %s106
      %s121 = sphi 0, %s107
      %s125 = sphi 0, %s125
      %s127 = sphi 0, %s125
      %s128 = sphi 0, %s127
      %s142 = sphi 0, %s128
      %s146 = sphi 0, %s146
      %s148 = sphi 0, %s146
      %s149 = sphi 0, %s148
      %s163 = sphi 0, %s149
      %s167 = sphi 0, %s167
      %s169 = sphi 0, %s167
      %s170 = sphi 0, %s169
      %s184 = sphi 0, %s170
      %s188 = sphi 0, %s188
      %s190 = sphi 0, %s188
      %s191 = sphi 0, %s190
      %s205 = sphi 0, %s191
      %s209 = sphi 0, %s209
      %s211 = sphi 0, %s209
      %s212 = sphi 0, %s211
      %s226 = sphi 0, %s212
      %s230 = sphi 0, %s230
      %s232 = sphi 0, %s230
      %s233 = sphi 0, %s232
      %s247 = sphi 0, %s233
      %s251 = sphi 0, %s251
      %s253 = sphi 0, %s251
      %s254 = sphi 0, %s253
      %s268 = sphi 0, %s254
      %s272 = sphi 0, %s272
      %s274 = sphi 0, %s272
      %s275 = sphi 0, %s274
      %s289 = sphi 0, %s275
      %s293 = sphi 0, %s293
      %s295 = sphi 0, %s293
      %s296 = sphi 0, %s295
      %s310 = sphi 0, %s296
      %s314 = sphi 0, %s314
      %s316 = sphi 0, %s314
      %s317 = sphi 0, %s316
      %s331 = sphi 0, %s317
      %s335 = sphi 0, %s335
      %s337 = sphi 0, %s335
      %s338 = sphi 0, %s337
      %s352 = sphi 0, %s338
      %s356 = sphi 0, %s356
      %s358 = sphi 0, %s356
      %s359 = sphi 0, %s358
      %s373 = sphi 0, %s359
      %s377 = sphi 0, %s377
      %s379 = sphi 0, %s377
      %s380 = sphi 0, %s379
      %s394 = sphi 0, %s380
      %s398 = sphi 0, %s398
      %s400 = sphi 0, %s398
      %s401 = sphi 0, %s400
      %s415 = sphi 0, %s401
      %s419 = sphi 0, %s419
      %s421 = sphi 0, %s419
      %s422 = sphi 0, %s421
      %s436 = sphi 0, %s422
      %s440 = sphi 0, %s440
      %s442 = sphi 0, %s440
      %s443 = sphi 0, %s442
      %s457 = sphi 0, %s443
      %s461 = sphi 0, %s461
      %s463 = sphi 0, %s461
      %s464 = sphi 0, %s463
      %s478 = sphi 0, %s464
      %s484 = sphi 0, %s486
      %s487 = sphi 0, %s484
      %s488 = sphi 0, %s487
      %s504 = sphi 0, %s488
    $region4: #{bert_encoder_forward.5} parent=1 // loop_header_branch
      %47 = sbr.rel (%p45) target = $region8
    $region5: #{bert_encoder_forward.5} parent=1 // loop_body
      %s49 = ssub.s32 %s44, 1
      %s50 = ssub.s32 %s44, 2
      %s51 = sadd.s32 %s44, 1
      %s52 = ssub.s32 %s44, %s51
      %p53 = scmp.eq.s32.totalorder %s52, 0
      %s55 = sadd.s32 %s54, 1
      %s56 = scalar_select %p53, %s54, %s55
      %p59 = pneg %p53
      %p60 = scmp.eq.s32.totalorder %s44, 1
      %p61 = por %p59, %p60
      %p62 = scmp.ne.s32.totalorder %s54, %s57
      %p63 = scmp.eq.s32.totalorder %s44, 0
      %p64 = por %p62, %p63
      %p65 = scmp.ne.s32.totalorder %s54, %s57
      %p66 = scmp.eq.s32.totalorder %s49, 1
      %p67 = por %p65, %p66
      %p68 = scmp.ne.s32.totalorder %s57, %s58
      %p69 = scmp.eq.s32.totalorder %s49, 0
      %p70 = por %p68, %p69
      %p71 = scmp.ne.s32.totalorder %s57, %s58
      %p72 = scmp.eq.s32.totalorder %s50, 1
      %p73 = por %p71, %p72
      %p75 = scmp.ne.s32.totalorder %s58, %s74
      %p76 = scmp.eq.s32.totalorder %s50, 0
      %p77 = por %p75, %p76
      %s78 = ssub.s32 %s44, %s51
      %p79 = scmp.eq.s32.totalorder %s78, 0
      %s81 = sadd.s32 %s80, 1
      %s82 = scalar_select %p79, %s80, %s81
      %p85 = pneg %p79
      %p86 = scmp.eq.s32.totalorder %s44, 1
      %p87 = por %p85, %p86
      %p88 = scmp.ne.s32.totalorder %s80, %s83
      %p89 = scmp.eq.s32.totalorder %s44, 0
      %p90 = por %p88, %p89
      %p91 = scmp.ne.s32.totalorder %s80, %s83
      %p92 = scmp.eq.s32.totalorder %s49, 1
      %p93 = por %p91, %p92
      %p94 = scmp.ne.s32.totalorder %s83, %s84
      %p95 = scmp.eq.s32.totalorder %s49, 0
      %p96 = por %p94, %p95
      %p97 = scmp.ne.s32.totalorder %s83, %s84
      %p98 = scmp.eq.s32.totalorder %s50, 1
      %p99 = por %p97, %p98
      %p101 = scmp.ne.s32.totalorder %s84, %s100
      %p102 = scmp.eq.s32.totalorder %s50, 0
      %p103 = por %p101, %p102
      %s105 = sadd.s32 %s104, 1
      %p108 = scmp.eq.s32.totalorder %s44, 1
      %p109 = scmp.ne.s32.totalorder %s104, %s106
      %p110 = scmp.eq.s32.totalorder %s44, 0
      %p111 = por %p109, %p110
      %p112 = scmp.ne.s32.totalorder %s104, %s106
      %p113 = scmp.eq.s32.totalorder %s49, 1
      %p114 = por %p112, %p113
      %p115 = scmp.ne.s32.totalorder %s106, %s107
      %p116 = scmp.eq.s32.totalorder %s49, 0
      %p117 = por %p115, %p116
      %p118 = scmp.ne.s32.totalorder %s106, %s107
      %p119 = scmp.eq.s32.totalorder %s50, 1
      %p120 = por %p118, %p119
      %p122 = scmp.ne.s32.totalorder %s107, %s121
      %p123 = scmp.eq.s32.totalorder %s50, 0
      %p124 = por %p122, %p123
      %s126 = sadd.s32 %s125, 1
      %p129 = scmp.eq.s32.totalorder %s44, 1
      %p130 = scmp.ne.s32.totalorder %s125, %s127
      %p131 = scmp.eq.s32.totalorder %s44, 0
      %p132 = por %p130, %p131
      %p133 = scmp.ne.s32.totalorder %s125, %s127
      %p134 = scmp.eq.s32.totalorder %s49, 1
      %p135 = por %p133, %p134
      %p136 = scmp.ne.s32.totalorder %s127, %s128
      %p137 = scmp.eq.s32.totalorder %s49, 0
      %p138 = por %p136, %p137
      %p139 = scmp.ne.s32.totalorder %s127, %s128
      %p140 = scmp.eq.s32.totalorder %s50, 1
      %p141 = por %p139, %p140
      %p143 = scmp.ne.s32.totalorder %s128, %s142
      %p144 = scmp.eq.s32.totalorder %s50, 0
      %p145 = por %p143, %p144
      %s147 = sadd.s32 %s146, 1
      %p150 = scmp.eq.s32.totalorder %s44, 1
      %p151 = scmp.ne.s32.totalorder %s146, %s148
      %p152 = scmp.eq.s32.totalorder %s44, 0
      %p153 = por %p151, %p152
      %p154 = scmp.ne.s32.totalorder %s146, %s148
      %p155 = scmp.eq.s32.totalorder %s49, 1
      %p156 = por %p154, %p155
      %p157 = scmp.ne.s32.totalorder %s148, %s149
      %p158 = scmp.eq.s32.totalorder %s49, 0
      %p159 = por %p157, %p158
      %p160 = scmp.ne.s32.totalorder %s148, %s149
      %p161 = scmp.eq.s32.totalorder %s50, 1
      %p162 = por %p160, %p161
      %p164 = scmp.ne.s32.totalorder %s149, %s163
      %p165 = scmp.eq.s32.totalorder %s50, 0
      %p166 = por %p164, %p165
      %s168 = sadd.s32 %s167, 1
      %p171 = scmp.eq.s32.totalorder %s44, 1
      %p172 = scmp.ne.s32.totalorder %s167, %s169
      %p173 = scmp.eq.s32.totalorder %s44, 0
      %p174 = por %p172, %p173
      %p175 = scmp.ne.s32.totalorder %s167, %s169
      %p176 = scmp.eq.s32.totalorder %s49, 1
      %p177 = por %p175, %p176
      %p178 = scmp.ne.s32.totalorder %s169, %s170
      %p179 = scmp.eq.s32.totalorder %s49, 0
      %p180 = por %p178, %p179
      %p181 = scmp.ne.s32.totalorder %s169, %s170
      %p182 = scmp.eq.s32.totalorder %s50, 1
      %p183 = por %p181, %p182
      %p185 = scmp.ne.s32.totalorder %s170, %s184
      %p186 = scmp.eq.s32.totalorder %s50, 0
      %p187 = por %p185, %p186
      %s189 = sadd.s32 %s188, 1
      %p192 = scmp.eq.s32.totalorder %s44, 1
      %p193 = scmp.ne.s32.totalorder %s188, %s190
      %p194 = scmp.eq.s32.totalorder %s44, 0
      %p195 = por %p193, %p194
      %p196 = scmp.ne.s32.totalorder %s188, %s190
      %p197 = scmp.eq.s32.totalorder %s49, 1
      %p198 = por %p196, %p197
      %p199 = scmp.ne.s32.totalorder %s190, %s191
      %p200 = scmp.eq.s32.totalorder %s49, 0
      %p201 = por %p199, %p200
      %p202 = scmp.ne.s32.totalorder %s190, %s191
      %p203 = scmp.eq.s32.totalorder %s50, 1
      %p204 = por %p202, %p203
      %p206 = scmp.ne.s32.totalorder %s191, %s205
      %p207 = scmp.eq.s32.totalorder %s50, 0
      %p208 = por %p206, %p207
      %s210 = sadd.s32 %s209, 1
      %p213 = scmp.eq.s32.totalorder %s44, 1
      %p214 = scmp.ne.s32.totalorder %s209, %s211
      %p215 = scmp.eq.s32.totalorder %s44, 0
      %p216 = por %p214, %p215
      %p217 = scmp.ne.s32.totalorder %s209, %s211
      %p218 = scmp.eq.s32.totalorder %s49, 1
      %p219 = por %p217, %p218
      %p220 = scmp.ne.s32.totalorder %s211, %s212
      %p221 = scmp.eq.s32.totalorder %s49, 0
      %p222 = por %p220, %p221
      %p223 = scmp.ne.s32.totalorder %s211, %s212
      %p224 = scmp.eq.s32.totalorder %s50, 1
      %p225 = por %p223, %p224
      %p227 = scmp.ne.s32.totalorder %s212, %s226
      %p228 = scmp.eq.s32.totalorder %s50, 0
      %p229 = por %p227, %p228
      %s231 = sadd.s32 %s230, 1
      %p234 = scmp.eq.s32.totalorder %s44, 1
      %p235 = scmp.ne.s32.totalorder %s230, %s232
      %p236 = scmp.eq.s32.totalorder %s44, 0
      %p237 = por %p235, %p236
      %p238 = scmp.ne.s32.totalorder %s230, %s232
      %p239 = scmp.eq.s32.totalorder %s49, 1
      %p240 = por %p238, %p239
      %p241 = scmp.ne.s32.totalorder %s232, %s233
      %p242 = scmp.eq.s32.totalorder %s49, 0
      %p243 = por %p241, %p242
      %p244 = scmp.ne.s32.totalorder %s232, %s233
      %p245 = scmp.eq.s32.totalorder %s50, 1
      %p246 = por %p244, %p245
      %p248 = scmp.ne.s32.totalorder %s233, %s247
      %p249 = scmp.eq.s32.totalorder %s50, 0
      %p250 = por %p248, %p249
      %s252 = sadd.s32 %s251, 1
      %p255 = scmp.eq.s32.totalorder %s44, 1
      %p256 = scmp.ne.s32.totalorder %s251, %s253
      %p257 = scmp.eq.s32.totalorder %s44, 0
      %p258 = por %p256, %p257
      %p259 = scmp.ne.s32.totalorder %s251, %s253
      %p260 = scmp.eq.s32.totalorder %s49, 1
      %p261 = por %p259, %p260
      %p262 = scmp.ne.s32.totalorder %s253, %s254
      %p263 = scmp.eq.s32.totalorder %s49, 0
      %p264 = por %p262, %p263
      %p265 = scmp.ne.s32.totalorder %s253, %s254
      %p266 = scmp.eq.s32.totalorder %s50, 1
      %p267 = por %p265, %p266
      %p269 = scmp.ne.s32.totalorder %s254, %s268
      %p270 = scmp.eq.s32.totalorder %s50, 0
      %p271 = por %p269, %p270
      %s273 = sadd.s32 %s272, 1
      %p276 = scmp.eq.s32.totalorder %s44, 1
      %p277 = scmp.ne.s32.totalorder %s272, %s274
      %p278 = scmp.eq.s32.totalorder %s44, 0
      %p279 = por %p277, %p278
      %p280 = scmp.ne.s32.totalorder %s272, %s274
      %p281 = scmp.eq.s32.totalorder %s49, 1
      %p282 = por %p280, %p281
      %p283 = scmp.ne.s32.totalorder %s274, %s275
      %p284 = scmp.eq.s32.totalorder %s49, 0
      %p285 = por %p283, %p284
      %p286 = scmp.ne.s32.totalorder %s274, %s275
      %p287 = scmp.eq.s32.totalorder %s50, 1
      %p288 = por %p286, %p287
      %p290 = scmp.ne.s32.totalorder %s275, %s289
      %p291 = scmp.eq.s32.totalorder %s50, 0
      %p292 = por %p290, %p291
      %s294 = sadd.s32 %s293, 1
      %p297 = scmp.eq.s32.totalorder %s44, 1
      %p298 = scmp.ne.s32.totalorder %s293, %s295
      %p299 = scmp.eq.s32.totalorder %s44, 0
      %p300 = por %p298, %p299
      %p301 = scmp.ne.s32.totalorder %s293, %s295
      %p302 = scmp.eq.s32.totalorder %s49, 1
      %p303 = por %p301, %p302
      %p304 = scmp.ne.s32.totalorder %s295, %s296
      %p305 = scmp.eq.s32.totalorder %s49, 0
      %p306 = por %p304, %p305
      %p307 = scmp.ne.s32.totalorder %s295, %s296
      %p308 = scmp.eq.s32.totalorder %s50, 1
      %p309 = por %p307, %p308
      %p311 = scmp.ne.s32.totalorder %s296, %s310
      %p312 = scmp.eq.s32.totalorder %s50, 0
      %p313 = por %p311, %p312
      %s315 = sadd.s32 %s314, 1
      %p318 = scmp.eq.s32.totalorder %s44, 1
      %p319 = scmp.ne.s32.totalorder %s314, %s316
      %p320 = scmp.eq.s32.totalorder %s44, 0
      %p321 = por %p319, %p320
      %p322 = scmp.ne.s32.totalorder %s314, %s316
      %p323 = scmp.eq.s32.totalorder %s49, 1
      %p324 = por %p322, %p323
      %p325 = scmp.ne.s32.totalorder %s316, %s317
      %p326 = scmp.eq.s32.totalorder %s49, 0
      %p327 = por %p325, %p326
      %p328 = scmp.ne.s32.totalorder %s316, %s317
      %p329 = scmp.eq.s32.totalorder %s50, 1
      %p330 = por %p328, %p329
      %p332 = scmp.ne.s32.totalorder %s317, %s331
      %p333 = scmp.eq.s32.totalorder %s50, 0
      %p334 = por %p332, %p333
      %s336 = sadd.s32 %s335, 1
      %p339 = scmp.eq.s32.totalorder %s44, 1
      %p340 = scmp.ne.s32.totalorder %s335, %s337
      %p341 = scmp.eq.s32.totalorder %s44, 0
      %p342 = por %p340, %p341
      %p343 = scmp.ne.s32.totalorder %s335, %s337
      %p344 = scmp.eq.s32.totalorder %s49, 1
      %p345 = por %p343, %p344
      %p346 = scmp.ne.s32.totalorder %s337, %s338
      %p347 = scmp.eq.s32.totalorder %s49, 0
      %p348 = por %p346, %p347
      %p349 = scmp.ne.s32.totalorder %s337, %s338
      %p350 = scmp.eq.s32.totalorder %s50, 1
      %p351 = por %p349, %p350
      %p353 = scmp.ne.s32.totalorder %s338, %s352
      %p354 = scmp.eq.s32.totalorder %s50, 0
      %p355 = por %p353, %p354
      %s357 = sadd.s32 %s356, 1
      %p360 = scmp.eq.s32.totalorder %s44, 1
      %p361 = scmp.ne.s32.totalorder %s356, %s358
      %p362 = scmp.eq.s32.totalorder %s44, 0
      %p363 = por %p361, %p362
      %p364 = scmp.ne.s32.totalorder %s356, %s358
      %p365 = scmp.eq.s32.totalorder %s49, 1
      %p366 = por %p364, %p365
      %p367 = scmp.ne.s32.totalorder %s358, %s359
      %p368 = scmp.eq.s32.totalorder %s49, 0
      %p369 = por %p367, %p368
      %p370 = scmp.ne.s32.totalorder %s358, %s359
      %p371 = scmp.eq.s32.totalorder %s50, 1
      %p372 = por %p370, %p371
      %p374 = scmp.ne.s32.totalorder %s359, %s373
      %p375 = scmp.eq.s32.totalorder %s50, 0
      %p376 = por %p374, %p375
      %s378 = sadd.s32 %s377, 1
      %p381 = scmp.eq.s32.totalorder %s44, 1
      %p382 = scmp.ne.s32.totalorder %s377, %s379
      %p383 = scmp.eq.s32.totalorder %s44, 0
      %p384 = por %p382, %p383
      %p385 = scmp.ne.s32.totalorder %s377, %s379
      %p386 = scmp.eq.s32.totalorder %s49, 1
      %p387 = por %p385, %p386
      %p388 = scmp.ne.s32.totalorder %s379, %s380
      %p389 = scmp.eq.s32.totalorder %s49, 0
      %p390 = por %p388, %p389
      %p391 = scmp.ne.s32.totalorder %s379, %s380
      %p392 = scmp.eq.s32.totalorder %s50, 1
      %p393 = por %p391, %p392
      %p395 = scmp.ne.s32.totalorder %s380, %s394
      %p396 = scmp.eq.s32.totalorder %s50, 0
      %p397 = por %p395, %p396
      %s399 = sadd.s32 %s398, 1
      %p402 = scmp.eq.s32.totalorder %s44, 1
      %p403 = scmp.ne.s32.totalorder %s398, %s400
      %p404 = scmp.eq.s32.totalorder %s44, 0
      %p405 = por %p403, %p404
      %p406 = scmp.ne.s32.totalorder %s398, %s400
      %p407 = scmp.eq.s32.totalorder %s49, 1
      %p408 = por %p406, %p407
      %p409 = scmp.ne.s32.totalorder %s400, %s401
      %p410 = scmp.eq.s32.totalorder %s49, 0
      %p411 = por %p409, %p410
      %p412 = scmp.ne.s32.totalorder %s400, %s401
      %p413 = scmp.eq.s32.totalorder %s50, 1
      %p414 = por %p412, %p413
      %p416 = scmp.ne.s32.totalorder %s401, %s415
      %p417 = scmp.eq.s32.totalorder %s50, 0
      %p418 = por %p416, %p417
      %s420 = sadd.s32 %s419, 1
      %p423 = scmp.eq.s32.totalorder %s44, 1
      %p424 = scmp.ne.s32.totalorder %s419, %s421
      %p425 = scmp.eq.s32.totalorder %s44, 0
      %p426 = por %p424, %p425
      %p427 = scmp.ne.s32.totalorder %s419, %s421
      %p428 = scmp.eq.s32.totalorder %s49, 1
      %p429 = por %p427, %p428
      %p430 = scmp.ne.s32.totalorder %s421, %s422
      %p431 = scmp.eq.s32.totalorder %s49, 0
      %p432 = por %p430, %p431
      %p433 = scmp.ne.s32.totalorder %s421, %s422
      %p434 = scmp.eq.s32.totalorder %s50, 1
      %p435 = por %p433, %p434
      %p437 = scmp.ne.s32.totalorder %s422, %s436
      %p438 = scmp.eq.s32.totalorder %s50, 0
      %p439 = por %p437, %p438
      %s441 = sadd.s32 %s440, 1
      %p444 = scmp.eq.s32.totalorder %s44, 1
      %p445 = scmp.ne.s32.totalorder %s440, %s442
      %p446 = scmp.eq.s32.totalorder %s44, 0
      %p447 = por %p445, %p446
      %p448 = scmp.ne.s32.totalorder %s440, %s442
      %p449 = scmp.eq.s32.totalorder %s49, 1
      %p450 = por %p448, %p449
      %p451 = scmp.ne.s32.totalorder %s442, %s443
      %p452 = scmp.eq.s32.totalorder %s49, 0
      %p453 = por %p451, %p452
      %p454 = scmp.ne.s32.totalorder %s442, %s443
      %p455 = scmp.eq.s32.totalorder %s50, 1
      %p456 = por %p454, %p455
      %p458 = scmp.ne.s32.totalorder %s443, %s457
      %p459 = scmp.eq.s32.totalorder %s50, 0
      %p460 = por %p458, %p459
      %s462 = sadd.s32 %s461, 1
      %p465 = scmp.eq.s32.totalorder %s44, 1
      %p466 = scmp.ne.s32.totalorder %s461, %s463
      %p467 = scmp.eq.s32.totalorder %s44, 0
      %p468 = por %p466, %p467
      %p469 = scmp.ne.s32.totalorder %s461, %s463
      %p470 = scmp.eq.s32.totalorder %s49, 1
      %p471 = por %p469, %p470
      %p472 = scmp.ne.s32.totalorder %s463, %s464
      %p473 = scmp.eq.s32.totalorder %s49, 0
      %p474 = por %p472, %p473
      %p475 = scmp.ne.s32.totalorder %s463, %s464
      %p476 = scmp.eq.s32.totalorder %s50, 1
      %p477 = por %p475, %p476
      %p479 = scmp.ne.s32.totalorder %s464, %s478
      %p480 = scmp.eq.s32.totalorder %s50, 0
      %p481 = por %p479, %p480
      %s482 = ssub.s32 %s44, %s51
      %p483 = scmp.eq.s32.totalorder %s482, 0
      %s485 = sadd.s32 %s484, 1
      %s486 = scalar_select %p483, %s484, %s485
      %p489 = pneg %p483
      %p490 = scmp.eq.s32.totalorder %s44, 1
      %p491 = por %p489, %p490
      %p492 = scmp.ne.s32.totalorder %s484, %s487
      %p493 = scmp.eq.s32.totalorder %s44, 0
      %p494 = por %p492, %p493
      %p495 = scmp.ne.s32.totalorder %s484, %s487
      %p496 = scmp.eq.s32.totalorder %s49, 1
      %p497 = por %p495, %p496
      %p498 = scmp.ne.s32.totalorder %s487, %s488
      %p499 = scmp.eq.s32.totalorder %s49, 0
      %p500 = por %p498, %p499
      %p501 = scmp.ne.s32.totalorder %s487, %s488
      %p502 = scmp.eq.s32.totalorder %s50, 1
      %p503 = por %p501, %p502
      %p505 = scmp.ne.s32.totalorder %s488, %s504
      %p506 = scmp.eq.s32.totalorder %s50, 0
      %p507 = por %p505, %p506
      %p508 = scmp.le.s32.totalorder 1, %s44
      %p509 = scmp.lt.s32.totalorder %s44, 3
      %p510 = pnand %p508, %p509
      %p511 = pneg %p510
      // Predicated region
      $region9: #{bert_encoder_forward.5} parent=5 // pred_check
        _
      $region10: #{bert_encoder_forward.5} parent=5 // pred_check_branch
        %513 = sbr.rel (%p510) target = $region12
      $region11: #{bert_encoder_forward.5} parent=5 // pred_region
        %s514 = ssub.s32 %s44, 1
        // Predicated region
        $region13: #{bert_encoder_forward.5} parent=11 // pred_check
          %p515 = pneg %p117
        $region14: #{bert_encoder_forward.5} parent=11 // pred_check_branch
          %517 = sbr.rel (%p515) target = $region16
        $region15: #{bert_encoder_forward.5} parent=11 // pred_region
          %s519 = ssub.s32 256, 256
          %520 = vsyncadd [#allocation7], %s519
          %s521 = sshll.u32 [#allocation8], 4
          %s522 = int_to_ptr.vmem [resolvable:$true] %s521
          %527 = dma.hbm_to_vmem [thread:$0]  %s2, 256, %s522, [#allocation7], 64, 64, 4
        $region16: #{bert_encoder_forward.5} parent=11 // pred_fallthru
          _
        // Predicated region
        $region17: #{bert_encoder_forward.5} parent=11 // pred_check
          %p528 = pneg %p138
        $region18: #{bert_encoder_forward.5} parent=11 // pred_check_branch
          %530 = sbr.rel (%p528) target = $region20
        $region19: #{bert_encoder_forward.5} parent=11 // pred_region
          %s532 = ssub.s32 256, 256
          %533 = vsyncadd [#allocation10], %s532
          %s534 = sshll.u32 [#allocation9], 4
          %s535 = int_to_ptr.vmem [resolvable:$true] %s534
          %540 = dma.hbm_to_vmem [thread:$0]  %s3, 256, %s535, [#allocation10], 64, 64, 4
        $region20: #{bert_encoder_forward.5} parent=11 // pred_fallthru
          _
        // Predicated region
        $region21: #{bert_encoder_forward.5} parent=11 // pred_check
          %p541 = pneg %p159
        $region22: #{bert_encoder_forward.5} parent=11 // pred_check_branch
          %543 = sbr.rel (%p541) target = $region24
        $region23: #{bert_encoder_forward.5} parent=11 // pred_region
          %s545 = ssub.s32 256, 256
          %546 = vsyncadd [#allocation10], %s545
          %s547 = sshll.u32 [#allocation11], 4
          %s548 = int_to_ptr.vmem [resolvable:$true] %s547
          %553 = dma.hbm_to_vmem [thread:$0]  %s4, 256, %s548, [#allocation10], 64, 64, 4
        $region24: #{bert_encoder_forward.5} parent=11 // pred_fallthru
          _
        // Predicated region
        $region25: #{bert_encoder_forward.5} parent=11 // pred_check
          %p554 = pneg %p180
        $region26: #{bert_encoder_forward.5} parent=11 // pred_check_branch
          %556 = sbr.rel (%p554) target = $region28
        $region27: #{bert_encoder_forward.5} parent=11 // pred_region
          %s558 = ssub.s32 16, 16
          %559 = vsyncadd [#allocation13], %s558
          %s561 = sshll.u32 [#allocation12], 4
          %s562 = int_to_ptr.vmem [resolvable:$true] %s561
          %564 = dma.hbm_to_vmem [thread:$0]  %s5, 16, %s562, [#allocation13]
        $region28: #{bert_encoder_forward.5} parent=11 // pred_fallthru
          _
        // Predicated region
        $region29: #{bert_encoder_forward.5} parent=11 // pred_check
          %p565 = pneg %p201
        $region30: #{bert_encoder_forward.5} parent=11 // pred_check_branch
          %567 = sbr.rel (%p565) target = $region32
        $region31: #{bert_encoder_forward.5} parent=11 // pred_region
          %s569 = ssub.s32 16, 16
          %570 = vsyncadd [#allocation13], %s569
          %s572 = sshll.u32 [#allocation14], 4
          %s573 = int_to_ptr.vmem [resolvable:$true] %s572
          %575 = dma.hbm_to_vmem [thread:$0]  %s6, 16, %s573, [#allocation13]
        $region32: #{bert_encoder_forward.5} parent=11 // pred_fallthru
          _
        // Predicated region
        $region33: #{bert_encoder_forward.5} parent=11 // pred_check
          %p576 = pneg %p222
        $region34: #{bert_encoder_forward.5} parent=11 // pred_check_branch
          %578 = sbr.rel (%p576) target = $region36
        $region35: #{bert_encoder_forward.5} parent=11 // pred_region
          %s580 = ssub.s32 16, 16
          %581 = vsyncadd [#allocation16], %s580
          %s583 = sshll.u32 [#allocation15], 4
          %s584 = int_to_ptr.vmem [resolvable:$true] %s583
          %586 = dma.hbm_to_vmem [thread:$0]  %s7, 16, %s584, [#allocation16]
        $region36: #{bert_encoder_forward.5} parent=11 // pred_fallthru
          _
        // Predicated region
        $region37: #{bert_encoder_forward.5} parent=11 // pred_check
          %p587 = pneg %p243
        $region38: #{bert_encoder_forward.5} parent=11 // pred_check_branch
          %589 = sbr.rel (%p587) target = $region40
        $region39: #{bert_encoder_forward.5} parent=11 // pred_region
          %s591 = ssub.s32 256, 256
          %592 = vsyncadd [#allocation16], %s591
          %s593 = sshll.u32 [#allocation17], 4
          %s594 = int_to_ptr.vmem [resolvable:$true] %s593
          %599 = dma.hbm_to_vmem [thread:$0]  %s8, 256, %s594, [#allocation16], 64, 64, 4
        $region40: #{bert_encoder_forward.5} parent=11 // pred_fallthru
          _
        // Predicated region
        $region41: #{bert_encoder_forward.5} parent=11 // pred_check
          %p600 = pneg %p264
        $region42: #{bert_encoder_forward.5} parent=11 // pred_check_branch
          %602 = sbr.rel (%p600) target = $region44
        $region43: #{bert_encoder_forward.5} parent=11 // pred_region
          %s604 = ssub.s32 16, 16
          %605 = vsyncadd [#allocation19], %s604
          %s607 = sshll.u32 [#allocation18], 4
          %s608 = int_to_ptr.vmem [resolvable:$true] %s607
          %610 = dma.hbm_to_vmem [thread:$0]  %s9, 16, %s608, [#allocation19]
        $region44: #{bert_encoder_forward.5} parent=11 // pred_fallthru
          _
        // Predicated region
        $region45: #{bert_encoder_forward.5} parent=11 // pred_check
          %p611 = pneg %p285
        $region46: #{bert_encoder_forward.5} parent=11 // pred_check_branch
          %613 = sbr.rel (%p611) target = $region48
        $region47: #{bert_encoder_forward.5} parent=11 // pred_region
          %s615 = ssub.s32 16, 16
          %616 = vsyncadd [#allocation19], %s615
          %s618 = sshll.u32 [#allocation20], 4
          %s619 = int_to_ptr.vmem [resolvable:$true] %s618
          %621 = dma.hbm_to_vmem [thread:$0]  %s10, 16, %s619, [#allocation19]
        $region48: #{bert_encoder_forward.5} parent=11 // pred_fallthru
          _
        // Predicated region
        $region49: #{bert_encoder_forward.5} parent=11 // pred_check
          %p622 = pneg %p306
        $region50: #{bert_encoder_forward.5} parent=11 // pred_check_branch
          %624 = sbr.rel (%p622) target = $region52
        $region51: #{bert_encoder_forward.5} parent=11 // pred_region
          %s626 = ssub.s32 16, 16
          %627 = vsyncadd [#allocation22], %s626
          %s629 = sshll.u32 [#allocation21], 4
          %s630 = int_to_ptr.vmem [resolvable:$true] %s629
          %632 = dma.hbm_to_vmem [thread:$0]  %s11, 16, %s630, [#allocation22]
        $region52: #{bert_encoder_forward.5} parent=11 // pred_fallthru
          _
        // Predicated region
        $region53: #{bert_encoder_forward.5} parent=11 // pred_check
          %p633 = pneg %p327
        $region54: #{bert_encoder_forward.5} parent=11 // pred_check_branch
          %635 = sbr.rel (%p633) target = $region56
        $region55: #{bert_encoder_forward.5} parent=11 // pred_region
          %s637 = ssub.s32 256, 256
          %638 = vsyncadd [#allocation22], %s637
          %s639 = sshll.u32 [#allocation23], 4
          %s640 = int_to_ptr.vmem [resolvable:$true] %s639
          %645 = dma.hbm_to_vmem [thread:$0]  %s12, 256, %s640, [#allocation22], 64, 64, 4
        $region56: #{bert_encoder_forward.5} parent=11 // pred_fallthru
          _
        // Predicated region
        $region57: #{bert_encoder_forward.5} parent=11 // pred_check
          %p646 = pneg %p348
        $region58: #{bert_encoder_forward.5} parent=11 // pred_check_branch
          %648 = sbr.rel (%p646) target = $region60
        $region59: #{bert_encoder_forward.5} parent=11 // pred_region
          %s650 = ssub.s32 16, 16
          %651 = vsyncadd [#allocation25], %s650
          %s653 = sshll.u32 [#allocation24], 4
          %s654 = int_to_ptr.vmem [resolvable:$true] %s653
          %656 = dma.hbm_to_vmem [thread:$0]  %s13, 16, %s654, [#allocation25]
        $region60: #{bert_encoder_forward.5} parent=11 // pred_fallthru
          _
        // Predicated region
        $region61: #{bert_encoder_forward.5} parent=11 // pred_check
          %p657 = pneg %p369
        $region62: #{bert_encoder_forward.5} parent=11 // pred_check_branch
          %659 = sbr.rel (%p657) target = $region64
        $region63: #{bert_encoder_forward.5} parent=11 // pred_region
          %s661 = ssub.s32 512, 512
          %662 = vsyncadd [#allocation25], %s661
          %s663 = sshll.u32 [#allocation26], 4
          %s664 = int_to_ptr.vmem [resolvable:$true] %s663
          %669 = dma.hbm_to_vmem [thread:$0]  %s14, 512, %s664, [#allocation25], 64, 64, 4
        $region64: #{bert_encoder_forward.5} parent=11 // pred_fallthru
          _
        // Predicated region
        $region65: #{bert_encoder_forward.5} parent=11 // pred_check
          %p670 = pneg %p390
        $region66: #{bert_encoder_forward.5} parent=11 // pred_check_branch
          %672 = sbr.rel (%p670) target = $region68
        $region67: #{bert_encoder_forward.5} parent=11 // pred_region
          %s674 = ssub.s32 16, 16
          %675 = vsyncadd [#allocation28], %s674
          %s677 = sshll.u32 [#allocation27], 4
          %s678 = int_to_ptr.vmem [resolvable:$true] %s677
          %680 = dma.hbm_to_vmem [thread:$0]  %s15, 16, %s678, [#allocation28]
        $region68: #{bert_encoder_forward.5} parent=11 // pred_fallthru
          _
        // Predicated region
        $region69: #{bert_encoder_forward.5} parent=11 // pred_check
          %p681 = pneg %p411
        $region70: #{bert_encoder_forward.5} parent=11 // pred_check_branch
          %683 = sbr.rel (%p681) target = $region72
        $region71: #{bert_encoder_forward.5} parent=11 // pred_region
          %s685 = ssub.s32 16, 16
          %686 = vsyncadd [#allocation28], %s685
          %s688 = sshll.u32 [#allocation29], 4
          %s689 = int_to_ptr.vmem [resolvable:$true] %s688
          %691 = dma.hbm_to_vmem [thread:$0]  %s16, 16, %s689, [#allocation28]
        $region72: #{bert_encoder_forward.5} parent=11 // pred_fallthru
          _
        // Predicated region
        $region73: #{bert_encoder_forward.5} parent=11 // pred_check
          %p692 = pneg %p432
        $region74: #{bert_encoder_forward.5} parent=11 // pred_check_branch
          %694 = sbr.rel (%p692) target = $region76
        $region75: #{bert_encoder_forward.5} parent=11 // pred_region
          %s696 = ssub.s32 16, 16
          %697 = vsyncadd [#allocation31], %s696
          %s699 = sshll.u32 [#allocation30], 4
          %s700 = int_to_ptr.vmem [resolvable:$true] %s699
          %702 = dma.hbm_to_vmem [thread:$0]  %s17, 16, %s700, [#allocation31]
        $region76: #{bert_encoder_forward.5} parent=11 // pred_fallthru
          _
        // Predicated region
        $region77: #{bert_encoder_forward.5} parent=11 // pred_check
          %p703 = pneg %p453
        $region78: #{bert_encoder_forward.5} parent=11 // pred_check_branch
          %705 = sbr.rel (%p703) target = $region80
        $region79: #{bert_encoder_forward.5} parent=11 // pred_region
          %s707 = ssub.s32 256, 256
          %708 = vsyncadd [#allocation31], %s707
          %s709 = sshll.u32 [#allocation32], 4
          %s710 = int_to_ptr.vmem [resolvable:$true] %s709
          %715 = dma.hbm_to_vmem [thread:$0]  %s18, 256, %s710, [#allocation31], 64, 64, 4
        $region80: #{bert_encoder_forward.5} parent=11 // pred_fallthru
          _
        // Predicated region
        $region81: #{bert_encoder_forward.5} parent=11 // pred_check
          %p716 = pneg %p474
        $region82: #{bert_encoder_forward.5} parent=11 // pred_check_branch
          %718 = sbr.rel (%p716) target = $region84
        $region83: #{bert_encoder_forward.5} parent=11 // pred_region
          %s720 = ssub.s32 16, 16
          %721 = vsyncadd [#allocation34], %s720
          %s723 = sshll.u32 [#allocation33], 4
          %s724 = int_to_ptr.vmem [resolvable:$true] %s723
          %726 = dma.hbm_to_vmem [thread:$0]  %s19, 16, %s724, [#allocation34]
        $region84: #{bert_encoder_forward.5} parent=11 // pred_fallthru
          _
      $region12: #{bert_encoder_forward.5} parent=5 // pred_fallthru
        _
      %p727 = scmp.lt.s32.totalorder %s44, 2
      // Predicated region
      $region85: #{bert_encoder_forward.5} parent=5 // pred_check
        %p728 = pneg %p727
      $region86: #{bert_encoder_forward.5} parent=5 // pred_check_branch
        %730 = sbr.rel (%p728) target = $region88
      $region87: #{bert_encoder_forward.5} parent=5 // pred_region
        // Predicated region
        $region89: #{bert_encoder_forward.5} parent=87 // pred_check
          %p731 = pneg %p64
        $region90: #{bert_encoder_forward.5} parent=87 // pred_check_branch
          %733 = sbr.rel (%p731) target = $region92
        $region91: #{bert_encoder_forward.5} parent=87 // pred_region
          %s734 = sand.u32 %s54, 1
          %s735 = scalar_lea.sflag [#allocation4], %s734
          %s736 = sand.u32 %s54, 1
          %s737 = smul.addr %s736, 4
          %s738 = scalar_lea.vmem [#allocation3], %s737
          %s740 = ssub.s32 64, 64
          %741 = vsyncadd %s735, %s740
          %s742 = smul.addr %s44, 64
          %s743 = scalar_lea.hbm %s0, %s742
          %s745 = sshll.u32 %s738, 4
          %s746 = int_to_ptr.vmem [resolvable:$true] %s745
          %748 = dma.hbm_to_vmem [thread:$0]  %s743, 64, %s746, %s735
        $region92: #{bert_encoder_forward.5} parent=87 // pred_fallthru
          _
        // Predicated region
        $region93: #{bert_encoder_forward.5} parent=87 // pred_check
          %p749 = pneg %p90
        $region94: #{bert_encoder_forward.5} parent=87 // pred_check_branch
          %751 = sbr.rel (%p749) target = $region96
        $region95: #{bert_encoder_forward.5} parent=87 // pred_region
          %s752 = sand.u32 %s44, 1
          %s753 = scalar_lea.sflag [#allocation7], %s752
          %s754 = sand.u32 %s80, 1
          %s755 = scalar_lea.vmem [#allocation6], %s754
          %s757 = ssub.s32 16, 16
          %758 = vsyncadd %s753, %s757
          %s759 = smul.addr %s44, 16
          %s760 = scalar_lea.hbm %s1, %s759
          %s762 = sshll.u32 %s755, 4
          %s763 = int_to_ptr.vmem [resolvable:$true] %s762
          %765 = dma.hbm_to_vmem [thread:$0]  %s760, 16, %s763, %s753
        $region96: #{bert_encoder_forward.5} parent=87 // pred_fallthru
          _
      $region88: #{bert_encoder_forward.5} parent=5 // pred_fallthru
        _
      %p766 = scmp.le.s32.totalorder 1, %s44
      %p767 = scmp.lt.s32.totalorder %s44, 3
      %p768 = pnand %p766, %p767
      %p769 = pneg %p768
      // Predicated region
      $region97: #{bert_encoder_forward.5} parent=5 // pred_check
        _
      $region98: #{bert_encoder_forward.5} parent=5 // pred_check_branch
        %771 = sbr.rel (%p768) target = $region100
      $region99: #{bert_encoder_forward.5} parent=5 // pred_region
        %s772 = ssub.s32 %s44, 1
        %s773 = sand.u32 %s57, 1
        %s774 = scalar_lea.sflag [#allocation4], %s773
        %s775 = sand.u32 %s57, 1
        %s776 = smul.addr %s775, 4
        %s777 = scalar_lea.vmem [#allocation3], %s776
        // Predicated region
        $region101: #{bert_encoder_forward.5} parent=99 // pred_check
          %p778 = pneg %p70
        $region102: #{bert_encoder_forward.5} parent=99 // pred_check_branch
          %780 = sbr.rel (%p778) target = $region104
        $region103: #{bert_encoder_forward.5} parent=99 // pred_region
          %781 = dma.done %s774, 64
        $region104: #{bert_encoder_forward.5} parent=99 // pred_fallthru
          _
        %s782 = sand.u32 %s49, 1
        %s783 = scalar_lea.sflag [#allocation7], %s782
        %s784 = sand.u32 %s83, 1
        %s785 = scalar_lea.vmem [#allocation6], %s784
        // Predicated region
        $region105: #{bert_encoder_forward.5} parent=99 // pred_check
          %p786 = pneg %p96
        $region106: #{bert_encoder_forward.5} parent=99 // pred_check_branch
          %788 = sbr.rel (%p786) target = $region108
        $region107: #{bert_encoder_forward.5} parent=99 // pred_region
          %789 = dma.done %s783, 16
        $region108: #{bert_encoder_forward.5} parent=99 // pred_fallthru
          _
        // Predicated region
        $region109: #{bert_encoder_forward.5} parent=99 // pred_check
          %p790 = pneg %p117
        $region110: #{bert_encoder_forward.5} parent=99 // pred_check_branch
          %792 = sbr.rel (%p790) target = $region112
        $region111: #{bert_encoder_forward.5} parent=99 // pred_region
          %793 = dma.done [#allocation7], 256
        $region112: #{bert_encoder_forward.5} parent=99 // pred_fallthru
          _
        // Predicated region
        $region113: #{bert_encoder_forward.5} parent=99 // pred_check
          %p794 = pneg %p138
        $region114: #{bert_encoder_forward.5} parent=99 // pred_check_branch
          %796 = sbr.rel (%p794) target = $region116
        $region115: #{bert_encoder_forward.5} parent=99 // pred_region
          %797 = dma.done [#allocation10], 256
        $region116: #{bert_encoder_forward.5} parent=99 // pred_fallthru
          _
        // Predicated region
        $region117: #{bert_encoder_forward.5} parent=99 // pred_check
          %p798 = pneg %p159
        $region118: #{bert_encoder_forward.5} parent=99 // pred_check_branch
          %800 = sbr.rel (%p798) target = $region120
        $region119: #{bert_encoder_forward.5} parent=99 // pred_region
          %801 = dma.done [#allocation10], 256
        $region120: #{bert_encoder_forward.5} parent=99 // pred_fallthru
          _
        // Predicated region
        $region121: #{bert_encoder_forward.5} parent=99 // pred_check
          %p802 = pneg %p180
        $region122: #{bert_encoder_forward.5} parent=99 // pred_check_branch
          %804 = sbr.rel (%p802) target = $region124
        $region123: #{bert_encoder_forward.5} parent=99 // pred_region
          %805 = dma.done [#allocation13], 16
        $region124: #{bert_encoder_forward.5} parent=99 // pred_fallthru
          _
        // Predicated region
        $region125: #{bert_encoder_forward.5} parent=99 // pred_check
          %p806 = pneg %p201
        $region126: #{bert_encoder_forward.5} parent=99 // pred_check_branch
          %808 = sbr.rel (%p806) target = $region128
        $region127: #{bert_encoder_forward.5} parent=99 // pred_region
          %809 = dma.done [#allocation13], 16
        $region128: #{bert_encoder_forward.5} parent=99 // pred_fallthru
          _
        // Predicated region
        $region129: #{bert_encoder_forward.5} parent=99 // pred_check
          %p810 = pneg %p222
        $region130: #{bert_encoder_forward.5} parent=99 // pred_check_branch
          %812 = sbr.rel (%p810) target = $region132
        $region131: #{bert_encoder_forward.5} parent=99 // pred_region
          %813 = dma.done [#allocation16], 16
        $region132: #{bert_encoder_forward.5} parent=99 // pred_fallthru
          _
        // Predicated region
        $region133: #{bert_encoder_forward.5} parent=99 // pred_check
          %p814 = pneg %p243
        $region134: #{bert_encoder_forward.5} parent=99 // pred_check_branch
          %816 = sbr.rel (%p814) target = $region136
        $region135: #{bert_encoder_forward.5} parent=99 // pred_region
          %817 = dma.done [#allocation16], 256
        $region136: #{bert_encoder_forward.5} parent=99 // pred_fallthru
          _
        // Predicated region
        $region137: #{bert_encoder_forward.5} parent=99 // pred_check
          %p818 = pneg %p264
        $region138: #{bert_encoder_forward.5} parent=99 // pred_check_branch
          %820 = sbr.rel (%p818) target = $region140
        $region139: #{bert_encoder_forward.5} parent=99 // pred_region
          %821 = dma.done [#allocation19], 16
        $region140: #{bert_encoder_forward.5} parent=99 // pred_fallthru
          _
        // Predicated region
        $region141: #{bert_encoder_forward.5} parent=99 // pred_check
          %p822 = pneg %p285
        $region142: #{bert_encoder_forward.5} parent=99 // pred_check_branch
          %824 = sbr.rel (%p822) target = $region144
        $region143: #{bert_encoder_forward.5} parent=99 // pred_region
          %825 = dma.done [#allocation19], 16
        $region144: #{bert_encoder_forward.5} parent=99 // pred_fallthru
          _
        // Predicated region
        $region145: #{bert_encoder_forward.5} parent=99 // pred_check
          %p826 = pneg %p306
        $region146: #{bert_encoder_forward.5} parent=99 // pred_check_branch
          %828 = sbr.rel (%p826) target = $region148
        $region147: #{bert_encoder_forward.5} parent=99 // pred_region
          %829 = dma.done [#allocation22], 16
        $region148: #{bert_encoder_forward.5} parent=99 // pred_fallthru
          _
        // Predicated region
        $region149: #{bert_encoder_forward.5} parent=99 // pred_check
          %p830 = pneg %p327
        $region150: #{bert_encoder_forward.5} parent=99 // pred_check_branch
          %832 = sbr.rel (%p830) target = $region152
        $region151: #{bert_encoder_forward.5} parent=99 // pred_region
          %833 = dma.done [#allocation22], 256
        $region152: #{bert_encoder_forward.5} parent=99 // pred_fallthru
          _
        // Predicated region
        $region153: #{bert_encoder_forward.5} parent=99 // pred_check
          %p834 = pneg %p348
        $region154: #{bert_encoder_forward.5} parent=99 // pred_check_branch
          %836 = sbr.rel (%p834) target = $region156
        $region155: #{bert_encoder_forward.5} parent=99 // pred_region
          %837 = dma.done [#allocation25], 16
        $region156: #{bert_encoder_forward.5} parent=99 // pred_fallthru
          _
        // Predicated region
        $region157: #{bert_encoder_forward.5} parent=99 // pred_check
          %p838 = pneg %p369
        $region158: #{bert_encoder_forward.5} parent=99 // pred_check_branch
          %840 = sbr.rel (%p838) target = $region160
        $region159: #{bert_encoder_forward.5} parent=99 // pred_region
          %841 = dma.done [#allocation25], 512
        $region160: #{bert_encoder_forward.5} parent=99 // pred_fallthru
          _
        // Predicated region
        $region161: #{bert_encoder_forward.5} parent=99 // pred_check
          %p842 = pneg %p390
        $region162: #{bert_encoder_forward.5} parent=99 // pred_check_branch
          %844 = sbr.rel (%p842) target = $region164
        $region163: #{bert_encoder_forward.5} parent=99 // pred_region
          %845 = dma.done [#allocation28], 16
        $region164: #{bert_encoder_forward.5} parent=99 // pred_fallthru
          _
        // Predicated region
        $region165: #{bert_encoder_forward.5} parent=99 // pred_check
          %p846 = pneg %p411
        $region166: #{bert_encoder_forward.5} parent=99 // pred_check_branch
          %848 = sbr.rel (%p846) target = $region168
        $region167: #{bert_encoder_forward.5} parent=99 // pred_region
          %849 = dma.done [#allocation28], 16
        $region168: #{bert_encoder_forward.5} parent=99 // pred_fallthru
          _
        // Predicated region
        $region169: #{bert_encoder_forward.5} parent=99 // pred_check
          %p850 = pneg %p432
        $region170: #{bert_encoder_forward.5} parent=99 // pred_check_branch
          %852 = sbr.rel (%p850) target = $region172
        $region171: #{bert_encoder_forward.5} parent=99 // pred_region
          %853 = dma.done [#allocation31], 16
        $region172: #{bert_encoder_forward.5} parent=99 // pred_fallthru
          _
        // Predicated region
        $region173: #{bert_encoder_forward.5} parent=99 // pred_check
          %p854 = pneg %p453
        $region174: #{bert_encoder_forward.5} parent=99 // pred_check_branch
          %856 = sbr.rel (%p854) target = $region176
        $region175: #{bert_encoder_forward.5} parent=99 // pred_region
          %857 = dma.done [#allocation31], 256
        $region176: #{bert_encoder_forward.5} parent=99 // pred_fallthru
          _
        // Predicated region
        $region177: #{bert_encoder_forward.5} parent=99 // pred_check
          %p858 = pneg %p474
        $region178: #{bert_encoder_forward.5} parent=99 // pred_check_branch
          %860 = sbr.rel (%p858) target = $region180
        $region179: #{bert_encoder_forward.5} parent=99 // pred_region
          %861 = dma.done [#allocation34], 16
        $region180: #{bert_encoder_forward.5} parent=99 // pred_fallthru
          _
        %s862 = sand.u32 %s57, 1
        %s863 = scalar_lea.sflag [#allocation4], %s862
        %s864 = sand.u32 %s57, 1
        %s865 = smul.addr %s864, 4
        %s866 = scalar_lea.vmem [#allocation3], %s865
        %p867 = pneg %p70
        %p868 = pneg %p67
        %s869 = sand.u32 %s49, 1
        %s870 = scalar_lea.sflag [#allocation7], %s869
        %s871 = sand.u32 %s83, 1
        %s872 = scalar_lea.vmem [#allocation6], %s871
        %p873 = pneg %p96
        %p874 = pneg %p93
        %p875 = pneg %p117
        %p876 = pneg %p114
        %p877 = pneg %p138
        %p878 = pneg %p135
        %p879 = pneg %p159
        %p880 = pneg %p156
        %p881 = pneg %p180
        %p882 = pneg %p177
        %p883 = pneg %p201
        %p884 = pneg %p198
        %p885 = pneg %p222
        %p886 = pneg %p219
        %p887 = pneg %p243
        %p888 = pneg %p240
        %p889 = pneg %p264
        %p890 = pneg %p261
        %p891 = pneg %p285
        %p892 = pneg %p282
        %p893 = pneg %p306
        %p894 = pneg %p303
        %p895 = pneg %p327
        %p896 = pneg %p324
        %p897 = pneg %p348
        %p898 = pneg %p345
        %p899 = pneg %p369
        %p900 = pneg %p366
        %p901 = pneg %p390
        %p902 = pneg %p387
        %p903 = pneg %p411
        %p904 = pneg %p408
        %p905 = pneg %p432
        %p906 = pneg %p429
        %p907 = pneg %p453
        %p908 = pneg %p450
        %p909 = pneg %p474
        %p910 = pneg %p471
        %p911 = pneg %p500
        %p912 = pneg %p497
        %s913 = sand.u32 %s487, 1
        %s914 = scalar_lea.sflag [#allocation5], %s913
        %s915 = sand.u32 %s487, 1
        %s916 = scalar_lea.vmem [#allocation35], %s915
        %v918 = vld [vmem:[%s777] sm:$0xf]
        %v919 = vld [vmem:[%s785] sm:$0x1]
        %v920 = vld [vmem:[#allocation8] sm:$0xf]
        %v921 = vld [vmem:[#allocation8 + $0x4] sm:$0xf]
        %v922 = vld [vmem:[#allocation8 + $0x8] sm:$0xf]
        %v923 = vld [vmem:[#allocation8 + $0xc] sm:$0xf]
        %v924 = vld [vmem:[#allocation12] sm:$0x1]
        %v926 = vlaneseq
        %v927 = vshrl.u32 %v926, 7
        %v928 = vsub.s32 0, %v927
        %v929 = vrot.slane %v924, %v928
        %v935 = vunpack.c.l.b16 %v920
        %v936 = vunpack.c.l.b16 %v921
        %v937 = vunpack.c.l.b16 %v922
        %v938 = vunpack.c.l.b16 %v923
        %v939 = vpack.c.b16 %v936, %v935
        %v940 = vpack.c.b16 %v938, %v937
        %vm943 = vcmask 261120
        %v945 = vsel %vm943, %v918, 0
        %947 = vmatprep.subr.bf16.mxu0 0
        %948 = vmatpush1.bf16.msra.mxu0 %v939
        %949 = vmatprep.subr.bf16.mxu0 0
        %950 = vmatpush1.bf16.msra.mxu0 %v940
        %951 = vmatprep.subr.bf16.mxu0 0
        %952 = vmatpush1.bf16.msra.mxu0 0
        %953 = vmatprep.subr.bf16.mxu0 0
        %954 = vmatpush1.bf16.msra.mxu0 0
        %955 = vmatprep.subr.bf16.mxu0 0
        %956 = vmatpush1.bf16.msra.mxu0 0
        %957 = vmatprep.subr.bf16.mxu0 0
        %958 = vmatpush1.bf16.msra.mxu0 0
        %959 = vmatprep.subr.bf16.mxu0 0
        %960 = vmatpush1.bf16.msra.mxu0 0
        %961 = vmatprep.subr.bf16.mxu0 0
        %962 = vmatpush1.bf16.msra.mxu0 0
        %963 = vmatprep.subr.bf16.mxu0 0
        %964 = vmatpush1.bf16.msra.mxu0 0
        %965 = vmatprep.subr.bf16.mxu0 0
        %966 = vmatpush1.bf16.msra.mxu0 0
        %967 = vmatprep.subr.bf16.mxu0 0
        %968 = vmatpush1.bf16.msra.mxu0 0
        %969 = vmatprep.subr.bf16.mxu0 0
        %970 = vmatpush1.bf16.msra.mxu0 0
        %971 = vmatprep.subr.bf16.mxu0 0
        %972 = vmatpush1.bf16.msra.mxu0 0
        %973 = vmatprep.subr.bf16.mxu0 0
        %974 = vmatpush1.bf16.msra.mxu0 0
        %975 = vmatprep.subr.bf16.mxu0 0
        %976 = vmatpush1.bf16.msra.mxu0 0
        %977 = vmatprep.subr.bf16.mxu0 0
        %978 = vmatpush1.bf16.msra.mxu0 0
        %979 = vmatprep.mubr.bf16.mxu0 0
        %980 = vmatmul.mubr.bf16.gmra.mrb[0].mxu0 %v945
        %v981 = vpop.f32.mrb[0].mxu0
        %v982 = vadd.f32 %v929, %v981
        %v983 = vpop.f32.mrb[0].mxu0
        %v984 = vpop.f32.mrb[0].mxu0
        %v985 = vpop.f32.mrb[0].mxu0
        %986 = vdwg.mxu0
        %v987 = vpack.c.bf16 %v982, %v982
        %v988 = vld [vmem:[#allocation9] sm:$0xf]
        %v989 = vld [vmem:[#allocation9 + $0x4] sm:$0xf]
        %v990 = vld [vmem:[#allocation9 + $0x8] sm:$0xf]
        %v991 = vld [vmem:[#allocation9 + $0xc] sm:$0xf]
        %v992 = vld [vmem:[#allocation14] sm:$0x1]
        %v994 = vlaneseq
        %v995 = vshrl.u32 %v994, 7
        %v996 = vsub.s32 0, %v995
        %v997 = vrot.slane %v992, %v996
        %v1003 = vunpack.c.l.b16 %v988
        %v1004 = vunpack.c.l.b16 %v989
        %v1005 = vunpack.c.l.b16 %v990
        %v1006 = vunpack.c.l.b16 %v991
        %v1007 = vpack.c.b16 %v1004, %v1003
        %v1008 = vpack.c.b16 %v1006, %v1005
        %1011 = vmatprep.subr.bf16.mxu0 0
        %1012 = vmatpush1.bf16.msra.mxu0 %v1007
        %1013 = vmatprep.subr.bf16.mxu0 0
        %1014 = vmatpush1.bf16.msra.mxu0 %v1008
        %1015 = vmatprep.subr.bf16.mxu0 0
        %1016 = vmatpush1.bf16.msra.mxu0 0
        %1017 = vmatprep.subr.bf16.mxu0 0
        %1018 = vmatpush1.bf16.msra.mxu0 0
        %1019 = vmatprep.subr.bf16.mxu0 0
        %1020 = vmatpush1.bf16.msra.mxu0 0
        %1021 = vmatprep.subr.bf16.mxu0 0
        %1022 = vmatpush1.bf16.msra.mxu0 0
        %1023 = vmatprep.subr.bf16.mxu0 0
        %1024 = vmatpush1.bf16.msra.mxu0 0
        %1025 = vmatprep.subr.bf16.mxu0 0
        %1026 = vmatpush1.bf16.msra.mxu0 0
        %1027 = vmatprep.subr.bf16.mxu0 0
        %1028 = vmatpush1.bf16.msra.mxu0 0
        %1029 = vmatprep.subr.bf16.mxu0 0
        %1030 = vmatpush1.bf16.msra.mxu0 0
        %1031 = vmatprep.subr.bf16.mxu0 0
        %1032 = vmatpush1.bf16.msra.mxu0 0
        %1033 = vmatprep.subr.bf16.mxu0 0
        %1034 = vmatpush1.bf16.msra.mxu0 0
        %1035 = vmatprep.subr.bf16.mxu0 0
        %1036 = vmatpush1.bf16.msra.mxu0 0
        %1037 = vmatprep.subr.bf16.mxu0 0
        %1038 = vmatpush1.bf16.msra.mxu0 0
        %1039 = vmatprep.subr.bf16.mxu0 0
        %1040 = vmatpush1.bf16.msra.mxu0 0
        %1041 = vmatprep.subr.bf16.mxu0 0
        %1042 = vmatpush1.bf16.msra.mxu0 0
        %1043 = vmatprep.mubr.bf16.mxu0 0
        %1044 = vmatmul.mubr.bf16.gmra.mrb[0].mxu0 %v945
        %v1045 = vpop.f32.mrb[0].mxu0
        %v1046 = vadd.f32 %v997, %v1045
        %v1047 = vpop.f32.mrb[0].mxu0
        %v1048 = vpop.f32.mrb[0].mxu0
        %v1049 = vpop.f32.mrb[0].mxu0
        %1050 = vdwg.mxu0
        %v1051 = vpack.c.bf16 %v1046, %v1046
        %v1052 = vld [vmem:[#allocation11] sm:$0xf]
        %v1053 = vld [vmem:[#allocation11 + $0x4] sm:$0xf]
        %v1054 = vld [vmem:[#allocation11 + $0x8] sm:$0xf]
        %v1055 = vld [vmem:[#allocation11 + $0xc] sm:$0xf]
        %v1056 = vld [vmem:[#allocation15] sm:$0x1]
        %v1058 = vlaneseq
        %v1059 = vshrl.u32 %v1058, 7
        %v1060 = vsub.s32 0, %v1059
        %v1061 = vrot.slane %v1056, %v1060
        %v1067 = vunpack.c.l.b16 %v1052
        %v1068 = vunpack.c.l.b16 %v1053
        %v1069 = vunpack.c.l.b16 %v1054
        %v1070 = vunpack.c.l.b16 %v1055
        %v1071 = vpack.c.b16 %v1068, %v1067
        %v1072 = vpack.c.b16 %v1070, %v1069
        %1075 = vmatprep.subr.bf16.mxu0 0
        %1076 = vmatpush1.bf16.msra.mxu0 %v1071
        %1077 = vmatprep.subr.bf16.mxu0 0
        %1078 = vmatpush1.bf16.msra.mxu0 %v1072
        %1079 = vmatprep.subr.bf16.mxu0 0
        %1080 = vmatpush1.bf16.msra.mxu0 0
        %1081 = vmatprep.subr.bf16.mxu0 0
        %1082 = vmatpush1.bf16.msra.mxu0 0
        %1083 = vmatprep.subr.bf16.mxu0 0
        %1084 = vmatpush1.bf16.msra.mxu0 0
        %1085 = vmatprep.subr.bf16.mxu0 0
        %1086 = vmatpush1.bf16.msra.mxu0 0
        %1087 = vmatprep.subr.bf16.mxu0 0
        %1088 = vmatpush1.bf16.msra.mxu0 0
        %1089 = vmatprep.subr.bf16.mxu0 0
        %1090 = vmatpush1.bf16.msra.mxu0 0
        %1091 = vmatprep.subr.bf16.mxu0 0
        %1092 = vmatpush1.bf16.msra.mxu0 0
        %1093 = vmatprep.subr.bf16.mxu0 0
        %1094 = vmatpush1.bf16.msra.mxu0 0
        %1095 = vmatprep.subr.bf16.mxu0 0
        %1096 = vmatpush1.bf16.msra.mxu0 0
        %1097 = vmatprep.subr.bf16.mxu0 0
        %1098 = vmatpush1.bf16.msra.mxu0 0
        %1099 = vmatprep.subr.bf16.mxu0 0
        %1100 = vmatpush1.bf16.msra.mxu0 0
        %1101 = vmatprep.subr.bf16.mxu0 0
        %1102 = vmatpush1.bf16.msra.mxu0 0
        %1103 = vmatprep.subr.bf16.mxu0 0
        %1104 = vmatpush1.bf16.msra.mxu0 0
        %1105 = vmatprep.subr.bf16.mxu0 0
        %1106 = vmatpush1.bf16.msra.mxu0 0
        %1107 = vmatprep.mubr.bf16.mxu0 0
        %1108 = vmatmul.mubr.bf16.gmra.mrb[0].mxu0 %v945
        %v1109 = vpop.f32.mrb[0].mxu0
        %v1110 = vadd.f32 %v1061, %v1109
        %v1111 = vpop.f32.mrb[0].mxu0
        %v1112 = vpop.f32.mrb[0].mxu0
        %v1113 = vpop.f32.mrb[0].mxu0
        %1114 = vdwg.mxu0
        %v1115 = vpack.c.bf16 %v1110, %v1110
        %vm1116 = vcmask 64512
        %v1118 = vsel %vm1116, %v987, 0
        %v1121 = vsel %vm1116, %v1051, 0
        %1123 = vmatprep.subr.bf16.mxu0 0
        %1124 = vmatpush1.bf16.xpose.msra.mxu0 %v1121
        %1125 = vmatprep.subr.bf16.mxu0 0
        %1126 = vmatpush1.bf16.xpose.msra.mxu0 0
        %1127 = vmatprep.subr.bf16.mxu0 0
        %1128 = vmatpush1.bf16.xpose.msra.mxu0 0
        %1129 = vmatprep.subr.bf16.mxu0 0
        %1130 = vmatpush1.bf16.xpose.msra.mxu0 0
        %1131 = vmatprep.subr.bf16.mxu0 0
        %1132 = vmatpush1.bf16.xpose.msra.mxu0 0
        %1133 = vmatprep.subr.bf16.mxu0 0
        %1134 = vmatpush1.bf16.xpose.msra.mxu0 0
        %1135 = vmatprep.subr.bf16.mxu0 0
        %1136 = vmatpush1.bf16.xpose.msra.mxu0 0
        %1137 = vmatprep.subr.bf16.mxu0 0
        %1138 = vmatpush1.bf16.xpose.msra.mxu0 0
        %1139 = vmatprep.subr.bf16.mxu0 0
        %1140 = vmatpush1.bf16.xpose.msra.mxu0 0
        %1141 = vmatprep.subr.bf16.mxu0 0
        %1142 = vmatpush1.bf16.xpose.msra.mxu0 0
        %1143 = vmatprep.subr.bf16.mxu0 0
        %1144 = vmatpush1.bf16.xpose.msra.mxu0 0
        %1145 = vmatprep.subr.bf16.mxu0 0
        %1146 = vmatpush1.bf16.xpose.msra.mxu0 0
        %1147 = vmatprep.subr.bf16.mxu0 0
        %1148 = vmatpush1.bf16.xpose.msra.mxu0 0
        %1149 = vmatprep.subr.bf16.mxu0 0
        %1150 = vmatpush1.bf16.xpose.msra.mxu0 0
        %1151 = vmatprep.subr.bf16.mxu0 0
        %1152 = vmatpush1.bf16.xpose.msra.mxu0 0
        %1153 = vmatprep.subr.bf16.mxu0 0
        %1154 = vmatpush1.bf16.xpose.msra.mxu0 0
        %1155 = vmatprep.mubr.bf16.mxu0 0
        %1156 = vmatmul.mubr.bf16.gmra.mrb[0].mxu0 %v1118
        %v1157 = vpop.f32.mrb[0].mxu0
        %v1158 = vadd.f32 0.0, %v1157
        %v1159 = vpop.f32.mrb[0].mxu0
        %v1160 = vpop.f32.mrb[0].mxu0
        %v1161 = vpop.f32.mrb[0].mxu0
        %1162 = vdwg.mxu0
        %v1163 = vmul.f32 %v1158, 0.35355338
        %v1165 = vlaneseq
        %v1166 = vshrl.u32 %v1165, 7
        %v1167 = vsub.s32 0, %v1166
        %v1168 = vrot.slane %v919, %v1167
        %v1170 = vadd.f32 %v1163, %v1168
        %v1171 = vsel %vm1116, %v1170, -inf
        %1172 = vmax.xlane.f32.xlu0 %v1171
        %v1173 = vpop.xlane.xlu0 %1172
        %v1174 = vsub.f32 %v1170, %v1173
        %v1175 = vmul.f32 %v1174, 1.442695
        %v1176 = vpow.pop %v1175
        %v1177 = vsel %vm1116, %v1176, 0.0
        %1178 = vadd.xlane.f32.xlu0 %v1177
        %v1179 = vpop.xlane.xlu0 %1178
        %v1180 = vrcp.pop %v1179
        %v1181 = vmul.f32 %v1176, %v1180
        %v1182 = vpack.c.bf16 %v1181, %v1181
        %v1184 = vsel %vm1116, %v1182, 0
        %vm1186 = vcmask 1043456
        %v1188 = vsel %vm1186, %v1115, 0
        %1190 = vmatprep.subr.bf16.mxu0 0
        %1191 = vmatpush1.bf16.msra.mxu0 %v1188
        %1192 = vmatprep.subr.bf16.mxu0 0
        %1193 = vmatpush1.bf16.msra.mxu0 0
        %1194 = vmatprep.subr.bf16.mxu0 0
        %1195 = vmatpush1.bf16.msra.mxu0 0
        %1196 = vmatprep.subr.bf16.mxu0 0
        %1197 = vmatpush1.bf16.msra.mxu0 0
        %1198 = vmatprep.subr.bf16.mxu0 0
        %1199 = vmatpush1.bf16.msra.mxu0 0
        %1200 = vmatprep.subr.bf16.mxu0 0
        %1201 = vmatpush1.bf16.msra.mxu0 0
        %1202 = vmatprep.subr.bf16.mxu0 0
        %1203 = vmatpush1.bf16.msra.mxu0 0
        %1204 = vmatprep.subr.bf16.mxu0 0
        %1205 = vmatpush1.bf16.msra.mxu0 0
        %1206 = vmatprep.subr.bf16.mxu0 0
        %1207 = vmatpush1.bf16.msra.mxu0 0
        %1208 = vmatprep.subr.bf16.mxu0 0
        %1209 = vmatpush1.bf16.msra.mxu0 0
        %1210 = vmatprep.subr.bf16.mxu0 0
        %1211 = vmatpush1.bf16.msra.mxu0 0
        %1212 = vmatprep.subr.bf16.mxu0 0
        %1213 = vmatpush1.bf16.msra.mxu0 0
        %1214 = vmatprep.subr.bf16.mxu0 0
        %1215 = vmatpush1.bf16.msra.mxu0 0
        %1216 = vmatprep.subr.bf16.mxu0 0
        %1217 = vmatpush1.bf16.msra.mxu0 0
        %1218 = vmatprep.subr.bf16.mxu0 0
        %1219 = vmatpush1.bf16.msra.mxu0 0
        %1220 = vmatprep.subr.bf16.mxu0 0
        %1221 = vmatpush1.bf16.msra.mxu0 0
        %1222 = vmatprep.mubr.bf16.mxu0 0
        %1223 = vmatmul.mubr.bf16.gmra.mrb[0].mxu0 %v1184
        %v1224 = vpop.f32.mrb[0].mxu0
        %v1225 = vadd.f32 0.0, %v1224
        %v1226 = vpop.f32.mrb[0].mxu0
        %v1227 = vpop.f32.mrb[0].mxu0
        %v1228 = vpop.f32.mrb[0].mxu0
        %1229 = vdwg.mxu0
        %1230 = vst.msk [vmem:[#allocation2] sm:$0xff] %vm1116, %v1225
        %1232 = vrot.lane.b32.xlu0 %v987, 120
        %v1233 = vpop.permute.xlu0 %1232
        %1235 = vrot.lane.b32.xlu0 %v1051, 120
        %v1236 = vpop.permute.xlu0 %1235
        %v1238 = vsel %vm1116, %v1233, 0
        %v1241 = vsel %vm1116, %v1236, 0
        %1243 = vmatprep.subr.bf16.mxu0 0
        %1244 = vmatpush1.bf16.xpose.msra.mxu0 %v1241
        %1245 = vmatprep.subr.bf16.mxu0 0
        %1246 = vmatpush1.bf16.xpose.msra.mxu0 0
        %1247 = vmatprep.subr.bf16.mxu0 0
        %1248 = vmatpush1.bf16.xpose.msra.mxu0 0
        %1249 = vmatprep.subr.bf16.mxu0 0
        %1250 = vmatpush1.bf16.xpose.msra.mxu0 0
        %1251 = vmatprep.subr.bf16.mxu0 0
        %1252 = vmatpush1.bf16.xpose.msra.mxu0 0
        %1253 = vmatprep.subr.bf16.mxu0 0
        %1254 = vmatpush1.bf16.xpose.msra.mxu0 0
        %1255 = vmatprep.subr.bf16.mxu0 0
        %1256 = vmatpush1.bf16.xpose.msra.mxu0 0
        %1257 = vmatprep.subr.bf16.mxu0 0
        %1258 = vmatpush1.bf16.xpose.msra.mxu0 0
        %1259 = vmatprep.subr.bf16.mxu0 0
        %1260 = vmatpush1.bf16.xpose.msra.mxu0 0
        %1261 = vmatprep.subr.bf16.mxu0 0
        %1262 = vmatpush1.bf16.xpose.msra.mxu0 0
        %1263 = vmatprep.subr.bf16.mxu0 0
        %1264 = vmatpush1.bf16.xpose.msra.mxu0 0
        %1265 = vmatprep.subr.bf16.mxu0 0
        %1266 = vmatpush1.bf16.xpose.msra.mxu0 0
        %1267 = vmatprep.subr.bf16.mxu0 0
        %1268 = vmatpush1.bf16.xpose.msra.mxu0 0
        %1269 = vmatprep.subr.bf16.mxu0 0
        %1270 = vmatpush1.bf16.xpose.msra.mxu0 0
        %1271 = vmatprep.subr.bf16.mxu0 0
        %1272 = vmatpush1.bf16.xpose.msra.mxu0 0
        %1273 = vmatprep.subr.bf16.mxu0 0
        %1274 = vmatpush1.bf16.xpose.msra.mxu0 0
        %1275 = vmatprep.mubr.bf16.mxu0 0
        %1276 = vmatmul.mubr.bf16.gmra.mrb[0].mxu0 %v1238
        %v1277 = vpop.f32.mrb[0].mxu0
        %v1278 = vadd.f32 0.0, %v1277
        %v1279 = vpop.f32.mrb[0].mxu0
        %v1280 = vpop.f32.mrb[0].mxu0
        %v1281 = vpop.f32.mrb[0].mxu0
        %1282 = vdwg.mxu0
        %v1283 = vmul.f32 %v1278, 0.35355338
        %v1284 = vadd.f32 %v1283, %v1168
        %v1285 = vsel %vm1116, %v1284, -inf
        %1286 = vmax.xlane.f32.xlu0 %v1285
        %v1287 = vpop.xlane.xlu0 %1286
        %v1288 = vsub.f32 %v1284, %v1287
        %v1289 = vmul.f32 %v1288, 1.442695
        %v1290 = vpow.pop %v1289
        %v1291 = vsel %vm1116, %v1290, 0.0
        %1292 = vadd.xlane.f32.xlu0 %v1291
        %v1293 = vpop.xlane.xlu0 %1292
        %v1294 = vrcp.pop %v1293
        %v1295 = vmul.f32 %v1290, %v1294
        %v1296 = vpack.c.bf16 %v1295, %v1295
        %1298 = vrot.lane.b32.xlu0 %v1115, 120
        %v1299 = vpop.permute.xlu0 %1298
        %v1301 = vsel %vm1116, %v1296, 0
        %v1304 = vsel %vm1186, %v1299, 0
        %1306 = vmatprep.subr.bf16.mxu0 0
        %1307 = vmatpush1.bf16.msra.mxu0 %v1304
        %1308 = vmatprep.subr.bf16.mxu0 0
        %1309 = vmatpush1.bf16.msra.mxu0 0
        %1310 = vmatprep.subr.bf16.mxu0 0
        %1311 = vmatpush1.bf16.msra.mxu0 0
        %1312 = vmatprep.subr.bf16.mxu0 0
        %1313 = vmatpush1.bf16.msra.mxu0 0
        %1314 = vmatprep.subr.bf16.mxu0 0
        %1315 = vmatpush1.bf16.msra.mxu0 0
        %1316 = vmatprep.subr.bf16.mxu0 0
        %1317 = vmatpush1.bf16.msra.mxu0 0
        %1318 = vmatprep.subr.bf16.mxu0 0
        %1319 = vmatpush1.bf16.msra.mxu0 0
        %1320 = vmatprep.subr.bf16.mxu0 0
        %1321 = vmatpush1.bf16.msra.mxu0 0
        %1322 = vmatprep.subr.bf16.mxu0 0
        %1323 = vmatpush1.bf16.msra.mxu0 0
        %1324 = vmatprep.subr.bf16.mxu0 0
        %1325 = vmatpush1.bf16.msra.mxu0 0
        %1326 = vmatprep.subr.bf16.mxu0 0
        %1327 = vmatpush1.bf16.msra.mxu0 0
        %1328 = vmatprep.subr.bf16.mxu0 0
        %1329 = vmatpush1.bf16.msra.mxu0 0
        %1330 = vmatprep.subr.bf16.mxu0 0
        %1331 = vmatpush1.bf16.msra.mxu0 0
        %1332 = vmatprep.subr.bf16.mxu0 0
        %1333 = vmatpush1.bf16.msra.mxu0 0
        %1334 = vmatprep.subr.bf16.mxu0 0
        %1335 = vmatpush1.bf16.msra.mxu0 0
        %1336 = vmatprep.subr.bf16.mxu0 0
        %1337 = vmatpush1.bf16.msra.mxu0 0
        %1338 = vmatprep.mubr.bf16.mxu0 0
        %1339 = vmatmul.mubr.bf16.gmra.mrb[0].mxu0 %v1301
        %v1340 = vpop.f32.mrb[0].mxu0
        %v1341 = vadd.f32 0.0, %v1340
        %v1342 = vpop.f32.mrb[0].mxu0
        %v1343 = vpop.f32.mrb[0].mxu0
        %v1344 = vpop.f32.mrb[0].mxu0
        %1345 = vdwg.mxu0
        %1347 = vrot.lane.b32.xlu0 %v1341, 8
        %v1348 = vpop.permute.xlu0 %1347
        %vm1350 = vcmask 130112
        %1351 = vst.msk [vmem:[#allocation2] sm:$0xff] %vm1350, %v1348
        %1352 = vrot.lane.b32.xlu0 %v987, 112
        %v1353 = vpop.permute.xlu0 %1352
        %1354 = vrot.lane.b32.xlu0 %v1051, 112
        %v1355 = vpop.permute.xlu0 %1354
        %v1357 = vsel %vm1116, %v1353, 0
        %v1360 = vsel %vm1116, %v1355, 0
        %1362 = vmatprep.subr.bf16.mxu0 0
        %1363 = vmatpush1.bf16.xpose.msra.mxu0 %v1360
        %1364 = vmatprep.subr.bf16.mxu0 0
        %1365 = vmatpush1.bf16.xpose.msra.mxu0 0
        %1366 = vmatprep.subr.bf16.mxu0 0
        %1367 = vmatpush1.bf16.xpose.msra.mxu0 0
        %1368 = vmatprep.subr.bf16.mxu0 0
        %1369 = vmatpush1.bf16.xpose.msra.mxu0 0
        %1370 = vmatprep.subr.bf16.mxu0 0
        %1371 = vmatpush1.bf16.xpose.msra.mxu0 0
        %1372 = vmatprep.subr.bf16.mxu0 0
        %1373 = vmatpush1.bf16.xpose.msra.mxu0 0
        %1374 = vmatprep.subr.bf16.mxu0 0
        %1375 = vmatpush1.bf16.xpose.msra.mxu0 0
        %1376 = vmatprep.subr.bf16.mxu0 0
        %1377 = vmatpush1.bf16.xpose.msra.mxu0 0
        %1378 = vmatprep.subr.bf16.mxu0 0
        %1379 = vmatpush1.bf16.xpose.msra.mxu0 0
        %1380 = vmatprep.subr.bf16.mxu0 0
        %1381 = vmatpush1.bf16.xpose.msra.mxu0 0
        %1382 = vmatprep.subr.bf16.mxu0 0
        %1383 = vmatpush1.bf16.xpose.msra.mxu0 0
        %1384 = vmatprep.subr.bf16.mxu0 0
        %1385 = vmatpush1.bf16.xpose.msra.mxu0 0
        %1386 = vmatprep.subr.bf16.mxu0 0
        %1387 = vmatpush1.bf16.xpose.msra.mxu0 0
        %1388 = vmatprep.subr.bf16.mxu0 0
        %1389 = vmatpush1.bf16.xpose.msra.mxu0 0
        %1390 = vmatprep.subr.bf16.mxu0 0
        %1391 = vmatpush1.bf16.xpose.msra.mxu0 0
        %1392 = vmatprep.subr.bf16.mxu0 0
        %1393 = vmatpush1.bf16.xpose.msra.mxu0 0
        %1394 = vmatprep.mubr.bf16.mxu0 0
        %1395 = vmatmul.mubr.bf16.gmra.mrb[0].mxu0 %v1357
        %v1396 = vpop.f32.mrb[0].mxu0
        %v1397 = vadd.f32 0.0, %v1396
        %v1398 = vpop.f32.mrb[0].mxu0
        %v1399 = vpop.f32.mrb[0].mxu0
        %v1400 = vpop.f32.mrb[0].mxu0
        %1401 = vdwg.mxu0
        %v1402 = vmul.f32 %v1397, 0.35355338
        %v1403 = vadd.f32 %v1402, %v1168
        %v1404 = vsel %vm1116, %v1403, -inf
        %1405 = vmax.xlane.f32.xlu0 %v1404
        %v1406 = vpop.xlane.xlu0 %1405
        %v1407 = vsub.f32 %v1403, %v1406
        %v1408 = vmul.f32 %v1407, 1.442695
        %v1409 = vpow.pop %v1408
        %v1410 = vsel %vm1116, %v1409, 0.0
        %1411 = vadd.xlane.f32.xlu0 %v1410
        %v1412 = vpop.xlane.xlu0 %1411
        %v1413 = vrcp.pop %v1412
        %v1414 = vmul.f32 %v1409, %v1413
        %v1415 = vpack.c.bf16 %v1414, %v1414
        %1416 = vrot.lane.b32.xlu0 %v1115, 112
        %v1417 = vpop.permute.xlu0 %1416
        %v1419 = vsel %vm1116, %v1415, 0
        %v1422 = vsel %vm1186, %v1417, 0
        %1424 = vmatprep.subr.bf16.mxu0 0
        %1425 = vmatpush1.bf16.msra.mxu0 %v1422
        %1426 = vmatprep.subr.bf16.mxu0 0
        %1427 = vmatpush1.bf16.msra.mxu0 0
        %1428 = vmatprep.subr.bf16.mxu0 0
        %1429 = vmatpush1.bf16.msra.mxu0 0
        %1430 = vmatprep.subr.bf16.mxu0 0
        %1431 = vmatpush1.bf16.msra.mxu0 0
        %1432 = vmatprep.subr.bf16.mxu0 0
        %1433 = vmatpush1.bf16.msra.mxu0 0
        %1434 = vmatprep.subr.bf16.mxu0 0
        %1435 = vmatpush1.bf16.msra.mxu0 0
        %1436 = vmatprep.subr.bf16.mxu0 0
        %1437 = vmatpush1.bf16.msra.mxu0 0
        %1438 = vmatprep.subr.bf16.mxu0 0
        %1439 = vmatpush1.bf16.msra.mxu0 0
        %1440 = vmatprep.subr.bf16.mxu0 0
        %1441 = vmatpush1.bf16.msra.mxu0 0
        %1442 = vmatprep.subr.bf16.mxu0 0
        %1443 = vmatpush1.bf16.msra.mxu0 0
        %1444 = vmatprep.subr.bf16.mxu0 0
        %1445 = vmatpush1.bf16.msra.mxu0 0
        %1446 = vmatprep.subr.bf16.mxu0 0
        %1447 = vmatpush1.bf16.msra.mxu0 0
        %1448 = vmatprep.subr.bf16.mxu0 0
        %1449 = vmatpush1.bf16.msra.mxu0 0
        %1450 = vmatprep.subr.bf16.mxu0 0
        %1451 = vmatpush1.bf16.msra.mxu0 0
        %1452 = vmatprep.subr.bf16.mxu0 0
        %1453 = vmatpush1.bf16.msra.mxu0 0
        %1454 = vmatprep.subr.bf16.mxu0 0
        %1455 = vmatpush1.bf16.msra.mxu0 0
        %1456 = vmatprep.mubr.bf16.mxu0 0
        %1457 = vmatmul.mubr.bf16.gmra.mrb[0].mxu0 %v1419
        %v1458 = vpop.f32.mrb[0].mxu0
        %v1459 = vadd.f32 0.0, %v1458
        %v1460 = vpop.f32.mrb[0].mxu0
        %v1461 = vpop.f32.mrb[0].mxu0
        %v1462 = vpop.f32.mrb[0].mxu0
        %1463 = vdwg.mxu0
        %1465 = vrot.lane.b32.xlu0 %v1459, 16
        %v1466 = vpop.permute.xlu0 %1465
        %vm1468 = vcmask 195712
        %1469 = vst.msk [vmem:[#allocation2] sm:$0xff] %vm1468, %v1466
        %1470 = vrot.lane.b32.xlu0 %v987, 104
        %v1471 = vpop.permute.xlu0 %1470
        %1472 = vrot.lane.b32.xlu0 %v1051, 104
        %v1473 = vpop.permute.xlu0 %1472
        %v1475 = vsel %vm1116, %v1471, 0
        %v1478 = vsel %vm1116, %v1473, 0
        %1480 = vmatprep.subr.bf16.mxu0 0
        %1481 = vmatpush1.bf16.xpose.msra.mxu0 %v1478
        %1482 = vmatprep.subr.bf16.mxu0 0
        %1483 = vmatpush1.bf16.xpose.msra.mxu0 0
        %1484 = vmatprep.subr.bf16.mxu0 0
        %1485 = vmatpush1.bf16.xpose.msra.mxu0 0
        %1486 = vmatprep.subr.bf16.mxu0 0
        %1487 = vmatpush1.bf16.xpose.msra.mxu0 0
        %1488 = vmatprep.subr.bf16.mxu0 0
        %1489 = vmatpush1.bf16.xpose.msra.mxu0 0
        %1490 = vmatprep.subr.bf16.mxu0 0
        %1491 = vmatpush1.bf16.xpose.msra.mxu0 0
        %1492 = vmatprep.subr.bf16.mxu0 0
        %1493 = vmatpush1.bf16.xpose.msra.mxu0 0
        %1494 = vmatprep.subr.bf16.mxu0 0
        %1495 = vmatpush1.bf16.xpose.msra.mxu0 0
        %1496 = vmatprep.subr.bf16.mxu0 0
        %1497 = vmatpush1.bf16.xpose.msra.mxu0 0
        %1498 = vmatprep.subr.bf16.mxu0 0
        %1499 = vmatpush1.bf16.xpose.msra.mxu0 0
        %1500 = vmatprep.subr.bf16.mxu0 0
        %1501 = vmatpush1.bf16.xpose.msra.mxu0 0
        %1502 = vmatprep.subr.bf16.mxu0 0
        %1503 = vmatpush1.bf16.xpose.msra.mxu0 0
        %1504 = vmatprep.subr.bf16.mxu0 0
        %1505 = vmatpush1.bf16.xpose.msra.mxu0 0
        %1506 = vmatprep.subr.bf16.mxu0 0
        %1507 = vmatpush1.bf16.xpose.msra.mxu0 0
        %1508 = vmatprep.subr.bf16.mxu0 0
        %1509 = vmatpush1.bf16.xpose.msra.mxu0 0
        %1510 = vmatprep.subr.bf16.mxu0 0
        %1511 = vmatpush1.bf16.xpose.msra.mxu0 0
        %1512 = vmatprep.mubr.bf16.mxu0 0
        %1513 = vmatmul.mubr.bf16.gmra.mrb[0].mxu0 %v1475
        %v1514 = vpop.f32.mrb[0].mxu0
        %v1515 = vadd.f32 0.0, %v1514
        %v1516 = vpop.f32.mrb[0].mxu0
        %v1517 = vpop.f32.mrb[0].mxu0
        %v1518 = vpop.f32.mrb[0].mxu0
        %1519 = vdwg.mxu0
        %v1520 = vmul.f32 %v1515, 0.35355338
        %v1521 = vadd.f32 %v1520, %v1168
        %v1522 = vsel %vm1116, %v1521, -inf
        %1523 = vmax.xlane.f32.xlu0 %v1522
        %v1524 = vpop.xlane.xlu0 %1523
        %v1525 = vsub.f32 %v1521, %v1524
        %v1526 = vmul.f32 %v1525, 1.442695
        %v1527 = vpow.pop %v1526
        %v1528 = vsel %vm1116, %v1527, 0.0
        %1529 = vadd.xlane.f32.xlu0 %v1528
        %v1530 = vpop.xlane.xlu0 %1529
        %v1531 = vrcp.pop %v1530
        %v1532 = vmul.f32 %v1527, %v1531
        %v1533 = vpack.c.bf16 %v1532, %v1532
        %1534 = vrot.lane.b32.xlu0 %v1115, 104
        %v1535 = vpop.permute.xlu0 %1534
        %v1537 = vsel %vm1116, %v1533, 0
        %v1540 = vsel %vm1186, %v1535, 0
        %1542 = vmatprep.subr.bf16.mxu0 0
        %1543 = vmatpush1.bf16.msra.mxu0 %v1540
        %1544 = vmatprep.subr.bf16.mxu0 0
        %1545 = vmatpush1.bf16.msra.mxu0 0
        %1546 = vmatprep.subr.bf16.mxu0 0
        %1547 = vmatpush1.bf16.msra.mxu0 0
        %1548 = vmatprep.subr.bf16.mxu0 0
        %1549 = vmatpush1.bf16.msra.mxu0 0
        %1550 = vmatprep.subr.bf16.mxu0 0
        %1551 = vmatpush1.bf16.msra.mxu0 0
        %1552 = vmatprep.subr.bf16.mxu0 0
        %1553 = vmatpush1.bf16.msra.mxu0 0
        %1554 = vmatprep.subr.bf16.mxu0 0
        %1555 = vmatpush1.bf16.msra.mxu0 0
        %1556 = vmatprep.subr.bf16.mxu0 0
        %1557 = vmatpush1.bf16.msra.mxu0 0
        %1558 = vmatprep.subr.bf16.mxu0 0
        %1559 = vmatpush1.bf16.msra.mxu0 0
        %1560 = vmatprep.subr.bf16.mxu0 0
        %1561 = vmatpush1.bf16.msra.mxu0 0
        %1562 = vmatprep.subr.bf16.mxu0 0
        %1563 = vmatpush1.bf16.msra.mxu0 0
        %1564 = vmatprep.subr.bf16.mxu0 0
        %1565 = vmatpush1.bf16.msra.mxu0 0
        %1566 = vmatprep.subr.bf16.mxu0 0
        %1567 = vmatpush1.bf16.msra.mxu0 0
        %1568 = vmatprep.subr.bf16.mxu0 0
        %1569 = vmatpush1.bf16.msra.mxu0 0
        %1570 = vmatprep.subr.bf16.mxu0 0
        %1571 = vmatpush1.bf16.msra.mxu0 0
        %1572 = vmatprep.subr.bf16.mxu0 0
        %1573 = vmatpush1.bf16.msra.mxu0 0
        %1574 = vmatprep.mubr.bf16.mxu0 0
        %1575 = vmatmul.mubr.bf16.gmra.mrb[0].mxu0 %v1537
        %v1576 = vpop.f32.mrb[0].mxu0
        %v1577 = vadd.f32 0.0, %v1576
        %v1578 = vpop.f32.mrb[0].mxu0
        %v1579 = vpop.f32.mrb[0].mxu0
        %v1580 = vpop.f32.mrb[0].mxu0
        %1581 = vdwg.mxu0
        %1583 = vrot.lane.b32.xlu0 %v1577, 24
        %v1584 = vpop.permute.xlu0 %1583
        %vm1586 = vcmask 261312
        %1587 = vst.msk [vmem:[#allocation2] sm:$0xff] %vm1586, %v1584
        %v1588 = vld [vmem:[#allocation2] sm:$0xff]
        %v1589 = vld [vmem:[#allocation17] sm:$0xf]
        %v1590 = vld [vmem:[#allocation17 + $0x4] sm:$0xf]
        %v1591 = vld [vmem:[#allocation17 + $0x8] sm:$0xf]
        %v1592 = vld [vmem:[#allocation17 + $0xc] sm:$0xf]
        %v1593 = vpack.c.bf16 %v1588, %v1588
        %v1594 = vld [vmem:[#allocation18] sm:$0x1]
        %v1596 = vlaneseq
        %v1597 = vshrl.u32 %v1596, 7
        %v1598 = vsub.s32 0, %v1597
        %v1599 = vrot.slane %v1594, %v1598
        %v1605 = vunpack.c.l.b16 %v1589
        %v1606 = vunpack.c.l.b16 %v1590
        %v1607 = vunpack.c.l.b16 %v1591
        %v1608 = vunpack.c.l.b16 %v1592
        %v1609 = vpack.c.b16 %v1606, %v1605
        %v1610 = vpack.c.b16 %v1608, %v1607
        %v1614 = vsel %vm943, %v1593, 0
        %1616 = vmatprep.subr.bf16.mxu0 0
        %1617 = vmatpush1.bf16.msra.mxu0 %v1609
        %1618 = vmatprep.subr.bf16.mxu0 0
        %1619 = vmatpush1.bf16.msra.mxu0 %v1610
        %1620 = vmatprep.subr.bf16.mxu0 0
        %1621 = vmatpush1.bf16.msra.mxu0 0
        %1622 = vmatprep.subr.bf16.mxu0 0
        %1623 = vmatpush1.bf16.msra.mxu0 0
        %1624 = vmatprep.subr.bf16.mxu0 0
        %1625 = vmatpush1.bf16.msra.mxu0 0
        %1626 = vmatprep.subr.bf16.mxu0 0
        %1627 = vmatpush1.bf16.msra.mxu0 0
        %1628 = vmatprep.subr.bf16.mxu0 0
        %1629 = vmatpush1.bf16.msra.mxu0 0
        %1630 = vmatprep.subr.bf16.mxu0 0
        %1631 = vmatpush1.bf16.msra.mxu0 0
        %1632 = vmatprep.subr.bf16.mxu0 0
        %1633 = vmatpush1.bf16.msra.mxu0 0
        %1634 = vmatprep.subr.bf16.mxu0 0
        %1635 = vmatpush1.bf16.msra.mxu0 0
        %1636 = vmatprep.subr.bf16.mxu0 0
        %1637 = vmatpush1.bf16.msra.mxu0 0
        %1638 = vmatprep.subr.bf16.mxu0 0
        %1639 = vmatpush1.bf16.msra.mxu0 0
        %1640 = vmatprep.subr.bf16.mxu0 0
        %1641 = vmatpush1.bf16.msra.mxu0 0
        %1642 = vmatprep.subr.bf16.mxu0 0
        %1643 = vmatpush1.bf16.msra.mxu0 0
        %1644 = vmatprep.subr.bf16.mxu0 0
        %1645 = vmatpush1.bf16.msra.mxu0 0
        %1646 = vmatprep.subr.bf16.mxu0 0
        %1647 = vmatpush1.bf16.msra.mxu0 0
        %1648 = vmatprep.mubr.bf16.mxu0 0
        %1649 = vmatmul.mubr.bf16.gmra.mrb[0].mxu0 %v1614
        %v1650 = vpop.f32.mrb[0].mxu0
        %v1651 = vadd.f32 %v1599, %v1650
        %v1652 = vpop.f32.mrb[0].mxu0
        %v1653 = vpop.f32.mrb[0].mxu0
        %v1654 = vpop.f32.mrb[0].mxu0
        %1655 = vdwg.mxu0
        %v1656 = vunpack.c.l.bf16 %v918
        %v1657 = vadd.f32 %v1656, %v1651
        %v1658 = vld [vmem:[#allocation20] sm:$0x1]
        %v1659 = vld [vmem:[#allocation21] sm:$0x1]
        %v1660 = vsel %vm943, %v1657, 0.0
        %1661 = vadd.xlane.f32.xlu0 %v1660
        %v1662 = vpop.xlane.xlu0 %1661
        %v1663 = vrcp.pop 32.0
        %v1664 = vmul.f32 %v1662, %v1663
        %v1665 = vsub.f32 %v1657, %v1664
        %v1666 = vmul.f32 %v1665, %v1665
        %v1667 = vsel %vm943, %v1666, 0.0
        %1668 = vadd.xlane.f32.xlu0 %v1667
        %v1669 = vpop.xlane.xlu0 %1668
        %v1670 = vmul.f32 %v1669, %v1663
        %v1671 = vadd.f32 %v1670, 1e-05
        %v1672 = vrsqrt.pop %v1671
        %v1673 = vmul.f32 %v1665, %v1672
        %v1675 = vlaneseq
        %v1676 = vshrl.u32 %v1675, 7
        %v1677 = vsub.s32 0, %v1676
        %v1678 = vrot.slane %v1658, %v1677
        %v1680 = vmul.f32 %v1673, %v1678
        %v1682 = vlaneseq
        %v1683 = vshrl.u32 %v1682, 7
        %v1684 = vsub.s32 0, %v1683
        %v1685 = vrot.slane %v1659, %v1684
        %v1687 = vadd.f32 %v1680, %v1685
        %v1688 = vld [vmem:[#allocation23] sm:$0xf]
        %v1689 = vld [vmem:[#allocation23 + $0x4] sm:$0xf]
        %v1690 = vld [vmem:[#allocation23 + $0x8] sm:$0xf]
        %v1691 = vld [vmem:[#allocation23 + $0xc] sm:$0xf]
        %v1692 = vpack.c.bf16 %v1687, %v1687
        %v1693 = vld [vmem:[#allocation24] sm:$0x1]
        %v1695 = vlaneseq
        %v1696 = vshrl.u32 %v1695, 7
        %v1697 = vsub.s32 0, %v1696
        %v1698 = vrot.slane %v1693, %v1697
        %v1704 = vunpack.c.l.b16 %v1688
        %v1705 = vunpack.c.l.b16 %v1689
        %v1706 = vunpack.c.l.b16 %v1690
        %v1707 = vunpack.c.l.b16 %v1691
        %v1708 = vpack.c.b16 %v1705, %v1704
        %v1709 = vpack.c.b16 %v1707, %v1706
        %v1713 = vsel %vm943, %v1692, 0
        %1715 = vmatprep.subr.bf16.mxu0 0
        %1716 = vmatpush1.bf16.msra.mxu0 %v1708
        %1717 = vmatprep.subr.bf16.mxu0 0
        %1718 = vmatpush1.bf16.msra.mxu0 %v1709
        %1719 = vmatprep.subr.bf16.mxu0 0
        %1720 = vmatpush1.bf16.msra.mxu0 0
        %1721 = vmatprep.subr.bf16.mxu0 0
        %1722 = vmatpush1.bf16.msra.mxu0 0
        %1723 = vmatprep.subr.bf16.mxu0 0
        %1724 = vmatpush1.bf16.msra.mxu0 0
        %1725 = vmatprep.subr.bf16.mxu0 0
        %1726 = vmatpush1.bf16.msra.mxu0 0
        %1727 = vmatprep.subr.bf16.mxu0 0
        %1728 = vmatpush1.bf16.msra.mxu0 0
        %1729 = vmatprep.subr.bf16.mxu0 0
        %1730 = vmatpush1.bf16.msra.mxu0 0
        %1731 = vmatprep.subr.bf16.mxu0 0
        %1732 = vmatpush1.bf16.msra.mxu0 0
        %1733 = vmatprep.subr.bf16.mxu0 0
        %1734 = vmatpush1.bf16.msra.mxu0 0
        %1735 = vmatprep.subr.bf16.mxu0 0
        %1736 = vmatpush1.bf16.msra.mxu0 0
        %1737 = vmatprep.subr.bf16.mxu0 0
        %1738 = vmatpush1.bf16.msra.mxu0 0
        %1739 = vmatprep.subr.bf16.mxu0 0
        %1740 = vmatpush1.bf16.msra.mxu0 0
        %1741 = vmatprep.subr.bf16.mxu0 0
        %1742 = vmatpush1.bf16.msra.mxu0 0
        %1743 = vmatprep.subr.bf16.mxu0 0
        %1744 = vmatpush1.bf16.msra.mxu0 0
        %1745 = vmatprep.subr.bf16.mxu0 0
        %1746 = vmatpush1.bf16.msra.mxu0 0
        %1747 = vmatprep.mubr.bf16.mxu0 0
        %1748 = vmatmul.mubr.bf16.gmra.mrb[0].mxu0 %v1713
        %v1749 = vpop.f32.mrb[0].mxu0
        %v1750 = vadd.f32 %v1698, %v1749
        %v1751 = vpop.f32.mrb[0].mxu0
        %v1752 = vpop.f32.mrb[0].mxu0
        %v1753 = vpop.f32.mrb[0].mxu0
        %1754 = vdwg.mxu0
        %v1755 = vmax.f32 %v1750, 0.0
        %v1756 = vld [vmem:[#allocation26] sm:$0xf]
        %v1757 = vld [vmem:[#allocation26 + $0x4] sm:$0xf]
        %v1758 = vld [vmem:[#allocation26 + $0x8] sm:$0xf]
        %v1759 = vld [vmem:[#allocation26 + $0xc] sm:$0xf]
        %v1760 = vld [vmem:[#allocation26 + $0x10] sm:$0xf]
        %v1761 = vld [vmem:[#allocation26 + $0x14] sm:$0xf]
        %v1762 = vld [vmem:[#allocation26 + $0x18] sm:$0xf]
        %v1763 = vld [vmem:[#allocation26 + $0x1c] sm:$0xf]
        %v1764 = vpack.c.bf16 %v1755, %v1755
        %v1765 = vld [vmem:[#allocation27] sm:$0x1]
        %v1767 = vlaneseq
        %v1768 = vshrl.u32 %v1767, 7
        %v1769 = vsub.s32 0, %v1768
        %v1770 = vrot.slane %v1765, %v1769
        %v1780 = vunpack.c.l.b16 %v1756
        %v1781 = vunpack.c.l.b16 %v1757
        %v1782 = vunpack.c.l.b16 %v1758
        %v1783 = vunpack.c.l.b16 %v1759
        %v1784 = vunpack.c.l.b16 %v1760
        %v1785 = vunpack.c.l.b16 %v1761
        %v1786 = vunpack.c.l.b16 %v1762
        %v1787 = vunpack.c.l.b16 %v1763
        %v1788 = vpack.c.b16 %v1781, %v1780
        %v1789 = vpack.c.b16 %v1783, %v1782
        %v1790 = vpack.c.b16 %v1785, %v1784
        %v1791 = vpack.c.b16 %v1787, %v1786
        %vm1796 = vcmask 523264
        %v1798 = vsel %vm1796, %v1764, 0
        %1800 = vmatprep.subr.bf16.mxu0 0
        %1801 = vmatpush1.bf16.msra.mxu0 %v1788
        %1802 = vmatprep.subr.bf16.mxu0 0
        %1803 = vmatpush1.bf16.msra.mxu0 %v1789
        %1804 = vmatprep.subr.bf16.mxu0 0
        %1805 = vmatpush1.bf16.msra.mxu0 %v1790
        %1806 = vmatprep.subr.bf16.mxu0 0
        %1807 = vmatpush1.bf16.msra.mxu0 %v1791
        %1808 = vmatprep.subr.bf16.mxu0 0
        %1809 = vmatpush1.bf16.msra.mxu0 0
        %1810 = vmatprep.subr.bf16.mxu0 0
        %1811 = vmatpush1.bf16.msra.mxu0 0
        %1812 = vmatprep.subr.bf16.mxu0 0
        %1813 = vmatpush1.bf16.msra.mxu0 0
        %1814 = vmatprep.subr.bf16.mxu0 0
        %1815 = vmatpush1.bf16.msra.mxu0 0
        %1816 = vmatprep.subr.bf16.mxu0 0
        %1817 = vmatpush1.bf16.msra.mxu0 0
        %1818 = vmatprep.subr.bf16.mxu0 0
        %1819 = vmatpush1.bf16.msra.mxu0 0
        %1820 = vmatprep.subr.bf16.mxu0 0
        %1821 = vmatpush1.bf16.msra.mxu0 0
        %1822 = vmatprep.subr.bf16.mxu0 0
        %1823 = vmatpush1.bf16.msra.mxu0 0
        %1824 = vmatprep.subr.bf16.mxu0 0
        %1825 = vmatpush1.bf16.msra.mxu0 0
        %1826 = vmatprep.subr.bf16.mxu0 0
        %1827 = vmatpush1.bf16.msra.mxu0 0
        %1828 = vmatprep.subr.bf16.mxu0 0
        %1829 = vmatpush1.bf16.msra.mxu0 0
        %1830 = vmatprep.subr.bf16.mxu0 0
        %1831 = vmatpush1.bf16.msra.mxu0 0
        %1832 = vmatprep.mubr.bf16.mxu0 0
        %1833 = vmatmul.mubr.bf16.gmra.mrb[0].mxu0 %v1798
        %v1834 = vpop.f32.mrb[0].mxu0
        %v1835 = vadd.f32 %v1770, %v1834
        %v1836 = vpop.f32.mrb[0].mxu0
        %v1837 = vpop.f32.mrb[0].mxu0
        %v1838 = vpop.f32.mrb[0].mxu0
        %1839 = vdwg.mxu0
        %v1840 = vadd.f32 %v1687, %v1835
        %v1841 = vld [vmem:[#allocation29] sm:$0x1]
        %v1842 = vld [vmem:[#allocation30] sm:$0x1]
        %v1843 = vsel %vm943, %v1840, 0.0
        %1844 = vadd.xlane.f32.xlu0 %v1843
        %v1845 = vpop.xlane.xlu0 %1844
        %v1846 = vmul.f32 %v1845, %v1663
        %v1847 = vsub.f32 %v1840, %v1846
        %v1848 = vmul.f32 %v1847, %v1847
        %v1849 = vsel %vm943, %v1848, 0.0
        %1850 = vadd.xlane.f32.xlu0 %v1849
        %v1851 = vpop.xlane.xlu0 %1850
        %v1852 = vmul.f32 %v1851, %v1663
        %v1853 = vadd.f32 %v1852, 1e-05
        %v1854 = vrsqrt.pop %v1853
        %v1855 = vmul.f32 %v1847, %v1854
        %v1857 = vlaneseq
        %v1858 = vshrl.u32 %v1857, 7
        %v1859 = vsub.s32 0, %v1858
        %v1860 = vrot.slane %v1841, %v1859
        %v1862 = vmul.f32 %v1855, %v1860
        %v1864 = vlaneseq
        %v1865 = vshrl.u32 %v1864, 7
        %v1866 = vsub.s32 0, %v1865
        %v1867 = vrot.slane %v1842, %v1866
        %v1869 = vadd.f32 %v1862, %v1867
        %v1870 = vsel %vm943, %v1869, 0.0
        %v1871 = vrot.slane %v1870, 4
        %v1872 = vadd.f32 %v1870, %v1871
        %v1873 = vrot.slane %v1872, 2
        %v1874 = vadd.f32 %v1872, %v1873
        %v1875 = vrot.slane %v1874, 1
        %v1876 = vadd.f32 %v1874, %v1875
        %v1877 = vrcp.pop 8.0
        %v1878 = vmul.f32 %v1876, %v1877
        %v1879 = vld [vmem:[#allocation32] sm:$0xf]
        %v1880 = vld [vmem:[#allocation32 + $0x4] sm:$0xf]
        %v1881 = vld [vmem:[#allocation32 + $0x8] sm:$0xf]
        %v1882 = vld [vmem:[#allocation32 + $0xc] sm:$0xf]
        %v1883 = vpack.c.bf16 %v1878, %v1878
        %v1884 = vld [vmem:[#allocation33] sm:$0x1]
        %v1889 = vunpack.c.l.b16 %v1879
        %v1890 = vunpack.c.l.b16 %v1880
        %v1891 = vunpack.c.l.b16 %v1881
        %v1892 = vunpack.c.l.b16 %v1882
        %v1893 = vpack.c.b16 %v1890, %v1889
        %v1894 = vpack.c.b16 %v1892, %v1891
        %v1898 = vsel %vm943, %v1883, 0
        %1900 = vmatprep.subr.bf16.mxu0 0
        %1901 = vmatpush1.bf16.msra.mxu0 %v1893
        %1902 = vmatprep.subr.bf16.mxu0 0
        %1903 = vmatpush1.bf16.msra.mxu0 %v1894
        %1904 = vmatprep.subr.bf16.mxu0 0
        %1905 = vmatpush1.bf16.msra.mxu0 0
        %1906 = vmatprep.subr.bf16.mxu0 0
        %1907 = vmatpush1.bf16.msra.mxu0 0
        %1908 = vmatprep.subr.bf16.mxu0 0
        %1909 = vmatpush1.bf16.msra.mxu0 0
        %1910 = vmatprep.subr.bf16.mxu0 0
        %1911 = vmatpush1.bf16.msra.mxu0 0
        %1912 = vmatprep.subr.bf16.mxu0 0
        %1913 = vmatpush1.bf16.msra.mxu0 0
        %1914 = vmatprep.subr.bf16.mxu0 0
        %1915 = vmatpush1.bf16.msra.mxu0 0
        %1916 = vmatprep.subr.bf16.mxu0 0
        %1917 = vmatpush1.bf16.msra.mxu0 0
        %1918 = vmatprep.subr.bf16.mxu0 0
        %1919 = vmatpush1.bf16.msra.mxu0 0
        %1920 = vmatprep.subr.bf16.mxu0 0
        %1921 = vmatpush1.bf16.msra.mxu0 0
        %1922 = vmatprep.subr.bf16.mxu0 0
        %1923 = vmatpush1.bf16.msra.mxu0 0
        %1924 = vmatprep.subr.bf16.mxu0 0
        %1925 = vmatpush1.bf16.msra.mxu0 0
        %1926 = vmatprep.subr.bf16.mxu0 0
        %1927 = vmatpush1.bf16.msra.mxu0 0
        %1928 = vmatprep.subr.bf16.mxu0 0
        %1929 = vmatpush1.bf16.msra.mxu0 0
        %1930 = vmatprep.subr.bf16.mxu0 0
        %1931 = vmatpush1.bf16.msra.mxu0 0
        %1932 = vmatprep.mubr.bf16.mxu0 0
        %1933 = vmatmul.mubr.bf16.gmra.mrb[0].mxu0 %v1898
        %v1934 = vpop.f32.mrb[0].mxu0
        %v1935 = vadd.f32 %v1884, %v1934
        %v1936 = vpop.f32.mrb[0].mxu0
        %v1937 = vpop.f32.mrb[0].mxu0
        %v1938 = vpop.f32.mrb[0].mxu0
        %1939 = vdwg.mxu0
        %vm1940 = vcmask 122880
        %1941 = vst.msk [vmem:[%s916] sm:$0x1] %vm1940, %v1935
        %s1942 = sand.u32 %s487, 1
        %s1943 = scalar_lea.sflag [#allocation5], %s1942
        %s1944 = sand.u32 %s487, 1
        %s1945 = scalar_lea.vmem [#allocation35], %s1944
        // Predicated region
        $region181: #{bert_encoder_forward.5} parent=99 // pred_check
          %p1946 = pneg %p497
        $region182: #{bert_encoder_forward.5} parent=99 // pred_check_branch
          %1948 = sbr.rel (%p1946) target = $region184
        $region183: #{bert_encoder_forward.5} parent=99 // pred_region
          %s1950 = ssub.s32 16, 16
          %1951 = vsyncadd %s1943, %s1950
          %s1952 = smul.addr %s49, 16
          %s1953 = scalar_lea.hbm %s20, %s1952
          %s1955 = sshll.u32 %s1945, 4
          %s1956 = int_to_ptr.vmem [resolvable:$true] %s1955
          %1958 = dma.vmem_to_hbm [thread:$0]  %s1956, 16, %s1953, %s1943
        $region184: #{bert_encoder_forward.5} parent=99 // pred_fallthru
          _
      $region100: #{bert_encoder_forward.5} parent=5 // pred_fallthru
        _
      %p1959 = scmp.le.s32.totalorder 2, %s44
      // Predicated region
      $region185: #{bert_encoder_forward.5} parent=5 // pred_check
        %p1960 = pneg %p1959
      $region186: #{bert_encoder_forward.5} parent=5 // pred_check_branch
        %1962 = sbr.rel (%p1960) target = $region188
      $region187: #{bert_encoder_forward.5} parent=5 // pred_region
        %s1963 = ssub.s32 %s44, 2
        // Predicated region
        $region189: #{bert_encoder_forward.5} parent=187 // pred_check
          %p1964 = pneg %p503
        $region190: #{bert_encoder_forward.5} parent=187 // pred_check_branch
          %1966 = sbr.rel (%p1964) target = $region192
        $region191: #{bert_encoder_forward.5} parent=187 // pred_region
          %s1967 = sand.u32 %s488, 1
          %s1968 = scalar_lea.sflag [#allocation5], %s1967
          %s1969 = sand.u32 %s488, 1
          %s1970 = scalar_lea.vmem [#allocation35], %s1969
          %1971 = dma.done %s1968, 16
        $region192: #{bert_encoder_forward.5} parent=187 // pred_fallthru
          _
      $region188: #{bert_encoder_forward.5} parent=5 // pred_fallthru
        _
    $region6: #{bert_encoder_forward.5} parent=1 // loop_footer
      %s48 = sadd.s32 1, %s44
    $region7: #{bert_encoder_forward.5} parent=1 // loop_footer_branch
      %43 = sbr.rel target = $region3
    $region8: #{bert_encoder_forward.5} parent=1 // loop_exit
      _
    %1972 = vsyncpa [#allocation4], 1
    %s1973 = scalar_lea.sflag [#allocation4], 1
    %1974 = vsyncpa %s1973, 1
    %1975 = vsyncpa [#allocation7], 1
    %s1976 = scalar_lea.sflag [#allocation7], 1
    %1977 = vsyncpa %s1976, 1
    %1978 = vsyncpa [#allocation10], 1
    %1979 = vsyncpa [#allocation13], 1
    %1980 = vsyncpa [#allocation16], 1
    %1981 = vsyncpa [#allocation19], 1
    %1982 = vsyncpa [#allocation22], 1
    %1983 = vsyncpa [#allocation25], 1
    %1984 = vsyncpa [#allocation28], 1
    %1985 = vsyncpa [#allocation31], 1
    %1986 = vsyncpa [#allocation34], 1
    %1987 = vsyncpa [#allocation5], 1
    %s1988 = scalar_lea.sflag [#allocation5], 1
    %1989 = vsyncpa %s1988, 1

</llo_original>
